<compile_context>
chip_gen: v6e
topology: v6e:2x2x1
jax: 0.10.0
libtpu: 0.0.40
codegen_flags: <defaults>
</compile_context>

<pallas_src>
import math
import functools

import jax
import jax.numpy as jnp
from jax.experimental import pallas as pl
from jax.experimental.pallas import tpu as pltpu

# ---- small synthetic "BertConfig" ----
HIDDEN = 32
NUM_LAYERS = 2
NUM_HEADS = 4
HEAD_DIM = HIDDEN // NUM_HEADS
INTERMEDIATE = 64
VOCAB = 100
MAX_POS = 64
TYPE_VOCAB = 2
NUM_CLASSES = 4
LN_EPS = 1e-12

_VMEM = functools.partial(pl.BlockSpec, memory_space=pltpu.MemorySpace.VMEM)


# ---------------- fused whole-model Pallas kernel ----------------

def _bert_kernel(ids_ref, mask_ref, word_emb_ref, pos_type_ref,
                 emb_ln_g_ref, emb_ln_b_ref,
                 wqkv_ref, bqkv_ref, wo_ref, bo_ref, ln1_g_ref, ln1_b_ref,
                 wi_ref, bi_ref, wo2_ref, bo2_ref, ln2_g_ref, ln2_b_ref,
                 pool_w_ref, pool_b_ref, cls_w_ref, cls_b_ref,
                 out_ref, *, B, S):
    f32 = jnp.float32
    BS = B * S

    def layer_norm(x, g, b):
        mu = jnp.mean(x, axis=-1, keepdims=True)
        var = jnp.mean(jnp.square(x - mu), axis=-1, keepdims=True)
        return (x - mu) * jax.lax.rsqrt(var + LN_EPS) * g + b

    # ---- embeddings: one-hot gather on MXU + pos/type add + LayerNorm ----
    ids = ids_ref[...]                                            # (B*S, 1) int32
    vocab_iota = jax.lax.broadcasted_iota(jnp.int32, (BS, VOCAB), 1)
    onehot = (vocab_iota == ids).astype(f32)                      # (B*S, VOCAB)
    we = jnp.dot(onehot, word_emb_ref[...], preferred_element_type=f32)  # (B*S, H)
    pt = pos_type_ref[...]                                        # (S, H) pos+type
    emb = we + jnp.concatenate([pt] * B, axis=0)                  # (B*S, H)
    h = layer_norm(emb, emb_ln_g_ref[...], emb_ln_b_ref[...])
    # embedding dropout (p=0.1) is identity at inference.

    # additive attention mask: (1 - mask) * -10000, pre-broadcast ONCE to the
    # stacked (B*NUM_HEADS*S, S) score layout used inside every layer.
    addmask = (1.0 - mask_ref[...]) * -10000.0                    # (B, S)
    addmask_big = jnp.concatenate(
        [jnp.broadcast_to(addmask[b:b + 1, :], (NUM_HEADS * S, S))
         for b in range(B)], axis=0)                              # (B*NH*S, S)

    # ---- encoder layers (static Python loop, fully unrolled in-kernel) ----
    for l in range(NUM_LAYERS):
        # fused QKV projection (scale already folded into the Q weights)
        qkv = jnp.dot(h, wqkv_ref[l], preferred_element_type=f32) + bqkv_ref[l]  # (B*S, 3H)

        # -- raw per-(batch, head) score tiles, stacked along sublanes --
        score_parts = []
        for b in range(B):
            r0 = b * S
            for hh in range(NUM_HEADS):
                c0 = hh * HEAD_DIM
                qh = qkv[r0:r0 + S, c0:c0 + HEAD_DIM]                             # (S, HD)
                kh = qkv[r0:r0 + S, HIDDEN + c0:HIDDEN + c0 + HEAD_DIM]           # (S, HD)
                score_parts.append(
                    jnp.einsum("qd,kd->qk", qh, kh, preferred_element_type=f32))  # (S, S)
        scores = jnp.concatenate(score_parts, axis=0) + addmask_big               # (B*NH*S, S)

        # -- single batched softmax over all (batch, head) pairs --
        m = jnp.max(scores, axis=-1, keepdims=True)
        e = jnp.exp(scores - m)
        p = e * pl.reciprocal(jnp.sum(e, axis=-1, keepdims=True), approx=True)

        # -- context: p_bh @ v_bh, reassembled into (B*S, H) --
        ctx_rows = []
        for b in range(B):
            r0 = b * S
            head_parts = []
            for hh in range(NUM_HEADS):
                c0 = hh * HEAD_DIM
                vh = qkv[r0:r0 + S, 2 * HIDDEN + c0:2 * HIDDEN + c0 + HEAD_DIM]   # (S, HD)
                p_bh = p[(b * NUM_HEADS + hh) * S:(b * NUM_HEADS + hh) * S + S, :]  # (S, S)
                head_parts.append(jnp.dot(p_bh, vh, preferred_element_type=f32))  # (S, HD)
            ctx_rows.append(jnp.concatenate(head_parts, axis=-1))                 # (S, H)
        ctx = jnp.concatenate(ctx_rows, axis=0)                                   # (B*S, H)

        attn_out = jnp.dot(ctx, wo_ref[l], preferred_element_type=f32) + bo_ref[l]
        h1 = layer_norm(attn_out + h, ln1_g_ref[l], ln1_b_ref[l])

        # --- feed forward ---
        inter = jnp.dot(h1, wi_ref[l], preferred_element_type=f32) + bi_ref[l]
        # TODO(synk): HF BERT uses exact erf-GELU; tanh approximation used here.
        c = math.sqrt(2.0 / math.pi)
        inter = 0.5 * inter * (1.0 + jnp.tanh(c * (inter + 0.044715 * inter * inter * inter)))
        ffn_out = jnp.dot(inter, wo2_ref[l], preferred_element_type=f32) + bo2_ref[l]
        h = layer_norm(ffn_out + h1, ln2_g_ref[l], ln2_b_ref[l])

    # ---- pooler: tanh(W * hidden[:, 0]) ----
    cls_tok = jnp.concatenate([h[b * S:b * S + 1, :] for b in range(B)], axis=0)  # (B, H)
    pooled = jnp.tanh(jnp.dot(cls_tok, pool_w_ref[...], preferred_element_type=f32)
                      + pool_b_ref[...])
    # nn.Dropout(0.3) is identity at inference.

    # ---- classifier head: linear + softmax(dim=1) ----
    logits = jnp.dot(pooled, cls_w_ref[...], preferred_element_type=f32) + cls_b_ref[...]
    m = jnp.max(logits, axis=-1, keepdims=True)
    e = jnp.exp(logits - m)
    out_ref[...] = (e / jnp.sum(e, axis=-1, keepdims=True)).astype(out_ref.dtype)


# ---------------- parameter init (deterministic, synthetic, fused layout) ----------------

def init_params(key):
    std = 0.02
    n_keys = 3 + NUM_LAYERS * 6 + 2
    keys = iter(jax.random.split(key, n_keys))

    def nrm(shape):
        return std * jax.random.normal(next(keys), shape, jnp.float32)

    word_emb = nrm((VOCAB, HIDDEN))
    pos_emb = nrm((MAX_POS, HIDDEN))
    type_emb = nrm((TYPE_VOCAB, HIDDEN))

    scale = 1.0 / math.sqrt(HEAD_DIM)
    wqkv, bqkv, wo, bo, ln1_g, ln1_b = [], [], [], [], [], []
    wi, bi, wo2, bo2, ln2_g, ln2_b = [], [], [], [], [], []
    for _ in range(NUM_LAYERS):
        wq, wk, wv = nrm((HIDDEN, HIDDEN)), nrm((HIDDEN, HIDDEN)), nrm((HIDDEN, HIDDEN))
        # fold 1/sqrt(head_dim) score scale into the Q projection
        wqkv.append(jnp.concatenate([wq * scale, wk, wv], axis=1))     # (H, 3H)
        bqkv.append(jnp.zeros((1, 3 * HIDDEN), jnp.float32))
        wo.append(nrm((HIDDEN, HIDDEN)))
        bo.append(jnp.zeros((1, HIDDEN), jnp.float32))
        ln1_g.append(jnp.ones((1, HIDDEN), jnp.float32))
        ln1_b.append(jnp.zeros((1, HIDDEN), jnp.float32))
        wi.append(nrm((HIDDEN, INTERMEDIATE)))
        bi.append(jnp.zeros((1, INTERMEDIATE), jnp.float32))
        wo2.append(nrm((INTERMEDIATE, HIDDEN)))
        bo2.append(jnp.zeros((1, HIDDEN), jnp.float32))
        ln2_g.append(jnp.ones((1, HIDDEN), jnp.float32))
        ln2_b.append(jnp.zeros((1, HIDDEN), jnp.float32))

    pooler_w = nrm((HIDDEN, HIDDEN))
    cls_w = nrm((HIDDEN, NUM_CLASSES))

    return {
        "word_emb": word_emb,
        "pos_emb": pos_emb,
        "type_emb": type_emb,
        "emb_ln_g": jnp.ones((1, HIDDEN), jnp.float32),
        "emb_ln_b": jnp.zeros((1, HIDDEN), jnp.float32),
        "wqkv": jnp.stack(wqkv), "bqkv": jnp.stack(bqkv),
        "wo": jnp.stack(wo), "bo": jnp.stack(bo),
        "ln1_g": jnp.stack(ln1_g), "ln1_b": jnp.stack(ln1_b),
        "wi": jnp.stack(wi), "bi": jnp.stack(bi),
        "wo2": jnp.stack(wo2), "bo2": jnp.stack(bo2),
        "ln2_g": jnp.stack(ln2_g), "ln2_b": jnp.stack(ln2_b),
        "pooler_w": pooler_w,
        "pooler_b": jnp.zeros((1, HIDDEN), jnp.float32),
        "cls_w": cls_w,
        "cls_b": jnp.zeros((1, NUM_CLASSES), jnp.float32),
    }


# ---------------- forward pass: ONE pallas_call ----------------

def bert_classifier_forward(params, input_ids, attention_mask):
    B, S = input_ids.shape

    ids = input_ids.reshape(B * S, 1).astype(jnp.int32)
    mask = attention_mask.astype(jnp.float32)                      # (B, S)
    # position + token-type (token_type_ids = 0) embeddings, combined once
    pos_type = params["pos_emb"][:S] + params["type_emb"][0:1]     # (S, H)

    kern = functools.partial(_bert_kernel, B=B, S=S)
    return pl.pallas_call(
        kern,
        out_shape=jax.ShapeDtypeStruct((B, NUM_CLASSES), jnp.float32),
        in_specs=[_VMEM() for _ in range(22)],
        out_specs=_VMEM(),
    )(ids, mask, params["word_emb"], pos_type,
      params["emb_ln_g"], params["emb_ln_b"],
      params["wqkv"], params["bqkv"], params["wo"], params["bo"],
      params["ln1_g"], params["ln1_b"],
      params["wi"], params["bi"], params["wo2"], params["bo2"],
      params["ln2_g"], params["ln2_b"],
      params["pooler_w"], params["pooler_b"],
      params["cls_w"], params["cls_b"])


# ---------------- main ----------------

if __name__ == "__main__":
    key = jax.random.PRNGKey(0)
    pkey, ikey = jax.random.split(key)
    params = init_params(pkey)

    B, S = 2, 8
    input_ids = jax.random.randint(ikey, (B, S), 0, VOCAB, dtype=jnp.int32)
    attention_mask = jnp.ones((B, S), dtype=jnp.int32)

    fwd = jax.jit(bert_classifier_forward)
    probs = fwd(params, input_ids, attention_mask)
    probs = jax.block_until_ready(probs)

    assert probs.shape == (B, NUM_CLASSES)
    row_sums = jnp.sum(probs, axis=1)
    assert bool(jnp.all(jnp.abs(row_sums - 1.0) < 1e-5))
    print("KERNEL_OK")
</pallas_src>

<mosaic_0001>
module attributes {stable_mosaic.version = 11 : i64} {
  func.func @_bert_kernel(%arg0: memref<16x1xi32, #tpu.memory_space<vmem>>, %arg1: memref<2x8xf32, #tpu.memory_space<vmem>>, %arg2: memref<100x32xf32, #tpu.memory_space<vmem>>, %arg3: memref<8x32xf32, #tpu.memory_space<vmem>>, %arg4: memref<1x32xf32, #tpu.memory_space<vmem>>, %arg5: memref<1x32xf32, #tpu.memory_space<vmem>>, %arg6: memref<2x32x96xf32, #tpu.memory_space<vmem>>, %arg7: memref<2x1x96xf32, #tpu.memory_space<vmem>>, %arg8: memref<2x32x32xf32, #tpu.memory_space<vmem>>, %arg9: memref<2x1x32xf32, #tpu.memory_space<vmem>>, %arg10: memref<2x1x32xf32, #tpu.memory_space<vmem>>, %arg11: memref<2x1x32xf32, #tpu.memory_space<vmem>>, %arg12: memref<2x32x64xf32, #tpu.memory_space<vmem>>, %arg13: memref<2x1x64xf32, #tpu.memory_space<vmem>>, %arg14: memref<2x64x32xf32, #tpu.memory_space<vmem>>, %arg15: memref<2x1x32xf32, #tpu.memory_space<vmem>>, %arg16: memref<2x1x32xf32, #tpu.memory_space<vmem>>, %arg17: memref<2x1x32xf32, #tpu.memory_space<vmem>>, %arg18: memref<32x32xf32, #tpu.memory_space<vmem>>, %arg19: memref<1x32xf32, #tpu.memory_space<vmem>>, %arg20: memref<32x4xf32, #tpu.memory_space<vmem>>, %arg21: memref<1x4xf32, #tpu.memory_space<vmem>>, %arg22: memref<2x4xf32, #tpu.memory_space<vmem>>) attributes {dimension_semantics = [], scalar_prefetch = 0 : i64, scratch_operands = 0 : i64, tpu.core_type = #tpu.core_type<tc>} {
    %c0 = arith.constant 0 : index
    %c0_0 = arith.constant 0 : index
    %0 = vector.load %arg0[%c0, %c0_0] : memref<16x1xi32, #tpu.memory_space<vmem>>, vector<16x1xi32>
    %1 = tpu.iota {dimensions = array<i32: 1>} : vector<16x100xi32>
    %2 = vector.broadcast %0 : vector<16x1xi32> to vector<16x100xi32>
    %3 = arith.cmpi eq, %1, %2 : vector<16x100xi32>
    %4 = arith.extui %3 : vector<16x100xi1> to vector<16x100xi32>
    %5 = arith.sitofp %4 : vector<16x100xi32> to vector<16x100xf32>
    %c0_1 = arith.constant 0 : index
    %c0_2 = arith.constant 0 : index
    %6 = vector.load %arg2[%c0_1, %c0_2] : memref<100x32xf32, #tpu.memory_space<vmem>>, vector<100x32xf32>
    %cst = arith.constant dense<0.000000e+00> : vector<16x32xf32>
    %7 = tpu.matmul %5, %6, %cst {dimension_numbers = #tpu.dot_dimension_numbers<[1], [0], [0], [1], [0, 0, 1, 1], [], []>} : vector<16x100xf32>, vector<100x32xf32>, vector<16x32xf32> -> vector<16x32xf32>
    %c0_3 = arith.constant 0 : index
    %c0_4 = arith.constant 0 : index
    %8 = vector.load %arg3[%c0_3, %c0_4] : memref<8x32xf32, #tpu.memory_space<vmem>>, vector<8x32xf32>
    %9 = tpu.concatenate %8, %8 in 0 : vector<8x32xf32>, vector<8x32xf32> -> vector<16x32xf32>
    %10 = arith.addf %7, %9 : vector<16x32xf32>
    %c0_5 = arith.constant 0 : index
    %c0_6 = arith.constant 0 : index
    %11 = vector.load %arg4[%c0_5, %c0_6] : memref<1x32xf32, #tpu.memory_space<vmem>>, vector<1x32xf32>
    %c0_7 = arith.constant 0 : index
    %c0_8 = arith.constant 0 : index
    %12 = vector.load %arg5[%c0_7, %c0_8] : memref<1x32xf32, #tpu.memory_space<vmem>>, vector<1x32xf32>
    %cst_9 = arith.constant dense<0.000000e+00> : vector<16xf32>
    %13 = vector.multi_reduction <add>, %10, %cst_9 [1] : vector<16x32xf32> to vector<16xf32>
    %14 = vector.shape_cast %13 : vector<16xf32> to vector<16x1xf32>
    %cst_10 = arith.constant 3.200000e+01 : f32
    %15 = vector.broadcast %cst_10 : f32 to vector<16x1xf32>
    %16 = arith.divf %14, %15 : vector<16x1xf32>
    %17 = vector.broadcast %16 : vector<16x1xf32> to vector<16x32xf32>
    %18 = arith.subf %10, %17 : vector<16x32xf32>
    %19 = arith.mulf %18, %18 : vector<16x32xf32>
    %cst_11 = arith.constant dense<0.000000e+00> : vector<16xf32>
    %20 = vector.multi_reduction <add>, %19, %cst_11 [1] : vector<16x32xf32> to vector<16xf32>
    %21 = vector.shape_cast %20 : vector<16xf32> to vector<16x1xf32>
    %cst_12 = arith.constant 3.200000e+01 : f32
    %22 = vector.broadcast %cst_12 : f32 to vector<16x1xf32>
    %23 = arith.divf %21, %22 : vector<16x1xf32>
    %24 = vector.broadcast %16 : vector<16x1xf32> to vector<16x32xf32>
    %25 = arith.subf %10, %24 : vector<16x32xf32>
    %cst_13 = arith.constant 9.99999996E-13 : f32
    %26 = vector.broadcast %cst_13 : f32 to vector<16x1xf32>
    %27 = arith.addf %23, %26 : vector<16x1xf32>
    %28 = math.rsqrt %27 : vector<16x1xf32>
    %29 = vector.broadcast %28 : vector<16x1xf32> to vector<16x32xf32>
    %30 = arith.mulf %25, %29 : vector<16x32xf32>
    %31 = vector.broadcast %11 : vector<1x32xf32> to vector<16x32xf32>
    %32 = arith.mulf %30, %31 : vector<16x32xf32>
    %33 = vector.broadcast %12 : vector<1x32xf32> to vector<16x32xf32>
    %34 = arith.addf %32, %33 : vector<16x32xf32>
    %c0_14 = arith.constant 0 : index
    %c0_15 = arith.constant 0 : index
    %35 = vector.load %arg1[%c0_14, %c0_15] : memref<2x8xf32, #tpu.memory_space<vmem>>, vector<2x8xf32>
    %cst_16 = arith.constant 1.000000e+00 : f32
    %36 = vector.broadcast %cst_16 : f32 to vector<2x8xf32>
    %37 = arith.subf %36, %35 : vector<2x8xf32>
    %cst_17 = arith.constant -1.000000e+04 : f32
    %38 = vector.broadcast %cst_17 : f32 to vector<2x8xf32>
    %39 = arith.mulf %37, %38 : vector<2x8xf32>
    %40 = vector.extract_strided_slice %39 {offsets = [0, 0], sizes = [1, 8], strides = [1, 1]} : vector<2x8xf32> to vector<1x8xf32>
    %41 = vector.shape_cast %40 : vector<1x8xf32> to vector<1x8xf32>
    %42 = vector.broadcast %41 : vector<1x8xf32> to vector<32x8xf32>
    %43 = vector.extract_strided_slice %39 {offsets = [1, 0], sizes = [1, 8], strides = [1, 1]} : vector<2x8xf32> to vector<1x8xf32>
    %44 = vector.shape_cast %43 : vector<1x8xf32> to vector<1x8xf32>
    %45 = vector.broadcast %44 : vector<1x8xf32> to vector<32x8xf32>
    %46 = tpu.concatenate %42, %45 in 0 : vector<32x8xf32>, vector<32x8xf32> -> vector<64x8xf32>
    %c0_18 = arith.constant 0 : index
    %c0_19 = arith.constant 0 : index
    %c0_20 = arith.constant 0 : index
    %47 = vector.load %arg6[%c0_18, %c0_19, %c0_20] : memref<2x32x96xf32, #tpu.memory_space<vmem>>, vector<1x32x96xf32>
    %48 = vector.shape_cast %47 : vector<1x32x96xf32> to vector<32x96xf32>
    %cst_21 = arith.constant dense<0.000000e+00> : vector<16x96xf32>
    %49 = tpu.matmul %34, %48, %cst_21 {dimension_numbers = #tpu.dot_dimension_numbers<[1], [0], [0], [1], [0, 0, 1, 1], [], []>} : vector<16x32xf32>, vector<32x96xf32>, vector<16x96xf32> -> vector<16x96xf32>
    %c0_22 = arith.constant 0 : index
    %c0_23 = arith.constant 0 : index
    %c0_24 = arith.constant 0 : index
    %50 = vector.load %arg7[%c0_22, %c0_23, %c0_24] : memref<2x1x96xf32, #tpu.memory_space<vmem>>, vector<1x1x96xf32>
    %51 = vector.shape_cast %50 : vector<1x1x96xf32> to vector<1x96xf32>
    %52 = vector.broadcast %51 : vector<1x96xf32> to vector<16x96xf32>
    %53 = arith.addf %49, %52 : vector<16x96xf32>
    %54 = vector.extract_strided_slice %53 {offsets = [0, 0], sizes = [8, 8], strides = [1, 1]} : vector<16x96xf32> to vector<8x8xf32>
    %55 = vector.extract_strided_slice %53 {offsets = [0, 32], sizes = [8, 8], strides = [1, 1]} : vector<16x96xf32> to vector<8x8xf32>
    "tpu.trace_start"() <{level = 10 : i32, message = "qd,kd->qk"}> : () -> ()
    %cst_25 = arith.constant dense<0.000000e+00> : vector<8x8xf32>
    %56 = tpu.matmul %54, %55, %cst_25 {dimension_numbers = #tpu.dot_dimension_numbers<[1], [1], [0], [0], [0, 0, 1, 0], [], []>} : vector<8x8xf32>, vector<8x8xf32>, vector<8x8xf32> -> vector<8x8xf32>
    "tpu.trace_stop"() : () -> ()
    %57 = vector.extract_strided_slice %53 {offsets = [0, 8], sizes = [8, 8], strides = [1, 1]} : vector<16x96xf32> to vector<8x8xf32>
    %58 = vector.extract_strided_slice %53 {offsets = [0, 40], sizes = [8, 8], strides = [1, 1]} : vector<16x96xf32> to vector<8x8xf32>
    "tpu.trace_start"() <{level = 10 : i32, message = "qd,kd->qk"}> : () -> ()
    %cst_26 = arith.constant dense<0.000000e+00> : vector<8x8xf32>
    %59 = tpu.matmul %57, %58, %cst_26 {dimension_numbers = #tpu.dot_dimension_numbers<[1], [1], [0], [0], [0, 0, 1, 0], [], []>} : vector<8x8xf32>, vector<8x8xf32>, vector<8x8xf32> -> vector<8x8xf32>
    "tpu.trace_stop"() : () -> ()
    %60 = vector.extract_strided_slice %53 {offsets = [0, 16], sizes = [8, 8], strides = [1, 1]} : vector<16x96xf32> to vector<8x8xf32>
    %61 = vector.extract_strided_slice %53 {offsets = [0, 48], sizes = [8, 8], strides = [1, 1]} : vector<16x96xf32> to vector<8x8xf32>
    "tpu.trace_start"() <{level = 10 : i32, message = "qd,kd->qk"}> : () -> ()
    %cst_27 = arith.constant dense<0.000000e+00> : vector<8x8xf32>
    %62 = tpu.matmul %60, %61, %cst_27 {dimension_numbers = #tpu.dot_dimension_numbers<[1], [1], [0], [0], [0, 0, 1, 0], [], []>} : vector<8x8xf32>, vector<8x8xf32>, vector<8x8xf32> -> vector<8x8xf32>
    "tpu.trace_stop"() : () -> ()
    %63 = vector.extract_strided_slice %53 {offsets = [0, 24], sizes = [8, 8], strides = [1, 1]} : vector<16x96xf32> to vector<8x8xf32>
    %64 = vector.extract_strided_slice %53 {offsets = [0, 56], sizes = [8, 8], strides = [1, 1]} : vector<16x96xf32> to vector<8x8xf32>
    "tpu.trace_start"() <{level = 10 : i32, message = "qd,kd->qk"}> : () -> ()
    %cst_28 = arith.constant dense<0.000000e+00> : vector<8x8xf32>
    %65 = tpu.matmul %63, %64, %cst_28 {dimension_numbers = #tpu.dot_dimension_numbers<[1], [1], [0], [0], [0, 0, 1, 0], [], []>} : vector<8x8xf32>, vector<8x8xf32>, vector<8x8xf32> -> vector<8x8xf32>
    "tpu.trace_stop"() : () -> ()
    %66 = vector.extract_strided_slice %53 {offsets = [8, 0], sizes = [8, 8], strides = [1, 1]} : vector<16x96xf32> to vector<8x8xf32>
    %67 = vector.extract_strided_slice %53 {offsets = [8, 32], sizes = [8, 8], strides = [1, 1]} : vector<16x96xf32> to vector<8x8xf32>
    "tpu.trace_start"() <{level = 10 : i32, message = "qd,kd->qk"}> : () -> ()
    %cst_29 = arith.constant dense<0.000000e+00> : vector<8x8xf32>
    %68 = tpu.matmul %66, %67, %cst_29 {dimension_numbers = #tpu.dot_dimension_numbers<[1], [1], [0], [0], [0, 0, 1, 0], [], []>} : vector<8x8xf32>, vector<8x8xf32>, vector<8x8xf32> -> vector<8x8xf32>
    "tpu.trace_stop"() : () -> ()
    %69 = vector.extract_strided_slice %53 {offsets = [8, 8], sizes = [8, 8], strides = [1, 1]} : vector<16x96xf32> to vector<8x8xf32>
    %70 = vector.extract_strided_slice %53 {offsets = [8, 40], sizes = [8, 8], strides = [1, 1]} : vector<16x96xf32> to vector<8x8xf32>
    "tpu.trace_start"() <{level = 10 : i32, message = "qd,kd->qk"}> : () -> ()
    %cst_30 = arith.constant dense<0.000000e+00> : vector<8x8xf32>
    %71 = tpu.matmul %69, %70, %cst_30 {dimension_numbers = #tpu.dot_dimension_numbers<[1], [1], [0], [0], [0, 0, 1, 0], [], []>} : vector<8x8xf32>, vector<8x8xf32>, vector<8x8xf32> -> vector<8x8xf32>
    "tpu.trace_stop"() : () -> ()
    %72 = vector.extract_strided_slice %53 {offsets = [8, 16], sizes = [8, 8], strides = [1, 1]} : vector<16x96xf32> to vector<8x8xf32>
    %73 = vector.extract_strided_slice %53 {offsets = [8, 48], sizes = [8, 8], strides = [1, 1]} : vector<16x96xf32> to vector<8x8xf32>
    "tpu.trace_start"() <{level = 10 : i32, message = "qd,kd->qk"}> : () -> ()
    %cst_31 = arith.constant dense<0.000000e+00> : vector<8x8xf32>
    %74 = tpu.matmul %72, %73, %cst_31 {dimension_numbers = #tpu.dot_dimension_numbers<[1], [1], [0], [0], [0, 0, 1, 0], [], []>} : vector<8x8xf32>, vector<8x8xf32>, vector<8x8xf32> -> vector<8x8xf32>
    "tpu.trace_stop"() : () -> ()
    %75 = vector.extract_strided_slice %53 {offsets = [8, 24], sizes = [8, 8], strides = [1, 1]} : vector<16x96xf32> to vector<8x8xf32>
    %76 = vector.extract_strided_slice %53 {offsets = [8, 56], sizes = [8, 8], strides = [1, 1]} : vector<16x96xf32> to vector<8x8xf32>
    "tpu.trace_start"() <{level = 10 : i32, message = "qd,kd->qk"}> : () -> ()
    %cst_32 = arith.constant dense<0.000000e+00> : vector<8x8xf32>
    %77 = tpu.matmul %75, %76, %cst_32 {dimension_numbers = #tpu.dot_dimension_numbers<[1], [1], [0], [0], [0, 0, 1, 0], [], []>} : vector<8x8xf32>, vector<8x8xf32>, vector<8x8xf32> -> vector<8x8xf32>
    "tpu.trace_stop"() : () -> ()
    %78 = tpu.concatenate %56, %59, %62, %65, %68, %71, %74, %77 in 0 : vector<8x8xf32>, vector<8x8xf32>, vector<8x8xf32>, vector<8x8xf32>, vector<8x8xf32>, vector<8x8xf32>, vector<8x8xf32>, vector<8x8xf32> -> vector<64x8xf32>
    %79 = arith.addf %78, %46 : vector<64x8xf32>
    %cst_33 = arith.constant dense<0xFF800000> : vector<64xf32>
    %80 = vector.multi_reduction <maximumf>, %79, %cst_33 [1] : vector<64x8xf32> to vector<64xf32>
    %81 = vector.shape_cast %80 : vector<64xf32> to vector<64x1xf32>
    %82 = vector.broadcast %81 : vector<64x1xf32> to vector<64x8xf32>
    %83 = arith.subf %79, %82 : vector<64x8xf32>
    %84 = math.exp %83 : vector<64x8xf32>
    %cst_34 = arith.constant dense<0.000000e+00> : vector<64xf32>
    %85 = vector.multi_reduction <add>, %84, %cst_34 [1] : vector<64x8xf32> to vector<64xf32>
    %86 = vector.shape_cast %85 : vector<64xf32> to vector<64x1xf32>
    %87 = tpu.reciprocal %86 {approx = true} : vector<64x1xf32> -> vector<64x1xf32>
    %88 = vector.broadcast %87 : vector<64x1xf32> to vector<64x8xf32>
    %89 = arith.mulf %84, %88 : vector<64x8xf32>
    %90 = vector.extract_strided_slice %53 {offsets = [0, 64], sizes = [8, 8], strides = [1, 1]} : vector<16x96xf32> to vector<8x8xf32>
    %91 = vector.extract_strided_slice %89 {offsets = [0, 0], sizes = [8, 8], strides = [1, 1]} : vector<64x8xf32> to vector<8x8xf32>
    %cst_35 = arith.constant dense<0.000000e+00> : vector<8x8xf32>
    %92 = tpu.matmul %91, %90, %cst_35 {dimension_numbers = #tpu.dot_dimension_numbers<[1], [0], [0], [1], [0, 0, 1, 1], [], []>} : vector<8x8xf32>, vector<8x8xf32>, vector<8x8xf32> -> vector<8x8xf32>
    %93 = vector.extract_strided_slice %53 {offsets = [0, 72], sizes = [8, 8], strides = [1, 1]} : vector<16x96xf32> to vector<8x8xf32>
    %94 = vector.extract_strided_slice %89 {offsets = [8, 0], sizes = [8, 8], strides = [1, 1]} : vector<64x8xf32> to vector<8x8xf32>
    %cst_36 = arith.constant dense<0.000000e+00> : vector<8x8xf32>
    %95 = tpu.matmul %94, %93, %cst_36 {dimension_numbers = #tpu.dot_dimension_numbers<[1], [0], [0], [1], [0, 0, 1, 1], [], []>} : vector<8x8xf32>, vector<8x8xf32>, vector<8x8xf32> -> vector<8x8xf32>
    %96 = vector.extract_strided_slice %53 {offsets = [0, 80], sizes = [8, 8], strides = [1, 1]} : vector<16x96xf32> to vector<8x8xf32>
    %97 = vector.extract_strided_slice %89 {offsets = [16, 0], sizes = [8, 8], strides = [1, 1]} : vector<64x8xf32> to vector<8x8xf32>
    %cst_37 = arith.constant dense<0.000000e+00> : vector<8x8xf32>
    %98 = tpu.matmul %97, %96, %cst_37 {dimension_numbers = #tpu.dot_dimension_numbers<[1], [0], [0], [1], [0, 0, 1, 1], [], []>} : vector<8x8xf32>, vector<8x8xf32>, vector<8x8xf32> -> vector<8x8xf32>
    %99 = vector.extract_strided_slice %53 {offsets = [0, 88], sizes = [8, 8], strides = [1, 1]} : vector<16x96xf32> to vector<8x8xf32>
    %100 = vector.extract_strided_slice %89 {offsets = [24, 0], sizes = [8, 8], strides = [1, 1]} : vector<64x8xf32> to vector<8x8xf32>
    %cst_38 = arith.constant dense<0.000000e+00> : vector<8x8xf32>
    %101 = tpu.matmul %100, %99, %cst_38 {dimension_numbers = #tpu.dot_dimension_numbers<[1], [0], [0], [1], [0, 0, 1, 1], [], []>} : vector<8x8xf32>, vector<8x8xf32>, vector<8x8xf32> -> vector<8x8xf32>
    %102 = tpu.concatenate %92, %95, %98, %101 in 1 : vector<8x8xf32>, vector<8x8xf32>, vector<8x8xf32>, vector<8x8xf32> -> vector<8x32xf32>
    %103 = vector.extract_strided_slice %53 {offsets = [8, 64], sizes = [8, 8], strides = [1, 1]} : vector<16x96xf32> to vector<8x8xf32>
    %104 = vector.extract_strided_slice %89 {offsets = [32, 0], sizes = [8, 8], strides = [1, 1]} : vector<64x8xf32> to vector<8x8xf32>
    %cst_39 = arith.constant dense<0.000000e+00> : vector<8x8xf32>
    %105 = tpu.matmul %104, %103, %cst_39 {dimension_numbers = #tpu.dot_dimension_numbers<[1], [0], [0], [1], [0, 0, 1, 1], [], []>} : vector<8x8xf32>, vector<8x8xf32>, vector<8x8xf32> -> vector<8x8xf32>
    %106 = vector.extract_strided_slice %53 {offsets = [8, 72], sizes = [8, 8], strides = [1, 1]} : vector<16x96xf32> to vector<8x8xf32>
    %107 = vector.extract_strided_slice %89 {offsets = [40, 0], sizes = [8, 8], strides = [1, 1]} : vector<64x8xf32> to vector<8x8xf32>
    %cst_40 = arith.constant dense<0.000000e+00> : vector<8x8xf32>
    %108 = tpu.matmul %107, %106, %cst_40 {dimension_numbers = #tpu.dot_dimension_numbers<[1], [0], [0], [1], [0, 0, 1, 1], [], []>} : vector<8x8xf32>, vector<8x8xf32>, vector<8x8xf32> -> vector<8x8xf32>
    %109 = vector.extract_strided_slice %53 {offsets = [8, 80], sizes = [8, 8], strides = [1, 1]} : vector<16x96xf32> to vector<8x8xf32>
    %110 = vector.extract_strided_slice %89 {offsets = [48, 0], sizes = [8, 8], strides = [1, 1]} : vector<64x8xf32> to vector<8x8xf32>
    %cst_41 = arith.constant dense<0.000000e+00> : vector<8x8xf32>
    %111 = tpu.matmul %110, %109, %cst_41 {dimension_numbers = #tpu.dot_dimension_numbers<[1], [0], [0], [1], [0, 0, 1, 1], [], []>} : vector<8x8xf32>, vector<8x8xf32>, vector<8x8xf32> -> vector<8x8xf32>
    %112 = vector.extract_strided_slice %53 {offsets = [8, 88], sizes = [8, 8], strides = [1, 1]} : vector<16x96xf32> to vector<8x8xf32>
    %113 = vector.extract_strided_slice %89 {offsets = [56, 0], sizes = [8, 8], strides = [1, 1]} : vector<64x8xf32> to vector<8x8xf32>
    %cst_42 = arith.constant dense<0.000000e+00> : vector<8x8xf32>
    %114 = tpu.matmul %113, %112, %cst_42 {dimension_numbers = #tpu.dot_dimension_numbers<[1], [0], [0], [1], [0, 0, 1, 1], [], []>} : vector<8x8xf32>, vector<8x8xf32>, vector<8x8xf32> -> vector<8x8xf32>
    %115 = tpu.concatenate %105, %108, %111, %114 in 1 : vector<8x8xf32>, vector<8x8xf32>, vector<8x8xf32>, vector<8x8xf32> -> vector<8x32xf32>
    %116 = tpu.concatenate %102, %115 in 0 : vector<8x32xf32>, vector<8x32xf32> -> vector<16x32xf32>
    %c0_43 = arith.constant 0 : index
    %c0_44 = arith.constant 0 : index
    %c0_45 = arith.constant 0 : index
    %117 = vector.load %arg8[%c0_43, %c0_44, %c0_45] : memref<2x32x32xf32, #tpu.memory_space<vmem>>, vector<1x32x32xf32>
    %118 = vector.shape_cast %117 : vector<1x32x32xf32> to vector<32x32xf32>
    %cst_46 = arith.constant dense<0.000000e+00> : vector<16x32xf32>
    %119 = tpu.matmul %116, %118, %cst_46 {dimension_numbers = #tpu.dot_dimension_numbers<[1], [0], [0], [1], [0, 0, 1, 1], [], []>} : vector<16x32xf32>, vector<32x32xf32>, vector<16x32xf32> -> vector<16x32xf32>
    %c0_47 = arith.constant 0 : index
    %c0_48 = arith.constant 0 : index
    %c0_49 = arith.constant 0 : index
    %120 = vector.load %arg9[%c0_47, %c0_48, %c0_49] : memref<2x1x32xf32, #tpu.memory_space<vmem>>, vector<1x1x32xf32>
    %121 = vector.shape_cast %120 : vector<1x1x32xf32> to vector<1x32xf32>
    %122 = vector.broadcast %121 : vector<1x32xf32> to vector<16x32xf32>
    %123 = arith.addf %119, %122 : vector<16x32xf32>
    %124 = arith.addf %123, %34 : vector<16x32xf32>
    %c0_50 = arith.constant 0 : index
    %c0_51 = arith.constant 0 : index
    %c0_52 = arith.constant 0 : index
    %125 = vector.load %arg10[%c0_50, %c0_51, %c0_52] : memref<2x1x32xf32, #tpu.memory_space<vmem>>, vector<1x1x32xf32>
    %126 = vector.shape_cast %125 : vector<1x1x32xf32> to vector<1x32xf32>
    %c0_53 = arith.constant 0 : index
    %c0_54 = arith.constant 0 : index
    %c0_55 = arith.constant 0 : index
    %127 = vector.load %arg11[%c0_53, %c0_54, %c0_55] : memref<2x1x32xf32, #tpu.memory_space<vmem>>, vector<1x1x32xf32>
    %128 = vector.shape_cast %127 : vector<1x1x32xf32> to vector<1x32xf32>
    %cst_56 = arith.constant dense<0.000000e+00> : vector<16xf32>
    %129 = vector.multi_reduction <add>, %124, %cst_56 [1] : vector<16x32xf32> to vector<16xf32>
    %130 = vector.shape_cast %129 : vector<16xf32> to vector<16x1xf32>
    %cst_57 = arith.constant 3.200000e+01 : f32
    %131 = vector.broadcast %cst_57 : f32 to vector<16x1xf32>
    %132 = arith.divf %130, %131 : vector<16x1xf32>
    %133 = vector.broadcast %132 : vector<16x1xf32> to vector<16x32xf32>
    %134 = arith.subf %124, %133 : vector<16x32xf32>
    %135 = arith.mulf %134, %134 : vector<16x32xf32>
    %cst_58 = arith.constant dense<0.000000e+00> : vector<16xf32>
    %136 = vector.multi_reduction <add>, %135, %cst_58 [1] : vector<16x32xf32> to vector<16xf32>
    %137 = vector.shape_cast %136 : vector<16xf32> to vector<16x1xf32>
    %cst_59 = arith.constant 3.200000e+01 : f32
    %138 = vector.broadcast %cst_59 : f32 to vector<16x1xf32>
    %139 = arith.divf %137, %138 : vector<16x1xf32>
    %140 = vector.broadcast %132 : vector<16x1xf32> to vector<16x32xf32>
    %141 = arith.subf %124, %140 : vector<16x32xf32>
    %cst_60 = arith.constant 9.99999996E-13 : f32
    %142 = vector.broadcast %cst_60 : f32 to vector<16x1xf32>
    %143 = arith.addf %139, %142 : vector<16x1xf32>
    %144 = math.rsqrt %143 : vector<16x1xf32>
    %145 = vector.broadcast %144 : vector<16x1xf32> to vector<16x32xf32>
    %146 = arith.mulf %141, %145 : vector<16x32xf32>
    %147 = vector.broadcast %126 : vector<1x32xf32> to vector<16x32xf32>
    %148 = arith.mulf %146, %147 : vector<16x32xf32>
    %149 = vector.broadcast %128 : vector<1x32xf32> to vector<16x32xf32>
    %150 = arith.addf %148, %149 : vector<16x32xf32>
    %c0_61 = arith.constant 0 : index
    %c0_62 = arith.constant 0 : index
    %c0_63 = arith.constant 0 : index
    %151 = vector.load %arg12[%c0_61, %c0_62, %c0_63] : memref<2x32x64xf32, #tpu.memory_space<vmem>>, vector<1x32x64xf32>
    %152 = vector.shape_cast %151 : vector<1x32x64xf32> to vector<32x64xf32>
    %cst_64 = arith.constant dense<0.000000e+00> : vector<16x64xf32>
    %153 = tpu.matmul %150, %152, %cst_64 {dimension_numbers = #tpu.dot_dimension_numbers<[1], [0], [0], [1], [0, 0, 1, 1], [], []>} : vector<16x32xf32>, vector<32x64xf32>, vector<16x64xf32> -> vector<16x64xf32>
    %c0_65 = arith.constant 0 : index
    %c0_66 = arith.constant 0 : index
    %c0_67 = arith.constant 0 : index
    %154 = vector.load %arg13[%c0_65, %c0_66, %c0_67] : memref<2x1x64xf32, #tpu.memory_space<vmem>>, vector<1x1x64xf32>
    %155 = vector.shape_cast %154 : vector<1x1x64xf32> to vector<1x64xf32>
    %156 = vector.broadcast %155 : vector<1x64xf32> to vector<16x64xf32>
    %157 = arith.addf %153, %156 : vector<16x64xf32>
    %cst_68 = arith.constant 5.000000e-01 : f32
    %158 = vector.broadcast %cst_68 : f32 to vector<16x64xf32>
    %159 = arith.mulf %158, %157 : vector<16x64xf32>
    %cst_69 = arith.constant 4.471500e-02 : f32
    %160 = vector.broadcast %cst_69 : f32 to vector<16x64xf32>
    %161 = arith.mulf %160, %157 : vector<16x64xf32>
    %162 = arith.mulf %161, %157 : vector<16x64xf32>
    %163 = arith.mulf %162, %157 : vector<16x64xf32>
    %164 = arith.addf %157, %163 : vector<16x64xf32>
    %cst_70 = arith.constant 0.797884583 : f32
    %165 = vector.broadcast %cst_70 : f32 to vector<16x64xf32>
    %166 = arith.mulf %165, %164 : vector<16x64xf32>
    %167 = math.tanh %166 : vector<16x64xf32>
    %cst_71 = arith.constant 1.000000e+00 : f32
    %168 = vector.broadcast %cst_71 : f32 to vector<16x64xf32>
    %169 = arith.addf %168, %167 : vector<16x64xf32>
    %170 = arith.mulf %159, %169 : vector<16x64xf32>
    %c0_72 = arith.constant 0 : index
    %c0_73 = arith.constant 0 : index
    %c0_74 = arith.constant 0 : index
    %171 = vector.load %arg14[%c0_72, %c0_73, %c0_74] : memref<2x64x32xf32, #tpu.memory_space<vmem>>, vector<1x64x32xf32>
    %172 = vector.shape_cast %171 : vector<1x64x32xf32> to vector<64x32xf32>
    %cst_75 = arith.constant dense<0.000000e+00> : vector<16x32xf32>
    %173 = tpu.matmul %170, %172, %cst_75 {dimension_numbers = #tpu.dot_dimension_numbers<[1], [0], [0], [1], [0, 0, 1, 1], [], []>} : vector<16x64xf32>, vector<64x32xf32>, vector<16x32xf32> -> vector<16x32xf32>
    %c0_76 = arith.constant 0 : index
    %c0_77 = arith.constant 0 : index
    %c0_78 = arith.constant 0 : index
    %174 = vector.load %arg15[%c0_76, %c0_77, %c0_78] : memref<2x1x32xf32, #tpu.memory_space<vmem>>, vector<1x1x32xf32>
    %175 = vector.shape_cast %174 : vector<1x1x32xf32> to vector<1x32xf32>
    %176 = vector.broadcast %175 : vector<1x32xf32> to vector<16x32xf32>
    %177 = arith.addf %173, %176 : vector<16x32xf32>
    %178 = arith.addf %177, %150 : vector<16x32xf32>
    %c0_79 = arith.constant 0 : index
    %c0_80 = arith.constant 0 : index
    %c0_81 = arith.constant 0 : index
    %179 = vector.load %arg16[%c0_79, %c0_80, %c0_81] : memref<2x1x32xf32, #tpu.memory_space<vmem>>, vector<1x1x32xf32>
    %180 = vector.shape_cast %179 : vector<1x1x32xf32> to vector<1x32xf32>
    %c0_82 = arith.constant 0 : index
    %c0_83 = arith.constant 0 : index
    %c0_84 = arith.constant 0 : index
    %181 = vector.load %arg17[%c0_82, %c0_83, %c0_84] : memref<2x1x32xf32, #tpu.memory_space<vmem>>, vector<1x1x32xf32>
    %182 = vector.shape_cast %181 : vector<1x1x32xf32> to vector<1x32xf32>
    %cst_85 = arith.constant dense<0.000000e+00> : vector<16xf32>
    %183 = vector.multi_reduction <add>, %178, %cst_85 [1] : vector<16x32xf32> to vector<16xf32>
    %184 = vector.shape_cast %183 : vector<16xf32> to vector<16x1xf32>
    %cst_86 = arith.constant 3.200000e+01 : f32
    %185 = vector.broadcast %cst_86 : f32 to vector<16x1xf32>
    %186 = arith.divf %184, %185 : vector<16x1xf32>
    %187 = vector.broadcast %186 : vector<16x1xf32> to vector<16x32xf32>
    %188 = arith.subf %178, %187 : vector<16x32xf32>
    %189 = arith.mulf %188, %188 : vector<16x32xf32>
    %cst_87 = arith.constant dense<0.000000e+00> : vector<16xf32>
    %190 = vector.multi_reduction <add>, %189, %cst_87 [1] : vector<16x32xf32> to vector<16xf32>
    %191 = vector.shape_cast %190 : vector<16xf32> to vector<16x1xf32>
    %cst_88 = arith.constant 3.200000e+01 : f32
    %192 = vector.broadcast %cst_88 : f32 to vector<16x1xf32>
    %193 = arith.divf %191, %192 : vector<16x1xf32>
    %194 = vector.broadcast %186 : vector<16x1xf32> to vector<16x32xf32>
    %195 = arith.subf %178, %194 : vector<16x32xf32>
    %cst_89 = arith.constant 9.99999996E-13 : f32
    %196 = vector.broadcast %cst_89 : f32 to vector<16x1xf32>
    %197 = arith.addf %193, %196 : vector<16x1xf32>
    %198 = math.rsqrt %197 : vector<16x1xf32>
    %199 = vector.broadcast %198 : vector<16x1xf32> to vector<16x32xf32>
    %200 = arith.mulf %195, %199 : vector<16x32xf32>
    %201 = vector.broadcast %180 : vector<1x32xf32> to vector<16x32xf32>
    %202 = arith.mulf %200, %201 : vector<16x32xf32>
    %203 = vector.broadcast %182 : vector<1x32xf32> to vector<16x32xf32>
    %204 = arith.addf %202, %203 : vector<16x32xf32>
    %c1 = arith.constant 1 : index
    %c0_90 = arith.constant 0 : index
    %c0_91 = arith.constant 0 : index
    %205 = vector.load %arg6[%c1, %c0_90, %c0_91] : memref<2x32x96xf32, #tpu.memory_space<vmem>>, vector<1x32x96xf32>
    %206 = vector.shape_cast %205 : vector<1x32x96xf32> to vector<32x96xf32>
    %cst_92 = arith.constant dense<0.000000e+00> : vector<16x96xf32>
    %207 = tpu.matmul %204, %206, %cst_92 {dimension_numbers = #tpu.dot_dimension_numbers<[1], [0], [0], [1], [0, 0, 1, 1], [], []>} : vector<16x32xf32>, vector<32x96xf32>, vector<16x96xf32> -> vector<16x96xf32>
    %c1_93 = arith.constant 1 : index
    %c0_94 = arith.constant 0 : index
    %c0_95 = arith.constant 0 : index
    %208 = vector.load %arg7[%c1_93, %c0_94, %c0_95] : memref<2x1x96xf32, #tpu.memory_space<vmem>>, vector<1x1x96xf32>
    %209 = vector.shape_cast %208 : vector<1x1x96xf32> to vector<1x96xf32>
    %210 = vector.broadcast %209 : vector<1x96xf32> to vector<16x96xf32>
    %211 = arith.addf %207, %210 : vector<16x96xf32>
    %212 = vector.extract_strided_slice %211 {offsets = [0, 0], sizes = [8, 8], strides = [1, 1]} : vector<16x96xf32> to vector<8x8xf32>
    %213 = vector.extract_strided_slice %211 {offsets = [0, 32], sizes = [8, 8], strides = [1, 1]} : vector<16x96xf32> to vector<8x8xf32>
    "tpu.trace_start"() <{level = 10 : i32, message = "qd,kd->qk"}> : () -> ()
    %cst_96 = arith.constant dense<0.000000e+00> : vector<8x8xf32>
    %214 = tpu.matmul %212, %213, %cst_96 {dimension_numbers = #tpu.dot_dimension_numbers<[1], [1], [0], [0], [0, 0, 1, 0], [], []>} : vector<8x8xf32>, vector<8x8xf32>, vector<8x8xf32> -> vector<8x8xf32>
    "tpu.trace_stop"() : () -> ()
    %215 = vector.extract_strided_slice %211 {offsets = [0, 8], sizes = [8, 8], strides = [1, 1]} : vector<16x96xf32> to vector<8x8xf32>
    %216 = vector.extract_strided_slice %211 {offsets = [0, 40], sizes = [8, 8], strides = [1, 1]} : vector<16x96xf32> to vector<8x8xf32>
    "tpu.trace_start"() <{level = 10 : i32, message = "qd,kd->qk"}> : () -> ()
    %cst_97 = arith.constant dense<0.000000e+00> : vector<8x8xf32>
    %217 = tpu.matmul %215, %216, %cst_97 {dimension_numbers = #tpu.dot_dimension_numbers<[1], [1], [0], [0], [0, 0, 1, 0], [], []>} : vector<8x8xf32>, vector<8x8xf32>, vector<8x8xf32> -> vector<8x8xf32>
    "tpu.trace_stop"() : () -> ()
    %218 = vector.extract_strided_slice %211 {offsets = [0, 16], sizes = [8, 8], strides = [1, 1]} : vector<16x96xf32> to vector<8x8xf32>
    %219 = vector.extract_strided_slice %211 {offsets = [0, 48], sizes = [8, 8], strides = [1, 1]} : vector<16x96xf32> to vector<8x8xf32>
    "tpu.trace_start"() <{level = 10 : i32, message = "qd,kd->qk"}> : () -> ()
    %cst_98 = arith.constant dense<0.000000e+00> : vector<8x8xf32>
    %220 = tpu.matmul %218, %219, %cst_98 {dimension_numbers = #tpu.dot_dimension_numbers<[1], [1], [0], [0], [0, 0, 1, 0], [], []>} : vector<8x8xf32>, vector<8x8xf32>, vector<8x8xf32> -> vector<8x8xf32>
    "tpu.trace_stop"() : () -> ()
    %221 = vector.extract_strided_slice %211 {offsets = [0, 24], sizes = [8, 8], strides = [1, 1]} : vector<16x96xf32> to vector<8x8xf32>
    %222 = vector.extract_strided_slice %211 {offsets = [0, 56], sizes = [8, 8], strides = [1, 1]} : vector<16x96xf32> to vector<8x8xf32>
    "tpu.trace_start"() <{level = 10 : i32, message = "qd,kd->qk"}> : () -> ()
    %cst_99 = arith.constant dense<0.000000e+00> : vector<8x8xf32>
    %223 = tpu.matmul %221, %222, %cst_99 {dimension_numbers = #tpu.dot_dimension_numbers<[1], [1], [0], [0], [0, 0, 1, 0], [], []>} : vector<8x8xf32>, vector<8x8xf32>, vector<8x8xf32> -> vector<8x8xf32>
    "tpu.trace_stop"() : () -> ()
    %224 = vector.extract_strided_slice %211 {offsets = [8, 0], sizes = [8, 8], strides = [1, 1]} : vector<16x96xf32> to vector<8x8xf32>
    %225 = vector.extract_strided_slice %211 {offsets = [8, 32], sizes = [8, 8], strides = [1, 1]} : vector<16x96xf32> to vector<8x8xf32>
    "tpu.trace_start"() <{level = 10 : i32, message = "qd,kd->qk"}> : () -> ()
    %cst_100 = arith.constant dense<0.000000e+00> : vector<8x8xf32>
    %226 = tpu.matmul %224, %225, %cst_100 {dimension_numbers = #tpu.dot_dimension_numbers<[1], [1], [0], [0], [0, 0, 1, 0], [], []>} : vector<8x8xf32>, vector<8x8xf32>, vector<8x8xf32> -> vector<8x8xf32>
    "tpu.trace_stop"() : () -> ()
    %227 = vector.extract_strided_slice %211 {offsets = [8, 8], sizes = [8, 8], strides = [1, 1]} : vector<16x96xf32> to vector<8x8xf32>
    %228 = vector.extract_strided_slice %211 {offsets = [8, 40], sizes = [8, 8], strides = [1, 1]} : vector<16x96xf32> to vector<8x8xf32>
    "tpu.trace_start"() <{level = 10 : i32, message = "qd,kd->qk"}> : () -> ()
    %cst_101 = arith.constant dense<0.000000e+00> : vector<8x8xf32>
    %229 = tpu.matmul %227, %228, %cst_101 {dimension_numbers = #tpu.dot_dimension_numbers<[1], [1], [0], [0], [0, 0, 1, 0], [], []>} : vector<8x8xf32>, vector<8x8xf32>, vector<8x8xf32> -> vector<8x8xf32>
    "tpu.trace_stop"() : () -> ()
    %230 = vector.extract_strided_slice %211 {offsets = [8, 16], sizes = [8, 8], strides = [1, 1]} : vector<16x96xf32> to vector<8x8xf32>
    %231 = vector.extract_strided_slice %211 {offsets = [8, 48], sizes = [8, 8], strides = [1, 1]} : vector<16x96xf32> to vector<8x8xf32>
    "tpu.trace_start"() <{level = 10 : i32, message = "qd,kd->qk"}> : () -> ()
    %cst_102 = arith.constant dense<0.000000e+00> : vector<8x8xf32>
    %232 = tpu.matmul %230, %231, %cst_102 {dimension_numbers = #tpu.dot_dimension_numbers<[1], [1], [0], [0], [0, 0, 1, 0], [], []>} : vector<8x8xf32>, vector<8x8xf32>, vector<8x8xf32> -> vector<8x8xf32>
    "tpu.trace_stop"() : () -> ()
    %233 = vector.extract_strided_slice %211 {offsets = [8, 24], sizes = [8, 8], strides = [1, 1]} : vector<16x96xf32> to vector<8x8xf32>
    %234 = vector.extract_strided_slice %211 {offsets = [8, 56], sizes = [8, 8], strides = [1, 1]} : vector<16x96xf32> to vector<8x8xf32>
    "tpu.trace_start"() <{level = 10 : i32, message = "qd,kd->qk"}> : () -> ()
    %cst_103 = arith.constant dense<0.000000e+00> : vector<8x8xf32>
    %235 = tpu.matmul %233, %234, %cst_103 {dimension_numbers = #tpu.dot_dimension_numbers<[1], [1], [0], [0], [0, 0, 1, 0], [], []>} : vector<8x8xf32>, vector<8x8xf32>, vector<8x8xf32> -> vector<8x8xf32>
    "tpu.trace_stop"() : () -> ()
    %236 = tpu.concatenate %214, %217, %220, %223, %226, %229, %232, %235 in 0 : vector<8x8xf32>, vector<8x8xf32>, vector<8x8xf32>, vector<8x8xf32>, vector<8x8xf32>, vector<8x8xf32>, vector<8x8xf32>, vector<8x8xf32> -> vector<64x8xf32>
    %237 = arith.addf %236, %46 : vector<64x8xf32>
    %cst_104 = arith.constant dense<0xFF800000> : vector<64xf32>
    %238 = vector.multi_reduction <maximumf>, %237, %cst_104 [1] : vector<64x8xf32> to vector<64xf32>
    %239 = vector.shape_cast %238 : vector<64xf32> to vector<64x1xf32>
    %240 = vector.broadcast %239 : vector<64x1xf32> to vector<64x8xf32>
    %241 = arith.subf %237, %240 : vector<64x8xf32>
    %242 = math.exp %241 : vector<64x8xf32>
    %cst_105 = arith.constant dense<0.000000e+00> : vector<64xf32>
    %243 = vector.multi_reduction <add>, %242, %cst_105 [1] : vector<64x8xf32> to vector<64xf32>
    %244 = vector.shape_cast %243 : vector<64xf32> to vector<64x1xf32>
    %245 = tpu.reciprocal %244 {approx = true} : vector<64x1xf32> -> vector<64x1xf32>
    %246 = vector.broadcast %245 : vector<64x1xf32> to vector<64x8xf32>
    %247 = arith.mulf %242, %246 : vector<64x8xf32>
    %248 = vector.extract_strided_slice %211 {offsets = [0, 64], sizes = [8, 8], strides = [1, 1]} : vector<16x96xf32> to vector<8x8xf32>
    %249 = vector.extract_strided_slice %247 {offsets = [0, 0], sizes = [8, 8], strides = [1, 1]} : vector<64x8xf32> to vector<8x8xf32>
    %cst_106 = arith.constant dense<0.000000e+00> : vector<8x8xf32>
    %250 = tpu.matmul %249, %248, %cst_106 {dimension_numbers = #tpu.dot_dimension_numbers<[1], [0], [0], [1], [0, 0, 1, 1], [], []>} : vector<8x8xf32>, vector<8x8xf32>, vector<8x8xf32> -> vector<8x8xf32>
    %251 = vector.extract_strided_slice %211 {offsets = [0, 72], sizes = [8, 8], strides = [1, 1]} : vector<16x96xf32> to vector<8x8xf32>
    %252 = vector.extract_strided_slice %247 {offsets = [8, 0], sizes = [8, 8], strides = [1, 1]} : vector<64x8xf32> to vector<8x8xf32>
    %cst_107 = arith.constant dense<0.000000e+00> : vector<8x8xf32>
    %253 = tpu.matmul %252, %251, %cst_107 {dimension_numbers = #tpu.dot_dimension_numbers<[1], [0], [0], [1], [0, 0, 1, 1], [], []>} : vector<8x8xf32>, vector<8x8xf32>, vector<8x8xf32> -> vector<8x8xf32>
    %254 = vector.extract_strided_slice %211 {offsets = [0, 80], sizes = [8, 8], strides = [1, 1]} : vector<16x96xf32> to vector<8x8xf32>
    %255 = vector.extract_strided_slice %247 {offsets = [16, 0], sizes = [8, 8], strides = [1, 1]} : vector<64x8xf32> to vector<8x8xf32>
    %cst_108 = arith.constant dense<0.000000e+00> : vector<8x8xf32>
    %256 = tpu.matmul %255, %254, %cst_108 {dimension_numbers = #tpu.dot_dimension_numbers<[1], [0], [0], [1], [0, 0, 1, 1], [], []>} : vector<8x8xf32>, vector<8x8xf32>, vector<8x8xf32> -> vector<8x8xf32>
    %257 = vector.extract_strided_slice %211 {offsets = [0, 88], sizes = [8, 8], strides = [1, 1]} : vector<16x96xf32> to vector<8x8xf32>
    %258 = vector.extract_strided_slice %247 {offsets = [24, 0], sizes = [8, 8], strides = [1, 1]} : vector<64x8xf32> to vector<8x8xf32>
    %cst_109 = arith.constant dense<0.000000e+00> : vector<8x8xf32>
    %259 = tpu.matmul %258, %257, %cst_109 {dimension_numbers = #tpu.dot_dimension_numbers<[1], [0], [0], [1], [0, 0, 1, 1], [], []>} : vector<8x8xf32>, vector<8x8xf32>, vector<8x8xf32> -> vector<8x8xf32>
    %260 = tpu.concatenate %250, %253, %256, %259 in 1 : vector<8x8xf32>, vector<8x8xf32>, vector<8x8xf32>, vector<8x8xf32> -> vector<8x32xf32>
    %261 = vector.extract_strided_slice %211 {offsets = [8, 64], sizes = [8, 8], strides = [1, 1]} : vector<16x96xf32> to vector<8x8xf32>
    %262 = vector.extract_strided_slice %247 {offsets = [32, 0], sizes = [8, 8], strides = [1, 1]} : vector<64x8xf32> to vector<8x8xf32>
    %cst_110 = arith.constant dense<0.000000e+00> : vector<8x8xf32>
    %263 = tpu.matmul %262, %261, %cst_110 {dimension_numbers = #tpu.dot_dimension_numbers<[1], [0], [0], [1], [0, 0, 1, 1], [], []>} : vector<8x8xf32>, vector<8x8xf32>, vector<8x8xf32> -> vector<8x8xf32>
    %264 = vector.extract_strided_slice %211 {offsets = [8, 72], sizes = [8, 8], strides = [1, 1]} : vector<16x96xf32> to vector<8x8xf32>
    %265 = vector.extract_strided_slice %247 {offsets = [40, 0], sizes = [8, 8], strides = [1, 1]} : vector<64x8xf32> to vector<8x8xf32>
    %cst_111 = arith.constant dense<0.000000e+00> : vector<8x8xf32>
    %266 = tpu.matmul %265, %264, %cst_111 {dimension_numbers = #tpu.dot_dimension_numbers<[1], [0], [0], [1], [0, 0, 1, 1], [], []>} : vector<8x8xf32>, vector<8x8xf32>, vector<8x8xf32> -> vector<8x8xf32>
    %267 = vector.extract_strided_slice %211 {offsets = [8, 80], sizes = [8, 8], strides = [1, 1]} : vector<16x96xf32> to vector<8x8xf32>
    %268 = vector.extract_strided_slice %247 {offsets = [48, 0], sizes = [8, 8], strides = [1, 1]} : vector<64x8xf32> to vector<8x8xf32>
    %cst_112 = arith.constant dense<0.000000e+00> : vector<8x8xf32>
    %269 = tpu.matmul %268, %267, %cst_112 {dimension_numbers = #tpu.dot_dimension_numbers<[1], [0], [0], [1], [0, 0, 1, 1], [], []>} : vector<8x8xf32>, vector<8x8xf32>, vector<8x8xf32> -> vector<8x8xf32>
    %270 = vector.extract_strided_slice %211 {offsets = [8, 88], sizes = [8, 8], strides = [1, 1]} : vector<16x96xf32> to vector<8x8xf32>
    %271 = vector.extract_strided_slice %247 {offsets = [56, 0], sizes = [8, 8], strides = [1, 1]} : vector<64x8xf32> to vector<8x8xf32>
    %cst_113 = arith.constant dense<0.000000e+00> : vector<8x8xf32>
    %272 = tpu.matmul %271, %270, %cst_113 {dimension_numbers = #tpu.dot_dimension_numbers<[1], [0], [0], [1], [0, 0, 1, 1], [], []>} : vector<8x8xf32>, vector<8x8xf32>, vector<8x8xf32> -> vector<8x8xf32>
    %273 = tpu.concatenate %263, %266, %269, %272 in 1 : vector<8x8xf32>, vector<8x8xf32>, vector<8x8xf32>, vector<8x8xf32> -> vector<8x32xf32>
    %274 = tpu.concatenate %260, %273 in 0 : vector<8x32xf32>, vector<8x32xf32> -> vector<16x32xf32>
    %c1_114 = arith.constant 1 : index
    %c0_115 = arith.constant 0 : index
    %c0_116 = arith.constant 0 : index
    %275 = vector.load %arg8[%c1_114, %c0_115, %c0_116] : memref<2x32x32xf32, #tpu.memory_space<vmem>>, vector<1x32x32xf32>
    %276 = vector.shape_cast %275 : vector<1x32x32xf32> to vector<32x32xf32>
    %cst_117 = arith.constant dense<0.000000e+00> : vector<16x32xf32>
    %277 = tpu.matmul %274, %276, %cst_117 {dimension_numbers = #tpu.dot_dimension_numbers<[1], [0], [0], [1], [0, 0, 1, 1], [], []>} : vector<16x32xf32>, vector<32x32xf32>, vector<16x32xf32> -> vector<16x32xf32>
    %c1_118 = arith.constant 1 : index
    %c0_119 = arith.constant 0 : index
    %c0_120 = arith.constant 0 : index
    %278 = vector.load %arg9[%c1_118, %c0_119, %c0_120] : memref<2x1x32xf32, #tpu.memory_space<vmem>>, vector<1x1x32xf32>
    %279 = vector.shape_cast %278 : vector<1x1x32xf32> to vector<1x32xf32>
    %280 = vector.broadcast %279 : vector<1x32xf32> to vector<16x32xf32>
    %281 = arith.addf %277, %280 : vector<16x32xf32>
    %282 = arith.addf %281, %204 : vector<16x32xf32>
    %c1_121 = arith.constant 1 : index
    %c0_122 = arith.constant 0 : index
    %c0_123 = arith.constant 0 : index
    %283 = vector.load %arg10[%c1_121, %c0_122, %c0_123] : memref<2x1x32xf32, #tpu.memory_space<vmem>>, vector<1x1x32xf32>
    %284 = vector.shape_cast %283 : vector<1x1x32xf32> to vector<1x32xf32>
    %c1_124 = arith.constant 1 : index
    %c0_125 = arith.constant 0 : index
    %c0_126 = arith.constant 0 : index
    %285 = vector.load %arg11[%c1_124, %c0_125, %c0_126] : memref<2x1x32xf32, #tpu.memory_space<vmem>>, vector<1x1x32xf32>
    %286 = vector.shape_cast %285 : vector<1x1x32xf32> to vector<1x32xf32>
    %cst_127 = arith.constant dense<0.000000e+00> : vector<16xf32>
    %287 = vector.multi_reduction <add>, %282, %cst_127 [1] : vector<16x32xf32> to vector<16xf32>
    %288 = vector.shape_cast %287 : vector<16xf32> to vector<16x1xf32>
    %cst_128 = arith.constant 3.200000e+01 : f32
    %289 = vector.broadcast %cst_128 : f32 to vector<16x1xf32>
    %290 = arith.divf %288, %289 : vector<16x1xf32>
    %291 = vector.broadcast %290 : vector<16x1xf32> to vector<16x32xf32>
    %292 = arith.subf %282, %291 : vector<16x32xf32>
    %293 = arith.mulf %292, %292 : vector<16x32xf32>
    %cst_129 = arith.constant dense<0.000000e+00> : vector<16xf32>
    %294 = vector.multi_reduction <add>, %293, %cst_129 [1] : vector<16x32xf32> to vector<16xf32>
    %295 = vector.shape_cast %294 : vector<16xf32> to vector<16x1xf32>
    %cst_130 = arith.constant 3.200000e+01 : f32
    %296 = vector.broadcast %cst_130 : f32 to vector<16x1xf32>
    %297 = arith.divf %295, %296 : vector<16x1xf32>
    %298 = vector.broadcast %290 : vector<16x1xf32> to vector<16x32xf32>
    %299 = arith.subf %282, %298 : vector<16x32xf32>
    %cst_131 = arith.constant 9.99999996E-13 : f32
    %300 = vector.broadcast %cst_131 : f32 to vector<16x1xf32>
    %301 = arith.addf %297, %300 : vector<16x1xf32>
    %302 = math.rsqrt %301 : vector<16x1xf32>
    %303 = vector.broadcast %302 : vector<16x1xf32> to vector<16x32xf32>
    %304 = arith.mulf %299, %303 : vector<16x32xf32>
    %305 = vector.broadcast %284 : vector<1x32xf32> to vector<16x32xf32>
    %306 = arith.mulf %304, %305 : vector<16x32xf32>
    %307 = vector.broadcast %286 : vector<1x32xf32> to vector<16x32xf32>
    %308 = arith.addf %306, %307 : vector<16x32xf32>
    %c1_132 = arith.constant 1 : index
    %c0_133 = arith.constant 0 : index
    %c0_134 = arith.constant 0 : index
    %309 = vector.load %arg12[%c1_132, %c0_133, %c0_134] : memref<2x32x64xf32, #tpu.memory_space<vmem>>, vector<1x32x64xf32>
    %310 = vector.shape_cast %309 : vector<1x32x64xf32> to vector<32x64xf32>
    %cst_135 = arith.constant dense<0.000000e+00> : vector<16x64xf32>
    %311 = tpu.matmul %308, %310, %cst_135 {dimension_numbers = #tpu.dot_dimension_numbers<[1], [0], [0], [1], [0, 0, 1, 1], [], []>} : vector<16x32xf32>, vector<32x64xf32>, vector<16x64xf32> -> vector<16x64xf32>
    %c1_136 = arith.constant 1 : index
    %c0_137 = arith.constant 0 : index
    %c0_138 = arith.constant 0 : index
    %312 = vector.load %arg13[%c1_136, %c0_137, %c0_138] : memref<2x1x64xf32, #tpu.memory_space<vmem>>, vector<1x1x64xf32>
    %313 = vector.shape_cast %312 : vector<1x1x64xf32> to vector<1x64xf32>
    %314 = vector.broadcast %313 : vector<1x64xf32> to vector<16x64xf32>
    %315 = arith.addf %311, %314 : vector<16x64xf32>
    %cst_139 = arith.constant 5.000000e-01 : f32
    %316 = vector.broadcast %cst_139 : f32 to vector<16x64xf32>
    %317 = arith.mulf %316, %315 : vector<16x64xf32>
    %cst_140 = arith.constant 4.471500e-02 : f32
    %318 = vector.broadcast %cst_140 : f32 to vector<16x64xf32>
    %319 = arith.mulf %318, %315 : vector<16x64xf32>
    %320 = arith.mulf %319, %315 : vector<16x64xf32>
    %321 = arith.mulf %320, %315 : vector<16x64xf32>
    %322 = arith.addf %315, %321 : vector<16x64xf32>
    %cst_141 = arith.constant 0.797884583 : f32
    %323 = vector.broadcast %cst_141 : f32 to vector<16x64xf32>
    %324 = arith.mulf %323, %322 : vector<16x64xf32>
    %325 = math.tanh %324 : vector<16x64xf32>
    %cst_142 = arith.constant 1.000000e+00 : f32
    %326 = vector.broadcast %cst_142 : f32 to vector<16x64xf32>
    %327 = arith.addf %326, %325 : vector<16x64xf32>
    %328 = arith.mulf %317, %327 : vector<16x64xf32>
    %c1_143 = arith.constant 1 : index
    %c0_144 = arith.constant 0 : index
    %c0_145 = arith.constant 0 : index
    %329 = vector.load %arg14[%c1_143, %c0_144, %c0_145] : memref<2x64x32xf32, #tpu.memory_space<vmem>>, vector<1x64x32xf32>
    %330 = vector.shape_cast %329 : vector<1x64x32xf32> to vector<64x32xf32>
    %cst_146 = arith.constant dense<0.000000e+00> : vector<16x32xf32>
    %331 = tpu.matmul %328, %330, %cst_146 {dimension_numbers = #tpu.dot_dimension_numbers<[1], [0], [0], [1], [0, 0, 1, 1], [], []>} : vector<16x64xf32>, vector<64x32xf32>, vector<16x32xf32> -> vector<16x32xf32>
    %c1_147 = arith.constant 1 : index
    %c0_148 = arith.constant 0 : index
    %c0_149 = arith.constant 0 : index
    %332 = vector.load %arg15[%c1_147, %c0_148, %c0_149] : memref<2x1x32xf32, #tpu.memory_space<vmem>>, vector<1x1x32xf32>
    %333 = vector.shape_cast %332 : vector<1x1x32xf32> to vector<1x32xf32>
    %334 = vector.broadcast %333 : vector<1x32xf32> to vector<16x32xf32>
    %335 = arith.addf %331, %334 : vector<16x32xf32>
    %336 = arith.addf %335, %308 : vector<16x32xf32>
    %c1_150 = arith.constant 1 : index
    %c0_151 = arith.constant 0 : index
    %c0_152 = arith.constant 0 : index
    %337 = vector.load %arg16[%c1_150, %c0_151, %c0_152] : memref<2x1x32xf32, #tpu.memory_space<vmem>>, vector<1x1x32xf32>
    %338 = vector.shape_cast %337 : vector<1x1x32xf32> to vector<1x32xf32>
    %c1_153 = arith.constant 1 : index
    %c0_154 = arith.constant 0 : index
    %c0_155 = arith.constant 0 : index
    %339 = vector.load %arg17[%c1_153, %c0_154, %c0_155] : memref<2x1x32xf32, #tpu.memory_space<vmem>>, vector<1x1x32xf32>
    %340 = vector.shape_cast %339 : vector<1x1x32xf32> to vector<1x32xf32>
    %cst_156 = arith.constant dense<0.000000e+00> : vector<16xf32>
    %341 = vector.multi_reduction <add>, %336, %cst_156 [1] : vector<16x32xf32> to vector<16xf32>
    %342 = vector.shape_cast %341 : vector<16xf32> to vector<16x1xf32>
    %cst_157 = arith.constant 3.200000e+01 : f32
    %343 = vector.broadcast %cst_157 : f32 to vector<16x1xf32>
    %344 = arith.divf %342, %343 : vector<16x1xf32>
    %345 = vector.broadcast %344 : vector<16x1xf32> to vector<16x32xf32>
    %346 = arith.subf %336, %345 : vector<16x32xf32>
    %347 = arith.mulf %346, %346 : vector<16x32xf32>
    %cst_158 = arith.constant dense<0.000000e+00> : vector<16xf32>
    %348 = vector.multi_reduction <add>, %347, %cst_158 [1] : vector<16x32xf32> to vector<16xf32>
    %349 = vector.shape_cast %348 : vector<16xf32> to vector<16x1xf32>
    %cst_159 = arith.constant 3.200000e+01 : f32
    %350 = vector.broadcast %cst_159 : f32 to vector<16x1xf32>
    %351 = arith.divf %349, %350 : vector<16x1xf32>
    %352 = vector.broadcast %344 : vector<16x1xf32> to vector<16x32xf32>
    %353 = arith.subf %336, %352 : vector<16x32xf32>
    %cst_160 = arith.constant 9.99999996E-13 : f32
    %354 = vector.broadcast %cst_160 : f32 to vector<16x1xf32>
    %355 = arith.addf %351, %354 : vector<16x1xf32>
    %356 = math.rsqrt %355 : vector<16x1xf32>
    %357 = vector.broadcast %356 : vector<16x1xf32> to vector<16x32xf32>
    %358 = arith.mulf %353, %357 : vector<16x32xf32>
    %359 = vector.broadcast %338 : vector<1x32xf32> to vector<16x32xf32>
    %360 = arith.mulf %358, %359 : vector<16x32xf32>
    %361 = vector.broadcast %340 : vector<1x32xf32> to vector<16x32xf32>
    %362 = arith.addf %360, %361 : vector<16x32xf32>
    %363 = vector.extract_strided_slice %362 {offsets = [0, 0], sizes = [1, 32], strides = [1, 1]} : vector<16x32xf32> to vector<1x32xf32>
    %364 = vector.extract_strided_slice %362 {offsets = [8, 0], sizes = [1, 32], strides = [1, 1]} : vector<16x32xf32> to vector<1x32xf32>
    %365 = tpu.concatenate %363, %364 in 0 : vector<1x32xf32>, vector<1x32xf32> -> vector<2x32xf32>
    %c0_161 = arith.constant 0 : index
    %c0_162 = arith.constant 0 : index
    %366 = vector.load %arg18[%c0_161, %c0_162] : memref<32x32xf32, #tpu.memory_space<vmem>>, vector<32x32xf32>
    %cst_163 = arith.constant dense<0.000000e+00> : vector<2x32xf32>
    %367 = tpu.matmul %365, %366, %cst_163 {dimension_numbers = #tpu.dot_dimension_numbers<[1], [0], [0], [1], [0, 0, 1, 1], [], []>} : vector<2x32xf32>, vector<32x32xf32>, vector<2x32xf32> -> vector<2x32xf32>
    %c0_164 = arith.constant 0 : index
    %c0_165 = arith.constant 0 : index
    %368 = vector.load %arg19[%c0_164, %c0_165] : memref<1x32xf32, #tpu.memory_space<vmem>>, vector<1x32xf32>
    %369 = vector.broadcast %368 : vector<1x32xf32> to vector<2x32xf32>
    %370 = arith.addf %367, %369 : vector<2x32xf32>
    %371 = math.tanh %370 : vector<2x32xf32>
    %c0_166 = arith.constant 0 : index
    %c0_167 = arith.constant 0 : index
    %372 = vector.load %arg20[%c0_166, %c0_167] : memref<32x4xf32, #tpu.memory_space<vmem>>, vector<32x4xf32>
    %cst_168 = arith.constant dense<0.000000e+00> : vector<2x4xf32>
    %373 = tpu.matmul %371, %372, %cst_168 {dimension_numbers = #tpu.dot_dimension_numbers<[1], [0], [0], [1], [0, 0, 1, 1], [], []>} : vector<2x32xf32>, vector<32x4xf32>, vector<2x4xf32> -> vector<2x4xf32>
    %c0_169 = arith.constant 0 : index
    %c0_170 = arith.constant 0 : index
    %374 = vector.load %arg21[%c0_169, %c0_170] : memref<1x4xf32, #tpu.memory_space<vmem>>, vector<1x4xf32>
    %375 = vector.broadcast %374 : vector<1x4xf32> to vector<2x4xf32>
    %376 = arith.addf %373, %375 : vector<2x4xf32>
    %cst_171 = arith.constant dense<0xFF800000> : vector<2xf32>
    %377 = vector.multi_reduction <maximumf>, %376, %cst_171 [1] : vector<2x4xf32> to vector<2xf32>
    %378 = vector.shape_cast %377 : vector<2xf32> to vector<2x1xf32>
    %379 = vector.broadcast %378 : vector<2x1xf32> to vector<2x4xf32>
    %380 = arith.subf %376, %379 : vector<2x4xf32>
    %381 = math.exp %380 : vector<2x4xf32>
    %cst_172 = arith.constant dense<0.000000e+00> : vector<2xf32>
    %382 = vector.multi_reduction <add>, %381, %cst_172 [1] : vector<2x4xf32> to vector<2xf32>
    %383 = vector.shape_cast %382 : vector<2xf32> to vector<2x1xf32>
    %384 = vector.broadcast %383 : vector<2x1xf32> to vector<2x4xf32>
    %385 = arith.divf %381, %384 : vector<2x4xf32>
    %c0_173 = arith.constant 0 : index
    %c0_174 = arith.constant 0 : index
    %386 = vector.load %arg22[%c0_173, %c0_174] : memref<2x4xf32, #tpu.memory_space<vmem>>, vector<2x4xf32>
    tpu.vector_store %arg22[%c0_173, %c0_174], %385 {strides = array<i32>} : memref<2x4xf32, #tpu.memory_space<vmem>>, vector<2x4xf32>,
    return
  }
}

</mosaic_0001>

<llo_original>
// kernel: bert_classifier_forward.1
$region0: #{bert_classifier_forward.1}
  #allocation0 [shape = 'u32[]', space=smem, size = 0x4, offset = 0x4, fixed_abs, tag = 'smem constant byte address 0x4 - core index']
  #allocation1 [shape = 'u32[144,128]{1,0:T(1,128)}', space=vmem, size = 0x12000, scoped, tag = 'internal scratch']
  %s0 = inlined_call_operand.vmem [shape: s32[16,1], index: 0, kind: input, shape index: {}]
  %s1 = inlined_call_operand.vmem [shape: f32[2,8], index: 1, kind: input, shape index: {}]
  %s2 = inlined_call_operand.vmem [shape: f32[100,32], index: 2, kind: input, shape index: {}]
  %s3 = inlined_call_operand.vmem [shape: f32[8,32], index: 3, kind: input, shape index: {}]
  %s4 = inlined_call_operand.vmem [shape: f32[1,32], index: 4, kind: input, shape index: {}]
  %s5 = inlined_call_operand.vmem [shape: f32[1,32], index: 5, kind: input, shape index: {}]
  %s6 = inlined_call_operand.vmem [shape: f32[2,32,96], index: 6, kind: input, shape index: {}]
  %s7 = inlined_call_operand.vmem [shape: f32[2,1,96], index: 7, kind: input, shape index: {}]
  %s8 = inlined_call_operand.vmem [shape: f32[2,32,32], index: 8, kind: input, shape index: {}]
  %s9 = inlined_call_operand.vmem [shape: f32[2,1,32], index: 9, kind: input, shape index: {}]
  %s10 = inlined_call_operand.vmem [shape: f32[2,1,32], index: 10, kind: input, shape index: {}]
  %s11 = inlined_call_operand.vmem [shape: f32[2,1,32], index: 11, kind: input, shape index: {}]
  %s12 = inlined_call_operand.vmem [shape: f32[2,32,64], index: 12, kind: input, shape index: {}]
  %s13 = inlined_call_operand.vmem [shape: f32[2,1,64], index: 13, kind: input, shape index: {}]
  %s14 = inlined_call_operand.vmem [shape: f32[2,64,32], index: 14, kind: input, shape index: {}]
  %s15 = inlined_call_operand.vmem [shape: f32[2,1,32], index: 15, kind: input, shape index: {}]
  %s16 = inlined_call_operand.vmem [shape: f32[2,1,32], index: 16, kind: input, shape index: {}]
  %s17 = inlined_call_operand.vmem [shape: f32[2,1,32], index: 17, kind: input, shape index: {}]
  %s18 = inlined_call_operand.vmem [shape: f32[32,32], index: 18, kind: input, shape index: {}]
  %s19 = inlined_call_operand.vmem [shape: f32[1,32], index: 19, kind: input, shape index: {}]
  %s20 = inlined_call_operand.vmem [shape: f32[32,4], index: 20, kind: input, shape index: {}]
  %s21 = inlined_call_operand.vmem [shape: f32[1,4], index: 21, kind: input, shape index: {}]
  %s22 = inlined_call_operand.hbm [shape: f32[2,4], index: 22, kind: output, shape index: {}]
  %s23 = sld [smem:[#allocation0]]
  $region98: #{bert_classifier_forward.1} parent=0
    _
  %s25 = ssub.s32 1, %s23
  %s26 = scalar_select 0, %s25, %s23
  $region1: #{bert_classifier_forward.1} parent=0
    #allocation2 [shape = 'u8[1024]{0}', space=vmem, size = 0x400, scoped, tag = 'output window, operand 0, single buffered']
    #allocation3 [shape = 's32[1]{0}', space=sflag, size = 0x4, scoped, tag = 'scoped memory for bert_classifier_forward.1']
    %27 = vsyncpa [#allocation3], 0
    // Predicated region
    $region2: #{bert_classifier_forward.1} parent=1 // pred_check
      _
    $region3: #{bert_classifier_forward.1} parent=1 // pred_check_branch
      %29 = sbr.rel (0) target = $region5
    $region4: #{bert_classifier_forward.1} parent=1 // pred_region
      _
    $region5: #{bert_classifier_forward.1} parent=1 // pred_fallthru
      _
    // Predicated region
    $region6: #{bert_classifier_forward.1} parent=1 // pred_check
      _
    $region7: #{bert_classifier_forward.1} parent=1 // pred_check_branch
      %31 = sbr.rel (0) target = $region9
    $region8: #{bert_classifier_forward.1} parent=1 // pred_region
      _
    $region9: #{bert_classifier_forward.1} parent=1 // pred_fallthru
      _
    // Predicated region
    $region10: #{bert_classifier_forward.1} parent=1 // pred_check
      _
    $region11: #{bert_classifier_forward.1} parent=1 // pred_check_branch
      %33 = sbr.rel (0) target = $region13
    $region12: #{bert_classifier_forward.1} parent=1 // pred_region
      _
    $region13: #{bert_classifier_forward.1} parent=1 // pred_fallthru
      _
    // Predicated region
    $region14: #{bert_classifier_forward.1} parent=1 // pred_check
      _
    $region15: #{bert_classifier_forward.1} parent=1 // pred_check_branch
      %35 = sbr.rel (0) target = $region17
    $region16: #{bert_classifier_forward.1} parent=1 // pred_region
      _
    $region17: #{bert_classifier_forward.1} parent=1 // pred_fallthru
      _
    // Predicated region
    $region18: #{bert_classifier_forward.1} parent=1 // pred_check
      _
    $region19: #{bert_classifier_forward.1} parent=1 // pred_check_branch
      %37 = sbr.rel (0) target = $region21
    $region20: #{bert_classifier_forward.1} parent=1 // pred_region
      _
    $region21: #{bert_classifier_forward.1} parent=1 // pred_fallthru
      _
    // Predicated region
    $region22: #{bert_classifier_forward.1} parent=1 // pred_check
      _
    $region23: #{bert_classifier_forward.1} parent=1 // pred_check_branch
      %39 = sbr.rel (0) target = $region25
    $region24: #{bert_classifier_forward.1} parent=1 // pred_region
      _
    $region25: #{bert_classifier_forward.1} parent=1 // pred_fallthru
      _
    // Predicated region
    $region26: #{bert_classifier_forward.1} parent=1 // pred_check
      _
    $region27: #{bert_classifier_forward.1} parent=1 // pred_check_branch
      %41 = sbr.rel (0) target = $region29
    $region28: #{bert_classifier_forward.1} parent=1 // pred_region
      _
    $region29: #{bert_classifier_forward.1} parent=1 // pred_fallthru
      _
    // Predicated region
    $region30: #{bert_classifier_forward.1} parent=1 // pred_check
      _
    $region31: #{bert_classifier_forward.1} parent=1 // pred_check_branch
      %43 = sbr.rel (0) target = $region33
    $region32: #{bert_classifier_forward.1} parent=1 // pred_region
      _
    $region33: #{bert_classifier_forward.1} parent=1 // pred_fallthru
      _
    // Predicated region
    $region34: #{bert_classifier_forward.1} parent=1 // pred_check
      _
    $region35: #{bert_classifier_forward.1} parent=1 // pred_check_branch
      %45 = sbr.rel (0) target = $region37
    $region36: #{bert_classifier_forward.1} parent=1 // pred_region
      _
    $region37: #{bert_classifier_forward.1} parent=1 // pred_fallthru
      _
    // Predicated region
    $region38: #{bert_classifier_forward.1} parent=1 // pred_check
      _
    $region39: #{bert_classifier_forward.1} parent=1 // pred_check_branch
      %47 = sbr.rel (0) target = $region41
    $region40: #{bert_classifier_forward.1} parent=1 // pred_region
      _
    $region41: #{bert_classifier_forward.1} parent=1 // pred_fallthru
      _
    // Predicated region
    $region42: #{bert_classifier_forward.1} parent=1 // pred_check
      _
    $region43: #{bert_classifier_forward.1} parent=1 // pred_check_branch
      %49 = sbr.rel (0) target = $region45
    $region44: #{bert_classifier_forward.1} parent=1 // pred_region
      _
    $region45: #{bert_classifier_forward.1} parent=1 // pred_fallthru
      _
    // Predicated region
    $region46: #{bert_classifier_forward.1} parent=1 // pred_check
      _
    $region47: #{bert_classifier_forward.1} parent=1 // pred_check_branch
      %51 = sbr.rel (0) target = $region49
    $region48: #{bert_classifier_forward.1} parent=1 // pred_region
      _
    $region49: #{bert_classifier_forward.1} parent=1 // pred_fallthru
      _
    // Predicated region
    $region50: #{bert_classifier_forward.1} parent=1 // pred_check
      _
    $region51: #{bert_classifier_forward.1} parent=1 // pred_check_branch
      %53 = sbr.rel (0) target = $region53
    $region52: #{bert_classifier_forward.1} parent=1 // pred_region
      _
    $region53: #{bert_classifier_forward.1} parent=1 // pred_fallthru
      _
    // Predicated region
    $region54: #{bert_classifier_forward.1} parent=1 // pred_check
      _
    $region55: #{bert_classifier_forward.1} parent=1 // pred_check_branch
      %55 = sbr.rel (0) target = $region57
    $region56: #{bert_classifier_forward.1} parent=1 // pred_region
      _
    $region57: #{bert_classifier_forward.1} parent=1 // pred_fallthru
      _
    // Predicated region
    $region58: #{bert_classifier_forward.1} parent=1 // pred_check
      _
    $region59: #{bert_classifier_forward.1} parent=1 // pred_check_branch
      %57 = sbr.rel (0) target = $region61
    $region60: #{bert_classifier_forward.1} parent=1 // pred_region
      _
    $region61: #{bert_classifier_forward.1} parent=1 // pred_fallthru
      _
    // Predicated region
    $region62: #{bert_classifier_forward.1} parent=1 // pred_check
      _
    $region63: #{bert_classifier_forward.1} parent=1 // pred_check_branch
      %59 = sbr.rel (0) target = $region65
    $region64: #{bert_classifier_forward.1} parent=1 // pred_region
      _
    $region65: #{bert_classifier_forward.1} parent=1 // pred_fallthru
      _
    // Predicated region
    $region66: #{bert_classifier_forward.1} parent=1 // pred_check
      _
    $region67: #{bert_classifier_forward.1} parent=1 // pred_check_branch
      %61 = sbr.rel (0) target = $region69
    $region68: #{bert_classifier_forward.1} parent=1 // pred_region
      _
    $region69: #{bert_classifier_forward.1} parent=1 // pred_fallthru
      _
    // Predicated region
    $region70: #{bert_classifier_forward.1} parent=1 // pred_check
      _
    $region71: #{bert_classifier_forward.1} parent=1 // pred_check_branch
      %63 = sbr.rel (0) target = $region73
    $region72: #{bert_classifier_forward.1} parent=1 // pred_region
      _
    $region73: #{bert_classifier_forward.1} parent=1 // pred_fallthru
      _
    // Predicated region
    $region74: #{bert_classifier_forward.1} parent=1 // pred_check
      _
    $region75: #{bert_classifier_forward.1} parent=1 // pred_check_branch
      %65 = sbr.rel (0) target = $region77
    $region76: #{bert_classifier_forward.1} parent=1 // pred_region
      _
    $region77: #{bert_classifier_forward.1} parent=1 // pred_fallthru
      _
    // Predicated region
    $region78: #{bert_classifier_forward.1} parent=1 // pred_check
      _
    $region79: #{bert_classifier_forward.1} parent=1 // pred_check_branch
      %67 = sbr.rel (0) target = $region81
    $region80: #{bert_classifier_forward.1} parent=1 // pred_region
      _
    $region81: #{bert_classifier_forward.1} parent=1 // pred_fallthru
      _
    // Predicated region
    $region82: #{bert_classifier_forward.1} parent=1 // pred_check
      _
    $region83: #{bert_classifier_forward.1} parent=1 // pred_check_branch
      %69 = sbr.rel (0) target = $region85
    $region84: #{bert_classifier_forward.1} parent=1 // pred_region
      _
    $region85: #{bert_classifier_forward.1} parent=1 // pred_fallthru
      _
    // Predicated region
    $region86: #{bert_classifier_forward.1} parent=1 // pred_check
      _
    $region87: #{bert_classifier_forward.1} parent=1 // pred_check_branch
      %71 = sbr.rel (0) target = $region89
    $region88: #{bert_classifier_forward.1} parent=1 // pred_region
      _
    $region89: #{bert_classifier_forward.1} parent=1 // pred_fallthru
      _
    %v72 = vld [vmem:[%s0] sm:$0xff]
    %v73 = vld [vmem:[%s0 + $0x8] sm:$0xff]
    %v74 = vlaneseq
    %v75 = vand.u32 %v74, 127
    %76 = vset.pattern.permute.xlu0 0
    %77 = vperm.xlu0 %76, %v72
    %v78 = vpop.permute.xlu0 %77
    %79 = vset.pattern.permute.xlu0 0
    %80 = vperm.xlu0 %79, %v73
    %v81 = vpop.permute.xlu0 %80
    %vm82 = vcmp.eq.s32.totalorder %v75, %v78
    %vm83 = vcmp.eq.s32.totalorder %v75, %v81
    %v84 = vsel %vm82, 1, 0
    %v85 = vsel %vm83, 1, 0
    %v86 = vcvt.s32.f32 %v84
    %v87 = vcvt.s32.f32 %v85
    %v88 = vld [vmem:[%s2] sm:$0xff]
    %v89 = vld [vmem:[%s2 + $0x8] sm:$0xff]
    %v90 = vld [vmem:[%s2 + $0x10] sm:$0xff]
    %v91 = vld [vmem:[%s2 + $0x18] sm:$0xff]
    %v92 = vld [vmem:[%s2 + $0x20] sm:$0xff]
    %v93 = vld [vmem:[%s2 + $0x28] sm:$0xff]
    %v94 = vld [vmem:[%s2 + $0x30] sm:$0xff]
    %v95 = vld [vmem:[%s2 + $0x38] sm:$0xff]
    %v96 = vld [vmem:[%s2 + $0x40] sm:$0xff]
    %v97 = vld [vmem:[%s2 + $0x48] sm:$0xff]
    %v98 = vld [vmem:[%s2 + $0x50] sm:$0xff]
    %v99 = vld [vmem:[%s2 + $0x58] sm:$0xff]
    %v100 = vld [vmem:[%s2 + $0x60] sm:$0xf]
    %v101 = vld [vmem:[%s3] sm:$0xff]
    %vm102 = vcmask 818176
    %v104 = vsel %vm102, %v86, 0
    %v107 = vsel %vm102, %v87, 0
    %vm109 = vcmask 1043456
    %v111 = vsel %vm109, %v100, 0
    %113 = vmatprep.subr.mxu0 0.0
    %114 = vmatpush1.msra.mxu0 0.0
    %115 = vmatprep.subr.mxu0 0.0
    %116 = vmatpush1.msra.mxu0 0.0
    %117 = vmatprep.subr.mxu0 0.0
    %118 = vmatpush1.msra.mxu0 0.0
    %119 = vmatprep.subr.mxu0 0.0
    %120 = vmatpush1.msra.mxu0 %v111
    %121 = vmatprep.subr.mxu0 0.0
    %122 = vmatpush1.msra.mxu0 %v99
    %123 = vmatprep.subr.mxu0 0.0
    %124 = vmatpush1.msra.mxu0 %v98
    %125 = vmatprep.subr.mxu0 0.0
    %126 = vmatpush1.msra.mxu0 %v97
    %127 = vmatprep.subr.mxu0 0.0
    %128 = vmatpush1.msra.mxu0 %v96
    %129 = vmatprep.subr.mxu0 0.0
    %130 = vmatpush1.msra.mxu0 %v95
    %131 = vmatprep.subr.mxu0 0.0
    %132 = vmatpush1.msra.mxu0 %v94
    %133 = vmatprep.subr.mxu0 0.0
    %134 = vmatpush1.msra.mxu0 %v93
    %135 = vmatprep.subr.mxu0 0.0
    %136 = vmatpush1.msra.mxu0 %v92
    %137 = vmatprep.subr.mxu0 0.0
    %138 = vmatpush1.msra.mxu0 %v91
    %139 = vmatprep.subr.mxu0 0.0
    %140 = vmatpush1.msra.mxu0 %v90
    %141 = vmatprep.subr.mxu0 0.0
    %142 = vmatpush1.msra.mxu0 %v89
    %143 = vmatprep.subr.mxu0 0.0
    %144 = vmatpush1.msra.mxu0 %v88
    %145 = vmatprep.subr.mxu0 0.0
    %146 = vmatpush2.msra.mxu0 0.0
    %147 = vmatprep.subr.mxu0 0.0
    %148 = vmatpush2.msra.mxu0 0.0
    %149 = vmatprep.subr.mxu0 0.0
    %150 = vmatpush2.msra.mxu0 0.0
    %151 = vmatprep.subr.mxu0 0.0
    %152 = vmatpush2.msra.mxu0 0.0
    %153 = vmatprep.subr.mxu0 0.0
    %154 = vmatpush2.msra.mxu0 0.0
    %155 = vmatprep.subr.mxu0 0.0
    %156 = vmatpush2.msra.mxu0 0.0
    %157 = vmatprep.subr.mxu0 0.0
    %158 = vmatpush2.msra.mxu0 0.0
    %159 = vmatprep.subr.mxu0 0.0
    %160 = vmatpush2.msra.mxu0 0.0
    %161 = vmatprep.subr.mxu0 0.0
    %162 = vmatpush2.msra.mxu0 0.0
    %163 = vmatprep.subr.mxu0 0.0
    %164 = vmatpush2.msra.mxu0 0.0
    %165 = vmatprep.subr.mxu0 0.0
    %166 = vmatpush2.msra.mxu0 0.0
    %167 = vmatprep.subr.mxu0 0.0
    %168 = vmatpush2.msra.mxu0 0.0
    %169 = vmatprep.subr.mxu0 0.0
    %170 = vmatpush2.msra.mxu0 0.0
    %171 = vmatprep.subr.mxu0 0.0
    %172 = vmatpush2.msra.mxu0 0.0
    %173 = vmatprep.subr.mxu0 0.0
    %174 = vmatpush2.msra.mxu0 0.0
    %175 = vmatprep.subr.mxu0 0.0
    %176 = vmatpush2.msra.mxu0 0.0
    %177 = vmatprep.mubr.f32.mxu0 0.0
    %178 = vmatmul.mubr.f32.gmra.mxu0 %v104
    %v179 = vpop.f32.mrf.mxu0
    %v180 = vadd.f32 %v101, %v179
    %v181 = vpop.f32.mrf.mxu0
    %182 = vmatprep.mubr.f32.mxu0 0.0
    %183 = vmatmul.mubr.f32.gmra.mxu0 %v107
    %v184 = vpop.f32.mrf.mxu0
    %v185 = vadd.f32 %v101, %v184
    %v186 = vpop.f32.mrf.mxu0
    %187 = vdwg.mxu0
    %v188 = vld [vmem:[%s4] sm:$0x1]
    %v189 = vld [vmem:[%s5] sm:$0x1]
    %vm190 = vcmask 261120
    %v191 = vsel %vm190, %v180, 0.0
    %192 = vadd.xlane.f32.xlu0 %v191
    %v193 = vpop.xlane.xlu0 %192
    %v194 = vsel %vm190, %v185, 0.0
    %195 = vadd.xlane.f32.xlu0 %v194
    %v196 = vpop.xlane.xlu0 %195
    %v197 = vrcp.pop 32.0
    %v198 = vmul.f32 %v193, %v197
    %v199 = vmul.f32 %v196, %v197
    %v200 = vsub.f32 %v180, %v198
    %v201 = vsub.f32 %v185, %v199
    %v202 = vmul.f32 %v200, %v200
    %v203 = vmul.f32 %v201, %v201
    %v204 = vsel %vm190, %v202, 0.0
    %205 = vadd.xlane.f32.xlu0 %v204
    %v206 = vpop.xlane.xlu0 %205
    %v207 = vsel %vm190, %v203, 0.0
    %208 = vadd.xlane.f32.xlu0 %v207
    %v209 = vpop.xlane.xlu0 %208
    %v210 = vmul.f32 %v206, %v197
    %v211 = vmul.f32 %v209, %v197
    %v212 = vadd.f32 %v210, 1e-12
    %v213 = vadd.f32 %v211, 1e-12
    %v214 = vrsqrt.pop %v212
    %v215 = vrsqrt.pop %v213
    %v216 = vmul.f32 %v200, %v214
    %v217 = vmul.f32 %v201, %v215
    %v219 = vlaneseq
    %v220 = vshrl.u32 %v219, 7
    %v221 = vsub.s32 0, %v220
    %v222 = vrot.slane %v188, %v221
    %v224 = vmul.f32 %v216, %v222
    %v225 = vmul.f32 %v217, %v222
    %v227 = vlaneseq
    %v228 = vshrl.u32 %v227, 7
    %v229 = vsub.s32 0, %v228
    %v230 = vrot.slane %v189, %v229
    %v232 = vadd.f32 %v224, %v230
    %v233 = vadd.f32 %v225, %v230
    %v234 = vld [vmem:[%s1] sm:$0x3]
    %v235 = vsub.f32 1.0, %v234
    %v236 = vmul.f32 %v235, -10000.0
    %v237 = vlaneseq
    %v238 = vshrl.u32 %v237, 7
    %v239 = vsub.s32 0, %v238
    %v240 = vrot.slane %v236, %v239
    %v241 = vlaneseq
    %v242 = vshrl.u32 %v241, 7
    %v243 = vsub.s32 1, %v242
    %v244 = vrot.slane %v236, %v243
    %v245 = vld [vmem:[%s6] sm:$0xff]
    %v246 = vld [vmem:[%s6 + $0x8] sm:$0xff]
    %v247 = vld [vmem:[%s6 + $0x10] sm:$0xff]
    %v248 = vld [vmem:[%s6 + $0x18] sm:$0xff]
    %v249 = vld [vmem:[%s7] sm:$0x1]
    %v251 = vlaneseq
    %v252 = vshrl.u32 %v251, 7
    %v253 = vsub.s32 0, %v252
    %v254 = vrot.slane %v249, %v253
    %v257 = vsel %vm190, %v232, 0
    %v260 = vsel %vm190, %v233, 0
    %262 = vmatprep.subr.mxu0 0.0
    %263 = vmatpush1.msra.mxu0 0.0
    %264 = vmatprep.subr.mxu0 0.0
    %265 = vmatpush1.msra.mxu0 0.0
    %266 = vmatprep.subr.mxu0 0.0
    %267 = vmatpush1.msra.mxu0 0.0
    %268 = vmatprep.subr.mxu0 0.0
    %269 = vmatpush1.msra.mxu0 0.0
    %270 = vmatprep.subr.mxu0 0.0
    %271 = vmatpush1.msra.mxu0 0.0
    %272 = vmatprep.subr.mxu0 0.0
    %273 = vmatpush1.msra.mxu0 0.0
    %274 = vmatprep.subr.mxu0 0.0
    %275 = vmatpush1.msra.mxu0 0.0
    %276 = vmatprep.subr.mxu0 0.0
    %277 = vmatpush1.msra.mxu0 0.0
    %278 = vmatprep.subr.mxu0 0.0
    %279 = vmatpush1.msra.mxu0 0.0
    %280 = vmatprep.subr.mxu0 0.0
    %281 = vmatpush1.msra.mxu0 0.0
    %282 = vmatprep.subr.mxu0 0.0
    %283 = vmatpush1.msra.mxu0 0.0
    %284 = vmatprep.subr.mxu0 0.0
    %285 = vmatpush1.msra.mxu0 0.0
    %286 = vmatprep.subr.mxu0 0.0
    %287 = vmatpush1.msra.mxu0 %v248
    %288 = vmatprep.subr.mxu0 0.0
    %289 = vmatpush1.msra.mxu0 %v247
    %290 = vmatprep.subr.mxu0 0.0
    %291 = vmatpush1.msra.mxu0 %v246
    %292 = vmatprep.subr.mxu0 0.0
    %293 = vmatpush1.msra.mxu0 %v245
    %294 = vmatprep.subr.mxu0 0.0
    %295 = vmatpush2.msra.mxu0 0.0
    %296 = vmatprep.subr.mxu0 0.0
    %297 = vmatpush2.msra.mxu0 0.0
    %298 = vmatprep.subr.mxu0 0.0
    %299 = vmatpush2.msra.mxu0 0.0
    %300 = vmatprep.subr.mxu0 0.0
    %301 = vmatpush2.msra.mxu0 0.0
    %302 = vmatprep.subr.mxu0 0.0
    %303 = vmatpush2.msra.mxu0 0.0
    %304 = vmatprep.subr.mxu0 0.0
    %305 = vmatpush2.msra.mxu0 0.0
    %306 = vmatprep.subr.mxu0 0.0
    %307 = vmatpush2.msra.mxu0 0.0
    %308 = vmatprep.subr.mxu0 0.0
    %309 = vmatpush2.msra.mxu0 0.0
    %310 = vmatprep.subr.mxu0 0.0
    %311 = vmatpush2.msra.mxu0 0.0
    %312 = vmatprep.subr.mxu0 0.0
    %313 = vmatpush2.msra.mxu0 0.0
    %314 = vmatprep.subr.mxu0 0.0
    %315 = vmatpush2.msra.mxu0 0.0
    %316 = vmatprep.subr.mxu0 0.0
    %317 = vmatpush2.msra.mxu0 0.0
    %318 = vmatprep.subr.mxu0 0.0
    %319 = vmatpush2.msra.mxu0 0.0
    %320 = vmatprep.subr.mxu0 0.0
    %321 = vmatpush2.msra.mxu0 0.0
    %322 = vmatprep.subr.mxu0 0.0
    %323 = vmatpush2.msra.mxu0 0.0
    %324 = vmatprep.subr.mxu0 0.0
    %325 = vmatpush2.msra.mxu0 0.0
    %326 = vmatprep.mubr.f32.mxu0 0.0
    %327 = vmatmul.mubr.f32.gmra.mxu0 %v257
    %v328 = vpop.f32.mrf.mxu0
    %v329 = vadd.f32 %v254, %v328
    %v330 = vpop.f32.mrf.mxu0
    %331 = vmatprep.mubr.f32.mxu0 0.0
    %332 = vmatmul.mubr.f32.gmra.mxu0 %v260
    %v333 = vpop.f32.mrf.mxu0
    %v334 = vadd.f32 %v254, %v333
    %v335 = vpop.f32.mrf.mxu0
    %336 = vdwg.mxu0
    %338 = vrot.lane.b32.xlu0 %v329, 96
    %v339 = vpop.permute.xlu0 %338
    %vm340 = vcmask 64512
    %v341 = vsel %vm340, %v329, 0
    %v343 = vsel %vm340, %v339, 0
    %345 = vmatprep.subr.mxu0 0.0
    %346 = vmatpush1.xpose.msra.mxu0 0.0
    %347 = vmatprep.subr.mxu0 0.0
    %348 = vmatpush1.xpose.msra.mxu0 0.0
    %349 = vmatprep.subr.mxu0 0.0
    %350 = vmatpush1.xpose.msra.mxu0 0.0
    %351 = vmatprep.subr.mxu0 0.0
    %352 = vmatpush1.xpose.msra.mxu0 0.0
    %353 = vmatprep.subr.mxu0 0.0
    %354 = vmatpush1.xpose.msra.mxu0 0.0
    %355 = vmatprep.subr.mxu0 0.0
    %356 = vmatpush1.xpose.msra.mxu0 0.0
    %357 = vmatprep.subr.mxu0 0.0
    %358 = vmatpush1.xpose.msra.mxu0 0.0
    %359 = vmatprep.subr.mxu0 0.0
    %360 = vmatpush1.xpose.msra.mxu0 0.0
    %361 = vmatprep.subr.mxu0 0.0
    %362 = vmatpush1.xpose.msra.mxu0 0.0
    %363 = vmatprep.subr.mxu0 0.0
    %364 = vmatpush1.xpose.msra.mxu0 0.0
    %365 = vmatprep.subr.mxu0 0.0
    %366 = vmatpush1.xpose.msra.mxu0 0.0
    %367 = vmatprep.subr.mxu0 0.0
    %368 = vmatpush1.xpose.msra.mxu0 0.0
    %369 = vmatprep.subr.mxu0 0.0
    %370 = vmatpush1.xpose.msra.mxu0 0.0
    %371 = vmatprep.subr.mxu0 0.0
    %372 = vmatpush1.xpose.msra.mxu0 0.0
    %373 = vmatprep.subr.mxu0 0.0
    %374 = vmatpush1.xpose.msra.mxu0 0.0
    %375 = vmatprep.subr.mxu0 0.0
    %376 = vmatpush1.xpose.msra.mxu0 %v343
    %377 = vmatprep.subr.mxu0 0.0
    %378 = vmatpush2.xpose.msra.mxu0 0.0
    %379 = vmatprep.subr.mxu0 0.0
    %380 = vmatpush2.xpose.msra.mxu0 0.0
    %381 = vmatprep.subr.mxu0 0.0
    %382 = vmatpush2.xpose.msra.mxu0 0.0
    %383 = vmatprep.subr.mxu0 0.0
    %384 = vmatpush2.xpose.msra.mxu0 0.0
    %385 = vmatprep.subr.mxu0 0.0
    %386 = vmatpush2.xpose.msra.mxu0 0.0
    %387 = vmatprep.subr.mxu0 0.0
    %388 = vmatpush2.xpose.msra.mxu0 0.0
    %389 = vmatprep.subr.mxu0 0.0
    %390 = vmatpush2.xpose.msra.mxu0 0.0
    %391 = vmatprep.subr.mxu0 0.0
    %392 = vmatpush2.xpose.msra.mxu0 0.0
    %393 = vmatprep.subr.mxu0 0.0
    %394 = vmatpush2.xpose.msra.mxu0 0.0
    %395 = vmatprep.subr.mxu0 0.0
    %396 = vmatpush2.xpose.msra.mxu0 0.0
    %397 = vmatprep.subr.mxu0 0.0
    %398 = vmatpush2.xpose.msra.mxu0 0.0
    %399 = vmatprep.subr.mxu0 0.0
    %400 = vmatpush2.xpose.msra.mxu0 0.0
    %401 = vmatprep.subr.mxu0 0.0
    %402 = vmatpush2.xpose.msra.mxu0 0.0
    %403 = vmatprep.subr.mxu0 0.0
    %404 = vmatpush2.xpose.msra.mxu0 0.0
    %405 = vmatprep.subr.mxu0 0.0
    %406 = vmatpush2.xpose.msra.mxu0 0.0
    %407 = vmatprep.subr.mxu0 0.0
    %408 = vmatpush2.xpose.msra.mxu0 0.0
    %409 = vmatprep.mubr.f32.mxu0 0.0
    %410 = vmatmul.mubr.f32.gmra.mxu0 %v341
    %v411 = vpop.f32.mrf.mxu0
    %v412 = vadd.f32 0.0, %v411
    %v413 = vpop.f32.mrf.mxu0
    %414 = vdwg.mxu0
    %415 = vrot.lane.b32.xlu0 %v329, 120
    %v416 = vpop.permute.xlu0 %415
    %417 = vrot.lane.b32.xlu0 %v329, 88
    %v418 = vpop.permute.xlu0 %417
    %v419 = vsel %vm340, %v416, 0
    %v421 = vsel %vm340, %v418, 0
    %423 = vmatprep.subr.mxu0 0.0
    %424 = vmatpush1.xpose.msra.mxu0 0.0
    %425 = vmatprep.subr.mxu0 0.0
    %426 = vmatpush1.xpose.msra.mxu0 0.0
    %427 = vmatprep.subr.mxu0 0.0
    %428 = vmatpush1.xpose.msra.mxu0 0.0
    %429 = vmatprep.subr.mxu0 0.0
    %430 = vmatpush1.xpose.msra.mxu0 0.0
    %431 = vmatprep.subr.mxu0 0.0
    %432 = vmatpush1.xpose.msra.mxu0 0.0
    %433 = vmatprep.subr.mxu0 0.0
    %434 = vmatpush1.xpose.msra.mxu0 0.0
    %435 = vmatprep.subr.mxu0 0.0
    %436 = vmatpush1.xpose.msra.mxu0 0.0
    %437 = vmatprep.subr.mxu0 0.0
    %438 = vmatpush1.xpose.msra.mxu0 0.0
    %439 = vmatprep.subr.mxu0 0.0
    %440 = vmatpush1.xpose.msra.mxu0 0.0
    %441 = vmatprep.subr.mxu0 0.0
    %442 = vmatpush1.xpose.msra.mxu0 0.0
    %443 = vmatprep.subr.mxu0 0.0
    %444 = vmatpush1.xpose.msra.mxu0 0.0
    %445 = vmatprep.subr.mxu0 0.0
    %446 = vmatpush1.xpose.msra.mxu0 0.0
    %447 = vmatprep.subr.mxu0 0.0
    %448 = vmatpush1.xpose.msra.mxu0 0.0
    %449 = vmatprep.subr.mxu0 0.0
    %450 = vmatpush1.xpose.msra.mxu0 0.0
    %451 = vmatprep.subr.mxu0 0.0
    %452 = vmatpush1.xpose.msra.mxu0 0.0
    %453 = vmatprep.subr.mxu0 0.0
    %454 = vmatpush1.xpose.msra.mxu0 %v421
    %455 = vmatprep.subr.mxu0 0.0
    %456 = vmatpush2.xpose.msra.mxu0 0.0
    %457 = vmatprep.subr.mxu0 0.0
    %458 = vmatpush2.xpose.msra.mxu0 0.0
    %459 = vmatprep.subr.mxu0 0.0
    %460 = vmatpush2.xpose.msra.mxu0 0.0
    %461 = vmatprep.subr.mxu0 0.0
    %462 = vmatpush2.xpose.msra.mxu0 0.0
    %463 = vmatprep.subr.mxu0 0.0
    %464 = vmatpush2.xpose.msra.mxu0 0.0
    %465 = vmatprep.subr.mxu0 0.0
    %466 = vmatpush2.xpose.msra.mxu0 0.0
    %467 = vmatprep.subr.mxu0 0.0
    %468 = vmatpush2.xpose.msra.mxu0 0.0
    %469 = vmatprep.subr.mxu0 0.0
    %470 = vmatpush2.xpose.msra.mxu0 0.0
    %471 = vmatprep.subr.mxu0 0.0
    %472 = vmatpush2.xpose.msra.mxu0 0.0
    %473 = vmatprep.subr.mxu0 0.0
    %474 = vmatpush2.xpose.msra.mxu0 0.0
    %475 = vmatprep.subr.mxu0 0.0
    %476 = vmatpush2.xpose.msra.mxu0 0.0
    %477 = vmatprep.subr.mxu0 0.0
    %478 = vmatpush2.xpose.msra.mxu0 0.0
    %479 = vmatprep.subr.mxu0 0.0
    %480 = vmatpush2.xpose.msra.mxu0 0.0
    %481 = vmatprep.subr.mxu0 0.0
    %482 = vmatpush2.xpose.msra.mxu0 0.0
    %483 = vmatprep.subr.mxu0 0.0
    %484 = vmatpush2.xpose.msra.mxu0 0.0
    %485 = vmatprep.subr.mxu0 0.0
    %486 = vmatpush2.xpose.msra.mxu0 0.0
    %487 = vmatprep.mubr.f32.mxu0 0.0
    %488 = vmatmul.mubr.f32.gmra.mxu0 %v419
    %v489 = vpop.f32.mrf.mxu0
    %v490 = vadd.f32 0.0, %v489
    %v491 = vpop.f32.mrf.mxu0
    %492 = vdwg.mxu0
    %493 = vrot.lane.b32.xlu0 %v329, 112
    %v494 = vpop.permute.xlu0 %493
    %495 = vrot.lane.b32.xlu0 %v329, 80
    %v496 = vpop.permute.xlu0 %495
    %v497 = vsel %vm340, %v494, 0
    %v499 = vsel %vm340, %v496, 0
    %501 = vmatprep.subr.mxu0 0.0
    %502 = vmatpush1.xpose.msra.mxu0 0.0
    %503 = vmatprep.subr.mxu0 0.0
    %504 = vmatpush1.xpose.msra.mxu0 0.0
    %505 = vmatprep.subr.mxu0 0.0
    %506 = vmatpush1.xpose.msra.mxu0 0.0
    %507 = vmatprep.subr.mxu0 0.0
    %508 = vmatpush1.xpose.msra.mxu0 0.0
    %509 = vmatprep.subr.mxu0 0.0
    %510 = vmatpush1.xpose.msra.mxu0 0.0
    %511 = vmatprep.subr.mxu0 0.0
    %512 = vmatpush1.xpose.msra.mxu0 0.0
    %513 = vmatprep.subr.mxu0 0.0
    %514 = vmatpush1.xpose.msra.mxu0 0.0
    %515 = vmatprep.subr.mxu0 0.0
    %516 = vmatpush1.xpose.msra.mxu0 0.0
    %517 = vmatprep.subr.mxu0 0.0
    %518 = vmatpush1.xpose.msra.mxu0 0.0
    %519 = vmatprep.subr.mxu0 0.0
    %520 = vmatpush1.xpose.msra.mxu0 0.0
    %521 = vmatprep.subr.mxu0 0.0
    %522 = vmatpush1.xpose.msra.mxu0 0.0
    %523 = vmatprep.subr.mxu0 0.0
    %524 = vmatpush1.xpose.msra.mxu0 0.0
    %525 = vmatprep.subr.mxu0 0.0
    %526 = vmatpush1.xpose.msra.mxu0 0.0
    %527 = vmatprep.subr.mxu0 0.0
    %528 = vmatpush1.xpose.msra.mxu0 0.0
    %529 = vmatprep.subr.mxu0 0.0
    %530 = vmatpush1.xpose.msra.mxu0 0.0
    %531 = vmatprep.subr.mxu0 0.0
    %532 = vmatpush1.xpose.msra.mxu0 %v499
    %533 = vmatprep.subr.mxu0 0.0
    %534 = vmatpush2.xpose.msra.mxu0 0.0
    %535 = vmatprep.subr.mxu0 0.0
    %536 = vmatpush2.xpose.msra.mxu0 0.0
    %537 = vmatprep.subr.mxu0 0.0
    %538 = vmatpush2.xpose.msra.mxu0 0.0
    %539 = vmatprep.subr.mxu0 0.0
    %540 = vmatpush2.xpose.msra.mxu0 0.0
    %541 = vmatprep.subr.mxu0 0.0
    %542 = vmatpush2.xpose.msra.mxu0 0.0
    %543 = vmatprep.subr.mxu0 0.0
    %544 = vmatpush2.xpose.msra.mxu0 0.0
    %545 = vmatprep.subr.mxu0 0.0
    %546 = vmatpush2.xpose.msra.mxu0 0.0
    %547 = vmatprep.subr.mxu0 0.0
    %548 = vmatpush2.xpose.msra.mxu0 0.0
    %549 = vmatprep.subr.mxu0 0.0
    %550 = vmatpush2.xpose.msra.mxu0 0.0
    %551 = vmatprep.subr.mxu0 0.0
    %552 = vmatpush2.xpose.msra.mxu0 0.0
    %553 = vmatprep.subr.mxu0 0.0
    %554 = vmatpush2.xpose.msra.mxu0 0.0
    %555 = vmatprep.subr.mxu0 0.0
    %556 = vmatpush2.xpose.msra.mxu0 0.0
    %557 = vmatprep.subr.mxu0 0.0
    %558 = vmatpush2.xpose.msra.mxu0 0.0
    %559 = vmatprep.subr.mxu0 0.0
    %560 = vmatpush2.xpose.msra.mxu0 0.0
    %561 = vmatprep.subr.mxu0 0.0
    %562 = vmatpush2.xpose.msra.mxu0 0.0
    %563 = vmatprep.subr.mxu0 0.0
    %564 = vmatpush2.xpose.msra.mxu0 0.0
    %565 = vmatprep.mubr.f32.mxu0 0.0
    %566 = vmatmul.mubr.f32.gmra.mxu0 %v497
    %v567 = vpop.f32.mrf.mxu0
    %v568 = vadd.f32 0.0, %v567
    %v569 = vpop.f32.mrf.mxu0
    %570 = vdwg.mxu0
    %571 = vrot.lane.b32.xlu0 %v329, 104
    %v572 = vpop.permute.xlu0 %571
    %573 = vrot.lane.b32.xlu0 %v329, 72
    %v574 = vpop.permute.xlu0 %573
    %v575 = vsel %vm340, %v572, 0
    %v577 = vsel %vm340, %v574, 0
    %579 = vmatprep.subr.mxu0 0.0
    %580 = vmatpush1.xpose.msra.mxu0 0.0
    %581 = vmatprep.subr.mxu0 0.0
    %582 = vmatpush1.xpose.msra.mxu0 0.0
    %583 = vmatprep.subr.mxu0 0.0
    %584 = vmatpush1.xpose.msra.mxu0 0.0
    %585 = vmatprep.subr.mxu0 0.0
    %586 = vmatpush1.xpose.msra.mxu0 0.0
    %587 = vmatprep.subr.mxu0 0.0
    %588 = vmatpush1.xpose.msra.mxu0 0.0
    %589 = vmatprep.subr.mxu0 0.0
    %590 = vmatpush1.xpose.msra.mxu0 0.0
    %591 = vmatprep.subr.mxu0 0.0
    %592 = vmatpush1.xpose.msra.mxu0 0.0
    %593 = vmatprep.subr.mxu0 0.0
    %594 = vmatpush1.xpose.msra.mxu0 0.0
    %595 = vmatprep.subr.mxu0 0.0
    %596 = vmatpush1.xpose.msra.mxu0 0.0
    %597 = vmatprep.subr.mxu0 0.0
    %598 = vmatpush1.xpose.msra.mxu0 0.0
    %599 = vmatprep.subr.mxu0 0.0
    %600 = vmatpush1.xpose.msra.mxu0 0.0
    %601 = vmatprep.subr.mxu0 0.0
    %602 = vmatpush1.xpose.msra.mxu0 0.0
    %603 = vmatprep.subr.mxu0 0.0
    %604 = vmatpush1.xpose.msra.mxu0 0.0
    %605 = vmatprep.subr.mxu0 0.0
    %606 = vmatpush1.xpose.msra.mxu0 0.0
    %607 = vmatprep.subr.mxu0 0.0
    %608 = vmatpush1.xpose.msra.mxu0 0.0
    %609 = vmatprep.subr.mxu0 0.0
    %610 = vmatpush1.xpose.msra.mxu0 %v577
    %611 = vmatprep.subr.mxu0 0.0
    %612 = vmatpush2.xpose.msra.mxu0 0.0
    %613 = vmatprep.subr.mxu0 0.0
    %614 = vmatpush2.xpose.msra.mxu0 0.0
    %615 = vmatprep.subr.mxu0 0.0
    %616 = vmatpush2.xpose.msra.mxu0 0.0
    %617 = vmatprep.subr.mxu0 0.0
    %618 = vmatpush2.xpose.msra.mxu0 0.0
    %619 = vmatprep.subr.mxu0 0.0
    %620 = vmatpush2.xpose.msra.mxu0 0.0
    %621 = vmatprep.subr.mxu0 0.0
    %622 = vmatpush2.xpose.msra.mxu0 0.0
    %623 = vmatprep.subr.mxu0 0.0
    %624 = vmatpush2.xpose.msra.mxu0 0.0
    %625 = vmatprep.subr.mxu0 0.0
    %626 = vmatpush2.xpose.msra.mxu0 0.0
    %627 = vmatprep.subr.mxu0 0.0
    %628 = vmatpush2.xpose.msra.mxu0 0.0
    %629 = vmatprep.subr.mxu0 0.0
    %630 = vmatpush2.xpose.msra.mxu0 0.0
    %631 = vmatprep.subr.mxu0 0.0
    %632 = vmatpush2.xpose.msra.mxu0 0.0
    %633 = vmatprep.subr.mxu0 0.0
    %634 = vmatpush2.xpose.msra.mxu0 0.0
    %635 = vmatprep.subr.mxu0 0.0
    %636 = vmatpush2.xpose.msra.mxu0 0.0
    %637 = vmatprep.subr.mxu0 0.0
    %638 = vmatpush2.xpose.msra.mxu0 0.0
    %639 = vmatprep.subr.mxu0 0.0
    %640 = vmatpush2.xpose.msra.mxu0 0.0
    %641 = vmatprep.subr.mxu0 0.0
    %642 = vmatpush2.xpose.msra.mxu0 0.0
    %643 = vmatprep.mubr.f32.mxu0 0.0
    %644 = vmatmul.mubr.f32.gmra.mxu0 %v575
    %v645 = vpop.f32.mrf.mxu0
    %v646 = vadd.f32 0.0, %v645
    %v647 = vpop.f32.mrf.mxu0
    %648 = vdwg.mxu0
    %650 = vrot.lane.b32.xlu0 %v334, 96
    %v651 = vpop.permute.xlu0 %650
    %v652 = vsel %vm340, %v334, 0
    %v654 = vsel %vm340, %v651, 0
    %656 = vmatprep.subr.mxu0 0.0
    %657 = vmatpush1.xpose.msra.mxu0 0.0
    %658 = vmatprep.subr.mxu0 0.0
    %659 = vmatpush1.xpose.msra.mxu0 0.0
    %660 = vmatprep.subr.mxu0 0.0
    %661 = vmatpush1.xpose.msra.mxu0 0.0
    %662 = vmatprep.subr.mxu0 0.0
    %663 = vmatpush1.xpose.msra.mxu0 0.0
    %664 = vmatprep.subr.mxu0 0.0
    %665 = vmatpush1.xpose.msra.mxu0 0.0
    %666 = vmatprep.subr.mxu0 0.0
    %667 = vmatpush1.xpose.msra.mxu0 0.0
    %668 = vmatprep.subr.mxu0 0.0
    %669 = vmatpush1.xpose.msra.mxu0 0.0
    %670 = vmatprep.subr.mxu0 0.0
    %671 = vmatpush1.xpose.msra.mxu0 0.0
    %672 = vmatprep.subr.mxu0 0.0
    %673 = vmatpush1.xpose.msra.mxu0 0.0
    %674 = vmatprep.subr.mxu0 0.0
    %675 = vmatpush1.xpose.msra.mxu0 0.0
    %676 = vmatprep.subr.mxu0 0.0
    %677 = vmatpush1.xpose.msra.mxu0 0.0
    %678 = vmatprep.subr.mxu0 0.0
    %679 = vmatpush1.xpose.msra.mxu0 0.0
    %680 = vmatprep.subr.mxu0 0.0
    %681 = vmatpush1.xpose.msra.mxu0 0.0
    %682 = vmatprep.subr.mxu0 0.0
    %683 = vmatpush1.xpose.msra.mxu0 0.0
    %684 = vmatprep.subr.mxu0 0.0
    %685 = vmatpush1.xpose.msra.mxu0 0.0
    %686 = vmatprep.subr.mxu0 0.0
    %687 = vmatpush1.xpose.msra.mxu0 %v654
    %688 = vmatprep.subr.mxu0 0.0
    %689 = vmatpush2.xpose.msra.mxu0 0.0
    %690 = vmatprep.subr.mxu0 0.0
    %691 = vmatpush2.xpose.msra.mxu0 0.0
    %692 = vmatprep.subr.mxu0 0.0
    %693 = vmatpush2.xpose.msra.mxu0 0.0
    %694 = vmatprep.subr.mxu0 0.0
    %695 = vmatpush2.xpose.msra.mxu0 0.0
    %696 = vmatprep.subr.mxu0 0.0
    %697 = vmatpush2.xpose.msra.mxu0 0.0
    %698 = vmatprep.subr.mxu0 0.0
    %699 = vmatpush2.xpose.msra.mxu0 0.0
    %700 = vmatprep.subr.mxu0 0.0
    %701 = vmatpush2.xpose.msra.mxu0 0.0
    %702 = vmatprep.subr.mxu0 0.0
    %703 = vmatpush2.xpose.msra.mxu0 0.0
    %704 = vmatprep.subr.mxu0 0.0
    %705 = vmatpush2.xpose.msra.mxu0 0.0
    %706 = vmatprep.subr.mxu0 0.0
    %707 = vmatpush2.xpose.msra.mxu0 0.0
    %708 = vmatprep.subr.mxu0 0.0
    %709 = vmatpush2.xpose.msra.mxu0 0.0
    %710 = vmatprep.subr.mxu0 0.0
    %711 = vmatpush2.xpose.msra.mxu0 0.0
    %712 = vmatprep.subr.mxu0 0.0
    %713 = vmatpush2.xpose.msra.mxu0 0.0
    %714 = vmatprep.subr.mxu0 0.0
    %715 = vmatpush2.xpose.msra.mxu0 0.0
    %716 = vmatprep.subr.mxu0 0.0
    %717 = vmatpush2.xpose.msra.mxu0 0.0
    %718 = vmatprep.subr.mxu0 0.0
    %719 = vmatpush2.xpose.msra.mxu0 0.0
    %720 = vmatprep.mubr.f32.mxu0 0.0
    %721 = vmatmul.mubr.f32.gmra.mxu0 %v652
    %v722 = vpop.f32.mrf.mxu0
    %v723 = vadd.f32 0.0, %v722
    %v724 = vpop.f32.mrf.mxu0
    %725 = vdwg.mxu0
    %726 = vrot.lane.b32.xlu0 %v334, 120
    %v727 = vpop.permute.xlu0 %726
    %728 = vrot.lane.b32.xlu0 %v334, 88
    %v729 = vpop.permute.xlu0 %728
    %v730 = vsel %vm340, %v727, 0
    %v732 = vsel %vm340, %v729, 0
    %734 = vmatprep.subr.mxu0 0.0
    %735 = vmatpush1.xpose.msra.mxu0 0.0
    %736 = vmatprep.subr.mxu0 0.0
    %737 = vmatpush1.xpose.msra.mxu0 0.0
    %738 = vmatprep.subr.mxu0 0.0
    %739 = vmatpush1.xpose.msra.mxu0 0.0
    %740 = vmatprep.subr.mxu0 0.0
    %741 = vmatpush1.xpose.msra.mxu0 0.0
    %742 = vmatprep.subr.mxu0 0.0
    %743 = vmatpush1.xpose.msra.mxu0 0.0
    %744 = vmatprep.subr.mxu0 0.0
    %745 = vmatpush1.xpose.msra.mxu0 0.0
    %746 = vmatprep.subr.mxu0 0.0
    %747 = vmatpush1.xpose.msra.mxu0 0.0
    %748 = vmatprep.subr.mxu0 0.0
    %749 = vmatpush1.xpose.msra.mxu0 0.0
    %750 = vmatprep.subr.mxu0 0.0
    %751 = vmatpush1.xpose.msra.mxu0 0.0
    %752 = vmatprep.subr.mxu0 0.0
    %753 = vmatpush1.xpose.msra.mxu0 0.0
    %754 = vmatprep.subr.mxu0 0.0
    %755 = vmatpush1.xpose.msra.mxu0 0.0
    %756 = vmatprep.subr.mxu0 0.0
    %757 = vmatpush1.xpose.msra.mxu0 0.0
    %758 = vmatprep.subr.mxu0 0.0
    %759 = vmatpush1.xpose.msra.mxu0 0.0
    %760 = vmatprep.subr.mxu0 0.0
    %761 = vmatpush1.xpose.msra.mxu0 0.0
    %762 = vmatprep.subr.mxu0 0.0
    %763 = vmatpush1.xpose.msra.mxu0 0.0
    %764 = vmatprep.subr.mxu0 0.0
    %765 = vmatpush1.xpose.msra.mxu0 %v732
    %766 = vmatprep.subr.mxu0 0.0
    %767 = vmatpush2.xpose.msra.mxu0 0.0
    %768 = vmatprep.subr.mxu0 0.0
    %769 = vmatpush2.xpose.msra.mxu0 0.0
    %770 = vmatprep.subr.mxu0 0.0
    %771 = vmatpush2.xpose.msra.mxu0 0.0
    %772 = vmatprep.subr.mxu0 0.0
    %773 = vmatpush2.xpose.msra.mxu0 0.0
    %774 = vmatprep.subr.mxu0 0.0
    %775 = vmatpush2.xpose.msra.mxu0 0.0
    %776 = vmatprep.subr.mxu0 0.0
    %777 = vmatpush2.xpose.msra.mxu0 0.0
    %778 = vmatprep.subr.mxu0 0.0
    %779 = vmatpush2.xpose.msra.mxu0 0.0
    %780 = vmatprep.subr.mxu0 0.0
    %781 = vmatpush2.xpose.msra.mxu0 0.0
    %782 = vmatprep.subr.mxu0 0.0
    %783 = vmatpush2.xpose.msra.mxu0 0.0
    %784 = vmatprep.subr.mxu0 0.0
    %785 = vmatpush2.xpose.msra.mxu0 0.0
    %786 = vmatprep.subr.mxu0 0.0
    %787 = vmatpush2.xpose.msra.mxu0 0.0
    %788 = vmatprep.subr.mxu0 0.0
    %789 = vmatpush2.xpose.msra.mxu0 0.0
    %790 = vmatprep.subr.mxu0 0.0
    %791 = vmatpush2.xpose.msra.mxu0 0.0
    %792 = vmatprep.subr.mxu0 0.0
    %793 = vmatpush2.xpose.msra.mxu0 0.0
    %794 = vmatprep.subr.mxu0 0.0
    %795 = vmatpush2.xpose.msra.mxu0 0.0
    %796 = vmatprep.subr.mxu0 0.0
    %797 = vmatpush2.xpose.msra.mxu0 0.0
    %798 = vmatprep.mubr.f32.mxu0 0.0
    %799 = vmatmul.mubr.f32.gmra.mxu0 %v730
    %v800 = vpop.f32.mrf.mxu0
    %v801 = vadd.f32 0.0, %v800
    %v802 = vpop.f32.mrf.mxu0
    %803 = vdwg.mxu0
    %804 = vrot.lane.b32.xlu0 %v334, 112
    %v805 = vpop.permute.xlu0 %804
    %806 = vrot.lane.b32.xlu0 %v334, 80
    %v807 = vpop.permute.xlu0 %806
    %v808 = vsel %vm340, %v805, 0
    %v810 = vsel %vm340, %v807, 0
    %812 = vmatprep.subr.mxu0 0.0
    %813 = vmatpush1.xpose.msra.mxu0 0.0
    %814 = vmatprep.subr.mxu0 0.0
    %815 = vmatpush1.xpose.msra.mxu0 0.0
    %816 = vmatprep.subr.mxu0 0.0
    %817 = vmatpush1.xpose.msra.mxu0 0.0
    %818 = vmatprep.subr.mxu0 0.0
    %819 = vmatpush1.xpose.msra.mxu0 0.0
    %820 = vmatprep.subr.mxu0 0.0
    %821 = vmatpush1.xpose.msra.mxu0 0.0
    %822 = vmatprep.subr.mxu0 0.0
    %823 = vmatpush1.xpose.msra.mxu0 0.0
    %824 = vmatprep.subr.mxu0 0.0
    %825 = vmatpush1.xpose.msra.mxu0 0.0
    %826 = vmatprep.subr.mxu0 0.0
    %827 = vmatpush1.xpose.msra.mxu0 0.0
    %828 = vmatprep.subr.mxu0 0.0
    %829 = vmatpush1.xpose.msra.mxu0 0.0
    %830 = vmatprep.subr.mxu0 0.0
    %831 = vmatpush1.xpose.msra.mxu0 0.0
    %832 = vmatprep.subr.mxu0 0.0
    %833 = vmatpush1.xpose.msra.mxu0 0.0
    %834 = vmatprep.subr.mxu0 0.0
    %835 = vmatpush1.xpose.msra.mxu0 0.0
    %836 = vmatprep.subr.mxu0 0.0
    %837 = vmatpush1.xpose.msra.mxu0 0.0
    %838 = vmatprep.subr.mxu0 0.0
    %839 = vmatpush1.xpose.msra.mxu0 0.0
    %840 = vmatprep.subr.mxu0 0.0
    %841 = vmatpush1.xpose.msra.mxu0 0.0
    %842 = vmatprep.subr.mxu0 0.0
    %843 = vmatpush1.xpose.msra.mxu0 %v810
    %844 = vmatprep.subr.mxu0 0.0
    %845 = vmatpush2.xpose.msra.mxu0 0.0
    %846 = vmatprep.subr.mxu0 0.0
    %847 = vmatpush2.xpose.msra.mxu0 0.0
    %848 = vmatprep.subr.mxu0 0.0
    %849 = vmatpush2.xpose.msra.mxu0 0.0
    %850 = vmatprep.subr.mxu0 0.0
    %851 = vmatpush2.xpose.msra.mxu0 0.0
    %852 = vmatprep.subr.mxu0 0.0
    %853 = vmatpush2.xpose.msra.mxu0 0.0
    %854 = vmatprep.subr.mxu0 0.0
    %855 = vmatpush2.xpose.msra.mxu0 0.0
    %856 = vmatprep.subr.mxu0 0.0
    %857 = vmatpush2.xpose.msra.mxu0 0.0
    %858 = vmatprep.subr.mxu0 0.0
    %859 = vmatpush2.xpose.msra.mxu0 0.0
    %860 = vmatprep.subr.mxu0 0.0
    %861 = vmatpush2.xpose.msra.mxu0 0.0
    %862 = vmatprep.subr.mxu0 0.0
    %863 = vmatpush2.xpose.msra.mxu0 0.0
    %864 = vmatprep.subr.mxu0 0.0
    %865 = vmatpush2.xpose.msra.mxu0 0.0
    %866 = vmatprep.subr.mxu0 0.0
    %867 = vmatpush2.xpose.msra.mxu0 0.0
    %868 = vmatprep.subr.mxu0 0.0
    %869 = vmatpush2.xpose.msra.mxu0 0.0
    %870 = vmatprep.subr.mxu0 0.0
    %871 = vmatpush2.xpose.msra.mxu0 0.0
    %872 = vmatprep.subr.mxu0 0.0
    %873 = vmatpush2.xpose.msra.mxu0 0.0
    %874 = vmatprep.subr.mxu0 0.0
    %875 = vmatpush2.xpose.msra.mxu0 0.0
    %876 = vmatprep.mubr.f32.mxu0 0.0
    %877 = vmatmul.mubr.f32.gmra.mxu0 %v808
    %v878 = vpop.f32.mrf.mxu0
    %v879 = vadd.f32 0.0, %v878
    %v880 = vpop.f32.mrf.mxu0
    %881 = vdwg.mxu0
    %882 = vrot.lane.b32.xlu0 %v334, 104
    %v883 = vpop.permute.xlu0 %882
    %884 = vrot.lane.b32.xlu0 %v334, 72
    %v885 = vpop.permute.xlu0 %884
    %v886 = vsel %vm340, %v883, 0
    %v888 = vsel %vm340, %v885, 0
    %890 = vmatprep.subr.mxu0 0.0
    %891 = vmatpush1.xpose.msra.mxu0 0.0
    %892 = vmatprep.subr.mxu0 0.0
    %893 = vmatpush1.xpose.msra.mxu0 0.0
    %894 = vmatprep.subr.mxu0 0.0
    %895 = vmatpush1.xpose.msra.mxu0 0.0
    %896 = vmatprep.subr.mxu0 0.0
    %897 = vmatpush1.xpose.msra.mxu0 0.0
    %898 = vmatprep.subr.mxu0 0.0
    %899 = vmatpush1.xpose.msra.mxu0 0.0
    %900 = vmatprep.subr.mxu0 0.0
    %901 = vmatpush1.xpose.msra.mxu0 0.0
    %902 = vmatprep.subr.mxu0 0.0
    %903 = vmatpush1.xpose.msra.mxu0 0.0
    %904 = vmatprep.subr.mxu0 0.0
    %905 = vmatpush1.xpose.msra.mxu0 0.0
    %906 = vmatprep.subr.mxu0 0.0
    %907 = vmatpush1.xpose.msra.mxu0 0.0
    %908 = vmatprep.subr.mxu0 0.0
    %909 = vmatpush1.xpose.msra.mxu0 0.0
    %910 = vmatprep.subr.mxu0 0.0
    %911 = vmatpush1.xpose.msra.mxu0 0.0
    %912 = vmatprep.subr.mxu0 0.0
    %913 = vmatpush1.xpose.msra.mxu0 0.0
    %914 = vmatprep.subr.mxu0 0.0
    %915 = vmatpush1.xpose.msra.mxu0 0.0
    %916 = vmatprep.subr.mxu0 0.0
    %917 = vmatpush1.xpose.msra.mxu0 0.0
    %918 = vmatprep.subr.mxu0 0.0
    %919 = vmatpush1.xpose.msra.mxu0 0.0
    %920 = vmatprep.subr.mxu0 0.0
    %921 = vmatpush1.xpose.msra.mxu0 %v888
    %922 = vmatprep.subr.mxu0 0.0
    %923 = vmatpush2.xpose.msra.mxu0 0.0
    %924 = vmatprep.subr.mxu0 0.0
    %925 = vmatpush2.xpose.msra.mxu0 0.0
    %926 = vmatprep.subr.mxu0 0.0
    %927 = vmatpush2.xpose.msra.mxu0 0.0
    %928 = vmatprep.subr.mxu0 0.0
    %929 = vmatpush2.xpose.msra.mxu0 0.0
    %930 = vmatprep.subr.mxu0 0.0
    %931 = vmatpush2.xpose.msra.mxu0 0.0
    %932 = vmatprep.subr.mxu0 0.0
    %933 = vmatpush2.xpose.msra.mxu0 0.0
    %934 = vmatprep.subr.mxu0 0.0
    %935 = vmatpush2.xpose.msra.mxu0 0.0
    %936 = vmatprep.subr.mxu0 0.0
    %937 = vmatpush2.xpose.msra.mxu0 0.0
    %938 = vmatprep.subr.mxu0 0.0
    %939 = vmatpush2.xpose.msra.mxu0 0.0
    %940 = vmatprep.subr.mxu0 0.0
    %941 = vmatpush2.xpose.msra.mxu0 0.0
    %942 = vmatprep.subr.mxu0 0.0
    %943 = vmatpush2.xpose.msra.mxu0 0.0
    %944 = vmatprep.subr.mxu0 0.0
    %945 = vmatpush2.xpose.msra.mxu0 0.0
    %946 = vmatprep.subr.mxu0 0.0
    %947 = vmatpush2.xpose.msra.mxu0 0.0
    %948 = vmatprep.subr.mxu0 0.0
    %949 = vmatpush2.xpose.msra.mxu0 0.0
    %950 = vmatprep.subr.mxu0 0.0
    %951 = vmatpush2.xpose.msra.mxu0 0.0
    %952 = vmatprep.subr.mxu0 0.0
    %953 = vmatpush2.xpose.msra.mxu0 0.0
    %954 = vmatprep.mubr.f32.mxu0 0.0
    %955 = vmatmul.mubr.f32.gmra.mxu0 %v886
    %v956 = vpop.f32.mrf.mxu0
    %v957 = vadd.f32 0.0, %v956
    %v958 = vpop.f32.mrf.mxu0
    %959 = vdwg.mxu0
    %v960 = vadd.f32 %v412, %v240
    %v961 = vadd.f32 %v490, %v240
    %v962 = vadd.f32 %v568, %v240
    %v963 = vadd.f32 %v646, %v240
    %v964 = vadd.f32 %v723, %v244
    %v965 = vadd.f32 %v801, %v244
    %v966 = vadd.f32 %v879, %v244
    %v967 = vadd.f32 %v957, %v244
    %v968 = vsel %vm340, %v960, -inf
    %969 = vmax.xlane.f32.xlu0 %v968
    %v970 = vpop.xlane.xlu0 %969
    %v971 = vsel %vm340, %v961, -inf
    %972 = vmax.xlane.f32.xlu0 %v971
    %v973 = vpop.xlane.xlu0 %972
    %v974 = vsel %vm340, %v962, -inf
    %975 = vmax.xlane.f32.xlu0 %v974
    %v976 = vpop.xlane.xlu0 %975
    %v977 = vsel %vm340, %v963, -inf
    %978 = vmax.xlane.f32.xlu0 %v977
    %v979 = vpop.xlane.xlu0 %978
    %v980 = vsel %vm340, %v964, -inf
    %981 = vmax.xlane.f32.xlu0 %v980
    %v982 = vpop.xlane.xlu0 %981
    %v983 = vsel %vm340, %v965, -inf
    %984 = vmax.xlane.f32.xlu0 %v983
    %v985 = vpop.xlane.xlu0 %984
    %v986 = vsel %vm340, %v966, -inf
    %987 = vmax.xlane.f32.xlu0 %v986
    %v988 = vpop.xlane.xlu0 %987
    %v989 = vsel %vm340, %v967, -inf
    %990 = vmax.xlane.f32.xlu0 %v989
    %v991 = vpop.xlane.xlu0 %990
    %v992 = vsub.f32 %v960, %v970
    %v993 = vsub.f32 %v961, %v973
    %v994 = vsub.f32 %v962, %v976
    %v995 = vsub.f32 %v963, %v979
    %v996 = vsub.f32 %v964, %v982
    %v997 = vsub.f32 %v965, %v985
    %v998 = vsub.f32 %v966, %v988
    %v999 = vsub.f32 %v967, %v991
    %v1000 = vmul.f32 %v992, 1.442695
    %v1001 = vpow.pop %v1000
    %v1002 = vmul.f32 %v993, 1.442695
    %v1003 = vpow.pop %v1002
    %v1004 = vmul.f32 %v994, 1.442695
    %v1005 = vpow.pop %v1004
    %v1006 = vmul.f32 %v995, 1.442695
    %v1007 = vpow.pop %v1006
    %v1008 = vmul.f32 %v996, 1.442695
    %v1009 = vpow.pop %v1008
    %v1010 = vmul.f32 %v997, 1.442695
    %v1011 = vpow.pop %v1010
    %v1012 = vmul.f32 %v998, 1.442695
    %v1013 = vpow.pop %v1012
    %v1014 = vmul.f32 %v999, 1.442695
    %v1015 = vpow.pop %v1014
    %v1016 = vsel %vm340, %v1001, 0.0
    %1017 = vadd.xlane.f32.xlu0 %v1016
    %v1018 = vpop.xlane.xlu0 %1017
    %v1019 = vsel %vm340, %v1003, 0.0
    %1020 = vadd.xlane.f32.xlu0 %v1019
    %v1021 = vpop.xlane.xlu0 %1020
    %v1022 = vsel %vm340, %v1005, 0.0
    %1023 = vadd.xlane.f32.xlu0 %v1022
    %v1024 = vpop.xlane.xlu0 %1023
    %v1025 = vsel %vm340, %v1007, 0.0
    %1026 = vadd.xlane.f32.xlu0 %v1025
    %v1027 = vpop.xlane.xlu0 %1026
    %v1028 = vsel %vm340, %v1009, 0.0
    %1029 = vadd.xlane.f32.xlu0 %v1028
    %v1030 = vpop.xlane.xlu0 %1029
    %v1031 = vsel %vm340, %v1011, 0.0
    %1032 = vadd.xlane.f32.xlu0 %v1031
    %v1033 = vpop.xlane.xlu0 %1032
    %v1034 = vsel %vm340, %v1013, 0.0
    %1035 = vadd.xlane.f32.xlu0 %v1034
    %v1036 = vpop.xlane.xlu0 %1035
    %v1037 = vsel %vm340, %v1015, 0.0
    %1038 = vadd.xlane.f32.xlu0 %v1037
    %v1039 = vpop.xlane.xlu0 %1038
    %v1040 = vrcp.pop %v1018
    %v1041 = vrcp.pop %v1021
    %v1042 = vrcp.pop %v1024
    %v1043 = vrcp.pop %v1027
    %v1044 = vrcp.pop %v1030
    %v1045 = vrcp.pop %v1033
    %v1046 = vrcp.pop %v1036
    %v1047 = vrcp.pop %v1039
    %v1048 = vmul.f32 %v1001, %v1040
    %v1049 = vmul.f32 %v1003, %v1041
    %v1050 = vmul.f32 %v1005, %v1042
    %v1051 = vmul.f32 %v1007, %v1043
    %v1052 = vmul.f32 %v1009, %v1044
    %v1053 = vmul.f32 %v1011, %v1045
    %v1054 = vmul.f32 %v1013, %v1046
    %v1055 = vmul.f32 %v1015, %v1047
    %1056 = vrot.lane.b32.xlu0 %v329, 64
    %v1057 = vpop.permute.xlu0 %1056
    %v1060 = vsel %vm340, %v1048, 0
    %1062 = vmatprep.subr.mxu0 0.0
    %1063 = vmatpush1.msra.mxu0 0.0
    %1064 = vmatprep.subr.mxu0 0.0
    %1065 = vmatpush1.msra.mxu0 0.0
    %1066 = vmatprep.subr.mxu0 0.0
    %1067 = vmatpush1.msra.mxu0 0.0
    %1068 = vmatprep.subr.mxu0 0.0
    %1069 = vmatpush1.msra.mxu0 0.0
    %1070 = vmatprep.subr.mxu0 0.0
    %1071 = vmatpush1.msra.mxu0 0.0
    %1072 = vmatprep.subr.mxu0 0.0
    %1073 = vmatpush1.msra.mxu0 0.0
    %1074 = vmatprep.subr.mxu0 0.0
    %1075 = vmatpush1.msra.mxu0 0.0
    %1076 = vmatprep.subr.mxu0 0.0
    %1077 = vmatpush1.msra.mxu0 0.0
    %1078 = vmatprep.subr.mxu0 0.0
    %1079 = vmatpush1.msra.mxu0 0.0
    %1080 = vmatprep.subr.mxu0 0.0
    %1081 = vmatpush1.msra.mxu0 0.0
    %1082 = vmatprep.subr.mxu0 0.0
    %1083 = vmatpush1.msra.mxu0 0.0
    %1084 = vmatprep.subr.mxu0 0.0
    %1085 = vmatpush1.msra.mxu0 0.0
    %1086 = vmatprep.subr.mxu0 0.0
    %1087 = vmatpush1.msra.mxu0 0.0
    %1088 = vmatprep.subr.mxu0 0.0
    %1089 = vmatpush1.msra.mxu0 0.0
    %1090 = vmatprep.subr.mxu0 0.0
    %1091 = vmatpush1.msra.mxu0 0.0
    %1092 = vmatprep.subr.mxu0 0.0
    %1093 = vmatpush1.msra.mxu0 %v1057
    %1094 = vmatprep.subr.mxu0 0.0
    %1095 = vmatpush2.msra.mxu0 0.0
    %1096 = vmatprep.subr.mxu0 0.0
    %1097 = vmatpush2.msra.mxu0 0.0
    %1098 = vmatprep.subr.mxu0 0.0
    %1099 = vmatpush2.msra.mxu0 0.0
    %1100 = vmatprep.subr.mxu0 0.0
    %1101 = vmatpush2.msra.mxu0 0.0
    %1102 = vmatprep.subr.mxu0 0.0
    %1103 = vmatpush2.msra.mxu0 0.0
    %1104 = vmatprep.subr.mxu0 0.0
    %1105 = vmatpush2.msra.mxu0 0.0
    %1106 = vmatprep.subr.mxu0 0.0
    %1107 = vmatpush2.msra.mxu0 0.0
    %1108 = vmatprep.subr.mxu0 0.0
    %1109 = vmatpush2.msra.mxu0 0.0
    %1110 = vmatprep.subr.mxu0 0.0
    %1111 = vmatpush2.msra.mxu0 0.0
    %1112 = vmatprep.subr.mxu0 0.0
    %1113 = vmatpush2.msra.mxu0 0.0
    %1114 = vmatprep.subr.mxu0 0.0
    %1115 = vmatpush2.msra.mxu0 0.0
    %1116 = vmatprep.subr.mxu0 0.0
    %1117 = vmatpush2.msra.mxu0 0.0
    %1118 = vmatprep.subr.mxu0 0.0
    %1119 = vmatpush2.msra.mxu0 0.0
    %1120 = vmatprep.subr.mxu0 0.0
    %1121 = vmatpush2.msra.mxu0 0.0
    %1122 = vmatprep.subr.mxu0 0.0
    %1123 = vmatpush2.msra.mxu0 0.0
    %1124 = vmatprep.subr.mxu0 0.0
    %1125 = vmatpush2.msra.mxu0 0.0
    %1126 = vmatprep.mubr.f32.mxu0 0.0
    %1127 = vmatmul.mubr.f32.gmra.mxu0 %v1060
    %v1128 = vpop.f32.mrf.mxu0
    %v1129 = vadd.f32 0.0, %v1128
    %v1130 = vpop.f32.mrf.mxu0
    %1131 = vdwg.mxu0
    %1132 = vrot.lane.b32.xlu0 %v329, 56
    %v1133 = vpop.permute.xlu0 %1132
    %v1136 = vsel %vm340, %v1049, 0
    %1138 = vmatprep.subr.mxu0 0.0
    %1139 = vmatpush1.msra.mxu0 0.0
    %1140 = vmatprep.subr.mxu0 0.0
    %1141 = vmatpush1.msra.mxu0 0.0
    %1142 = vmatprep.subr.mxu0 0.0
    %1143 = vmatpush1.msra.mxu0 0.0
    %1144 = vmatprep.subr.mxu0 0.0
    %1145 = vmatpush1.msra.mxu0 0.0
    %1146 = vmatprep.subr.mxu0 0.0
    %1147 = vmatpush1.msra.mxu0 0.0
    %1148 = vmatprep.subr.mxu0 0.0
    %1149 = vmatpush1.msra.mxu0 0.0
    %1150 = vmatprep.subr.mxu0 0.0
    %1151 = vmatpush1.msra.mxu0 0.0
    %1152 = vmatprep.subr.mxu0 0.0
    %1153 = vmatpush1.msra.mxu0 0.0
    %1154 = vmatprep.subr.mxu0 0.0
    %1155 = vmatpush1.msra.mxu0 0.0
    %1156 = vmatprep.subr.mxu0 0.0
    %1157 = vmatpush1.msra.mxu0 0.0
    %1158 = vmatprep.subr.mxu0 0.0
    %1159 = vmatpush1.msra.mxu0 0.0
    %1160 = vmatprep.subr.mxu0 0.0
    %1161 = vmatpush1.msra.mxu0 0.0
    %1162 = vmatprep.subr.mxu0 0.0
    %1163 = vmatpush1.msra.mxu0 0.0
    %1164 = vmatprep.subr.mxu0 0.0
    %1165 = vmatpush1.msra.mxu0 0.0
    %1166 = vmatprep.subr.mxu0 0.0
    %1167 = vmatpush1.msra.mxu0 0.0
    %1168 = vmatprep.subr.mxu0 0.0
    %1169 = vmatpush1.msra.mxu0 %v1133
    %1170 = vmatprep.subr.mxu0 0.0
    %1171 = vmatpush2.msra.mxu0 0.0
    %1172 = vmatprep.subr.mxu0 0.0
    %1173 = vmatpush2.msra.mxu0 0.0
    %1174 = vmatprep.subr.mxu0 0.0
    %1175 = vmatpush2.msra.mxu0 0.0
    %1176 = vmatprep.subr.mxu0 0.0
    %1177 = vmatpush2.msra.mxu0 0.0
    %1178 = vmatprep.subr.mxu0 0.0
    %1179 = vmatpush2.msra.mxu0 0.0
    %1180 = vmatprep.subr.mxu0 0.0
    %1181 = vmatpush2.msra.mxu0 0.0
    %1182 = vmatprep.subr.mxu0 0.0
    %1183 = vmatpush2.msra.mxu0 0.0
    %1184 = vmatprep.subr.mxu0 0.0
    %1185 = vmatpush2.msra.mxu0 0.0
    %1186 = vmatprep.subr.mxu0 0.0
    %1187 = vmatpush2.msra.mxu0 0.0
    %1188 = vmatprep.subr.mxu0 0.0
    %1189 = vmatpush2.msra.mxu0 0.0
    %1190 = vmatprep.subr.mxu0 0.0
    %1191 = vmatpush2.msra.mxu0 0.0
    %1192 = vmatprep.subr.mxu0 0.0
    %1193 = vmatpush2.msra.mxu0 0.0
    %1194 = vmatprep.subr.mxu0 0.0
    %1195 = vmatpush2.msra.mxu0 0.0
    %1196 = vmatprep.subr.mxu0 0.0
    %1197 = vmatpush2.msra.mxu0 0.0
    %1198 = vmatprep.subr.mxu0 0.0
    %1199 = vmatpush2.msra.mxu0 0.0
    %1200 = vmatprep.subr.mxu0 0.0
    %1201 = vmatpush2.msra.mxu0 0.0
    %1202 = vmatprep.mubr.f32.mxu0 0.0
    %1203 = vmatmul.mubr.f32.gmra.mxu0 %v1136
    %v1204 = vpop.f32.mrf.mxu0
    %v1205 = vadd.f32 0.0, %v1204
    %v1206 = vpop.f32.mrf.mxu0
    %1207 = vdwg.mxu0
    %1208 = vrot.lane.b32.xlu0 %v329, 48
    %v1209 = vpop.permute.xlu0 %1208
    %v1212 = vsel %vm340, %v1050, 0
    %1214 = vmatprep.subr.mxu0 0.0
    %1215 = vmatpush1.msra.mxu0 0.0
    %1216 = vmatprep.subr.mxu0 0.0
    %1217 = vmatpush1.msra.mxu0 0.0
    %1218 = vmatprep.subr.mxu0 0.0
    %1219 = vmatpush1.msra.mxu0 0.0
    %1220 = vmatprep.subr.mxu0 0.0
    %1221 = vmatpush1.msra.mxu0 0.0
    %1222 = vmatprep.subr.mxu0 0.0
    %1223 = vmatpush1.msra.mxu0 0.0
    %1224 = vmatprep.subr.mxu0 0.0
    %1225 = vmatpush1.msra.mxu0 0.0
    %1226 = vmatprep.subr.mxu0 0.0
    %1227 = vmatpush1.msra.mxu0 0.0
    %1228 = vmatprep.subr.mxu0 0.0
    %1229 = vmatpush1.msra.mxu0 0.0
    %1230 = vmatprep.subr.mxu0 0.0
    %1231 = vmatpush1.msra.mxu0 0.0
    %1232 = vmatprep.subr.mxu0 0.0
    %1233 = vmatpush1.msra.mxu0 0.0
    %1234 = vmatprep.subr.mxu0 0.0
    %1235 = vmatpush1.msra.mxu0 0.0
    %1236 = vmatprep.subr.mxu0 0.0
    %1237 = vmatpush1.msra.mxu0 0.0
    %1238 = vmatprep.subr.mxu0 0.0
    %1239 = vmatpush1.msra.mxu0 0.0
    %1240 = vmatprep.subr.mxu0 0.0
    %1241 = vmatpush1.msra.mxu0 0.0
    %1242 = vmatprep.subr.mxu0 0.0
    %1243 = vmatpush1.msra.mxu0 0.0
    %1244 = vmatprep.subr.mxu0 0.0
    %1245 = vmatpush1.msra.mxu0 %v1209
    %1246 = vmatprep.subr.mxu0 0.0
    %1247 = vmatpush2.msra.mxu0 0.0
    %1248 = vmatprep.subr.mxu0 0.0
    %1249 = vmatpush2.msra.mxu0 0.0
    %1250 = vmatprep.subr.mxu0 0.0
    %1251 = vmatpush2.msra.mxu0 0.0
    %1252 = vmatprep.subr.mxu0 0.0
    %1253 = vmatpush2.msra.mxu0 0.0
    %1254 = vmatprep.subr.mxu0 0.0
    %1255 = vmatpush2.msra.mxu0 0.0
    %1256 = vmatprep.subr.mxu0 0.0
    %1257 = vmatpush2.msra.mxu0 0.0
    %1258 = vmatprep.subr.mxu0 0.0
    %1259 = vmatpush2.msra.mxu0 0.0
    %1260 = vmatprep.subr.mxu0 0.0
    %1261 = vmatpush2.msra.mxu0 0.0
    %1262 = vmatprep.subr.mxu0 0.0
    %1263 = vmatpush2.msra.mxu0 0.0
    %1264 = vmatprep.subr.mxu0 0.0
    %1265 = vmatpush2.msra.mxu0 0.0
    %1266 = vmatprep.subr.mxu0 0.0
    %1267 = vmatpush2.msra.mxu0 0.0
    %1268 = vmatprep.subr.mxu0 0.0
    %1269 = vmatpush2.msra.mxu0 0.0
    %1270 = vmatprep.subr.mxu0 0.0
    %1271 = vmatpush2.msra.mxu0 0.0
    %1272 = vmatprep.subr.mxu0 0.0
    %1273 = vmatpush2.msra.mxu0 0.0
    %1274 = vmatprep.subr.mxu0 0.0
    %1275 = vmatpush2.msra.mxu0 0.0
    %1276 = vmatprep.subr.mxu0 0.0
    %1277 = vmatpush2.msra.mxu0 0.0
    %1278 = vmatprep.mubr.f32.mxu0 0.0
    %1279 = vmatmul.mubr.f32.gmra.mxu0 %v1212
    %v1280 = vpop.f32.mrf.mxu0
    %v1281 = vadd.f32 0.0, %v1280
    %v1282 = vpop.f32.mrf.mxu0
    %1283 = vdwg.mxu0
    %1284 = vrot.lane.b32.xlu0 %v329, 40
    %v1285 = vpop.permute.xlu0 %1284
    %v1288 = vsel %vm340, %v1051, 0
    %1290 = vmatprep.subr.mxu0 0.0
    %1291 = vmatpush1.msra.mxu0 0.0
    %1292 = vmatprep.subr.mxu0 0.0
    %1293 = vmatpush1.msra.mxu0 0.0
    %1294 = vmatprep.subr.mxu0 0.0
    %1295 = vmatpush1.msra.mxu0 0.0
    %1296 = vmatprep.subr.mxu0 0.0
    %1297 = vmatpush1.msra.mxu0 0.0
    %1298 = vmatprep.subr.mxu0 0.0
    %1299 = vmatpush1.msra.mxu0 0.0
    %1300 = vmatprep.subr.mxu0 0.0
    %1301 = vmatpush1.msra.mxu0 0.0
    %1302 = vmatprep.subr.mxu0 0.0
    %1303 = vmatpush1.msra.mxu0 0.0
    %1304 = vmatprep.subr.mxu0 0.0
    %1305 = vmatpush1.msra.mxu0 0.0
    %1306 = vmatprep.subr.mxu0 0.0
    %1307 = vmatpush1.msra.mxu0 0.0
    %1308 = vmatprep.subr.mxu0 0.0
    %1309 = vmatpush1.msra.mxu0 0.0
    %1310 = vmatprep.subr.mxu0 0.0
    %1311 = vmatpush1.msra.mxu0 0.0
    %1312 = vmatprep.subr.mxu0 0.0
    %1313 = vmatpush1.msra.mxu0 0.0
    %1314 = vmatprep.subr.mxu0 0.0
    %1315 = vmatpush1.msra.mxu0 0.0
    %1316 = vmatprep.subr.mxu0 0.0
    %1317 = vmatpush1.msra.mxu0 0.0
    %1318 = vmatprep.subr.mxu0 0.0
    %1319 = vmatpush1.msra.mxu0 0.0
    %1320 = vmatprep.subr.mxu0 0.0
    %1321 = vmatpush1.msra.mxu0 %v1285
    %1322 = vmatprep.subr.mxu0 0.0
    %1323 = vmatpush2.msra.mxu0 0.0
    %1324 = vmatprep.subr.mxu0 0.0
    %1325 = vmatpush2.msra.mxu0 0.0
    %1326 = vmatprep.subr.mxu0 0.0
    %1327 = vmatpush2.msra.mxu0 0.0
    %1328 = vmatprep.subr.mxu0 0.0
    %1329 = vmatpush2.msra.mxu0 0.0
    %1330 = vmatprep.subr.mxu0 0.0
    %1331 = vmatpush2.msra.mxu0 0.0
    %1332 = vmatprep.subr.mxu0 0.0
    %1333 = vmatpush2.msra.mxu0 0.0
    %1334 = vmatprep.subr.mxu0 0.0
    %1335 = vmatpush2.msra.mxu0 0.0
    %1336 = vmatprep.subr.mxu0 0.0
    %1337 = vmatpush2.msra.mxu0 0.0
    %1338 = vmatprep.subr.mxu0 0.0
    %1339 = vmatpush2.msra.mxu0 0.0
    %1340 = vmatprep.subr.mxu0 0.0
    %1341 = vmatpush2.msra.mxu0 0.0
    %1342 = vmatprep.subr.mxu0 0.0
    %1343 = vmatpush2.msra.mxu0 0.0
    %1344 = vmatprep.subr.mxu0 0.0
    %1345 = vmatpush2.msra.mxu0 0.0
    %1346 = vmatprep.subr.mxu0 0.0
    %1347 = vmatpush2.msra.mxu0 0.0
    %1348 = vmatprep.subr.mxu0 0.0
    %1349 = vmatpush2.msra.mxu0 0.0
    %1350 = vmatprep.subr.mxu0 0.0
    %1351 = vmatpush2.msra.mxu0 0.0
    %1352 = vmatprep.subr.mxu0 0.0
    %1353 = vmatpush2.msra.mxu0 0.0
    %1354 = vmatprep.mubr.f32.mxu0 0.0
    %1355 = vmatmul.mubr.f32.gmra.mxu0 %v1288
    %v1356 = vpop.f32.mrf.mxu0
    %v1357 = vadd.f32 0.0, %v1356
    %v1358 = vpop.f32.mrf.mxu0
    %1359 = vdwg.mxu0
    %1361 = vrot.lane.b32.xlu0 %v1205, 8
    %v1362 = vpop.permute.xlu0 %1361
    %1365 = vrot.lane.b32.xlu0 %v1281, 16
    %v1366 = vpop.permute.xlu0 %1365
    %1369 = vrot.lane.b32.xlu0 %v1357, 24
    %v1370 = vpop.permute.xlu0 %1369
    %v1372 = vsel %vm340, %v1129, %v1362
    %vm1373 = vcmask 130048
    %v1374 = vsel %vm1373, %v1372, %v1366
    %vm1375 = vcmask 195584
    %v1376 = vsel %vm1375, %v1374, %v1370
    %1377 = vrot.lane.b32.xlu0 %v334, 64
    %v1378 = vpop.permute.xlu0 %1377
    %v1381 = vsel %vm340, %v1052, 0
    %1383 = vmatprep.subr.mxu0 0.0
    %1384 = vmatpush1.msra.mxu0 0.0
    %1385 = vmatprep.subr.mxu0 0.0
    %1386 = vmatpush1.msra.mxu0 0.0
    %1387 = vmatprep.subr.mxu0 0.0
    %1388 = vmatpush1.msra.mxu0 0.0
    %1389 = vmatprep.subr.mxu0 0.0
    %1390 = vmatpush1.msra.mxu0 0.0
    %1391 = vmatprep.subr.mxu0 0.0
    %1392 = vmatpush1.msra.mxu0 0.0
    %1393 = vmatprep.subr.mxu0 0.0
    %1394 = vmatpush1.msra.mxu0 0.0
    %1395 = vmatprep.subr.mxu0 0.0
    %1396 = vmatpush1.msra.mxu0 0.0
    %1397 = vmatprep.subr.mxu0 0.0
    %1398 = vmatpush1.msra.mxu0 0.0
    %1399 = vmatprep.subr.mxu0 0.0
    %1400 = vmatpush1.msra.mxu0 0.0
    %1401 = vmatprep.subr.mxu0 0.0
    %1402 = vmatpush1.msra.mxu0 0.0
    %1403 = vmatprep.subr.mxu0 0.0
    %1404 = vmatpush1.msra.mxu0 0.0
    %1405 = vmatprep.subr.mxu0 0.0
    %1406 = vmatpush1.msra.mxu0 0.0
    %1407 = vmatprep.subr.mxu0 0.0
    %1408 = vmatpush1.msra.mxu0 0.0
    %1409 = vmatprep.subr.mxu0 0.0
    %1410 = vmatpush1.msra.mxu0 0.0
    %1411 = vmatprep.subr.mxu0 0.0
    %1412 = vmatpush1.msra.mxu0 0.0
    %1413 = vmatprep.subr.mxu0 0.0
    %1414 = vmatpush1.msra.mxu0 %v1378
    %1415 = vmatprep.subr.mxu0 0.0
    %1416 = vmatpush2.msra.mxu0 0.0
    %1417 = vmatprep.subr.mxu0 0.0
    %1418 = vmatpush2.msra.mxu0 0.0
    %1419 = vmatprep.subr.mxu0 0.0
    %1420 = vmatpush2.msra.mxu0 0.0
    %1421 = vmatprep.subr.mxu0 0.0
    %1422 = vmatpush2.msra.mxu0 0.0
    %1423 = vmatprep.subr.mxu0 0.0
    %1424 = vmatpush2.msra.mxu0 0.0
    %1425 = vmatprep.subr.mxu0 0.0
    %1426 = vmatpush2.msra.mxu0 0.0
    %1427 = vmatprep.subr.mxu0 0.0
    %1428 = vmatpush2.msra.mxu0 0.0
    %1429 = vmatprep.subr.mxu0 0.0
    %1430 = vmatpush2.msra.mxu0 0.0
    %1431 = vmatprep.subr.mxu0 0.0
    %1432 = vmatpush2.msra.mxu0 0.0
    %1433 = vmatprep.subr.mxu0 0.0
    %1434 = vmatpush2.msra.mxu0 0.0
    %1435 = vmatprep.subr.mxu0 0.0
    %1436 = vmatpush2.msra.mxu0 0.0
    %1437 = vmatprep.subr.mxu0 0.0
    %1438 = vmatpush2.msra.mxu0 0.0
    %1439 = vmatprep.subr.mxu0 0.0
    %1440 = vmatpush2.msra.mxu0 0.0
    %1441 = vmatprep.subr.mxu0 0.0
    %1442 = vmatpush2.msra.mxu0 0.0
    %1443 = vmatprep.subr.mxu0 0.0
    %1444 = vmatpush2.msra.mxu0 0.0
    %1445 = vmatprep.subr.mxu0 0.0
    %1446 = vmatpush2.msra.mxu0 0.0
    %1447 = vmatprep.mubr.f32.mxu0 0.0
    %1448 = vmatmul.mubr.f32.gmra.mxu0 %v1381
    %v1449 = vpop.f32.mrf.mxu0
    %v1450 = vadd.f32 0.0, %v1449
    %v1451 = vpop.f32.mrf.mxu0
    %1452 = vdwg.mxu0
    %1453 = vrot.lane.b32.xlu0 %v334, 56
    %v1454 = vpop.permute.xlu0 %1453
    %v1457 = vsel %vm340, %v1053, 0
    %1459 = vmatprep.subr.mxu0 0.0
    %1460 = vmatpush1.msra.mxu0 0.0
    %1461 = vmatprep.subr.mxu0 0.0
    %1462 = vmatpush1.msra.mxu0 0.0
    %1463 = vmatprep.subr.mxu0 0.0
    %1464 = vmatpush1.msra.mxu0 0.0
    %1465 = vmatprep.subr.mxu0 0.0
    %1466 = vmatpush1.msra.mxu0 0.0
    %1467 = vmatprep.subr.mxu0 0.0
    %1468 = vmatpush1.msra.mxu0 0.0
    %1469 = vmatprep.subr.mxu0 0.0
    %1470 = vmatpush1.msra.mxu0 0.0
    %1471 = vmatprep.subr.mxu0 0.0
    %1472 = vmatpush1.msra.mxu0 0.0
    %1473 = vmatprep.subr.mxu0 0.0
    %1474 = vmatpush1.msra.mxu0 0.0
    %1475 = vmatprep.subr.mxu0 0.0
    %1476 = vmatpush1.msra.mxu0 0.0
    %1477 = vmatprep.subr.mxu0 0.0
    %1478 = vmatpush1.msra.mxu0 0.0
    %1479 = vmatprep.subr.mxu0 0.0
    %1480 = vmatpush1.msra.mxu0 0.0
    %1481 = vmatprep.subr.mxu0 0.0
    %1482 = vmatpush1.msra.mxu0 0.0
    %1483 = vmatprep.subr.mxu0 0.0
    %1484 = vmatpush1.msra.mxu0 0.0
    %1485 = vmatprep.subr.mxu0 0.0
    %1486 = vmatpush1.msra.mxu0 0.0
    %1487 = vmatprep.subr.mxu0 0.0
    %1488 = vmatpush1.msra.mxu0 0.0
    %1489 = vmatprep.subr.mxu0 0.0
    %1490 = vmatpush1.msra.mxu0 %v1454
    %1491 = vmatprep.subr.mxu0 0.0
    %1492 = vmatpush2.msra.mxu0 0.0
    %1493 = vmatprep.subr.mxu0 0.0
    %1494 = vmatpush2.msra.mxu0 0.0
    %1495 = vmatprep.subr.mxu0 0.0
    %1496 = vmatpush2.msra.mxu0 0.0
    %1497 = vmatprep.subr.mxu0 0.0
    %1498 = vmatpush2.msra.mxu0 0.0
    %1499 = vmatprep.subr.mxu0 0.0
    %1500 = vmatpush2.msra.mxu0 0.0
    %1501 = vmatprep.subr.mxu0 0.0
    %1502 = vmatpush2.msra.mxu0 0.0
    %1503 = vmatprep.subr.mxu0 0.0
    %1504 = vmatpush2.msra.mxu0 0.0
    %1505 = vmatprep.subr.mxu0 0.0
    %1506 = vmatpush2.msra.mxu0 0.0
    %1507 = vmatprep.subr.mxu0 0.0
    %1508 = vmatpush2.msra.mxu0 0.0
    %1509 = vmatprep.subr.mxu0 0.0
    %1510 = vmatpush2.msra.mxu0 0.0
    %1511 = vmatprep.subr.mxu0 0.0
    %1512 = vmatpush2.msra.mxu0 0.0
    %1513 = vmatprep.subr.mxu0 0.0
    %1514 = vmatpush2.msra.mxu0 0.0
    %1515 = vmatprep.subr.mxu0 0.0
    %1516 = vmatpush2.msra.mxu0 0.0
    %1517 = vmatprep.subr.mxu0 0.0
    %1518 = vmatpush2.msra.mxu0 0.0
    %1519 = vmatprep.subr.mxu0 0.0
    %1520 = vmatpush2.msra.mxu0 0.0
    %1521 = vmatprep.subr.mxu0 0.0
    %1522 = vmatpush2.msra.mxu0 0.0
    %1523 = vmatprep.mubr.f32.mxu0 0.0
    %1524 = vmatmul.mubr.f32.gmra.mxu0 %v1457
    %v1525 = vpop.f32.mrf.mxu0
    %v1526 = vadd.f32 0.0, %v1525
    %v1527 = vpop.f32.mrf.mxu0
    %1528 = vdwg.mxu0
    %1529 = vrot.lane.b32.xlu0 %v334, 48
    %v1530 = vpop.permute.xlu0 %1529
    %v1533 = vsel %vm340, %v1054, 0
    %1535 = vmatprep.subr.mxu0 0.0
    %1536 = vmatpush1.msra.mxu0 0.0
    %1537 = vmatprep.subr.mxu0 0.0
    %1538 = vmatpush1.msra.mxu0 0.0
    %1539 = vmatprep.subr.mxu0 0.0
    %1540 = vmatpush1.msra.mxu0 0.0
    %1541 = vmatprep.subr.mxu0 0.0
    %1542 = vmatpush1.msra.mxu0 0.0
    %1543 = vmatprep.subr.mxu0 0.0
    %1544 = vmatpush1.msra.mxu0 0.0
    %1545 = vmatprep.subr.mxu0 0.0
    %1546 = vmatpush1.msra.mxu0 0.0
    %1547 = vmatprep.subr.mxu0 0.0
    %1548 = vmatpush1.msra.mxu0 0.0
    %1549 = vmatprep.subr.mxu0 0.0
    %1550 = vmatpush1.msra.mxu0 0.0
    %1551 = vmatprep.subr.mxu0 0.0
    %1552 = vmatpush1.msra.mxu0 0.0
    %1553 = vmatprep.subr.mxu0 0.0
    %1554 = vmatpush1.msra.mxu0 0.0
    %1555 = vmatprep.subr.mxu0 0.0
    %1556 = vmatpush1.msra.mxu0 0.0
    %1557 = vmatprep.subr.mxu0 0.0
    %1558 = vmatpush1.msra.mxu0 0.0
    %1559 = vmatprep.subr.mxu0 0.0
    %1560 = vmatpush1.msra.mxu0 0.0
    %1561 = vmatprep.subr.mxu0 0.0
    %1562 = vmatpush1.msra.mxu0 0.0
    %1563 = vmatprep.subr.mxu0 0.0
    %1564 = vmatpush1.msra.mxu0 0.0
    %1565 = vmatprep.subr.mxu0 0.0
    %1566 = vmatpush1.msra.mxu0 %v1530
    %1567 = vmatprep.subr.mxu0 0.0
    %1568 = vmatpush2.msra.mxu0 0.0
    %1569 = vmatprep.subr.mxu0 0.0
    %1570 = vmatpush2.msra.mxu0 0.0
    %1571 = vmatprep.subr.mxu0 0.0
    %1572 = vmatpush2.msra.mxu0 0.0
    %1573 = vmatprep.subr.mxu0 0.0
    %1574 = vmatpush2.msra.mxu0 0.0
    %1575 = vmatprep.subr.mxu0 0.0
    %1576 = vmatpush2.msra.mxu0 0.0
    %1577 = vmatprep.subr.mxu0 0.0
    %1578 = vmatpush2.msra.mxu0 0.0
    %1579 = vmatprep.subr.mxu0 0.0
    %1580 = vmatpush2.msra.mxu0 0.0
    %1581 = vmatprep.subr.mxu0 0.0
    %1582 = vmatpush2.msra.mxu0 0.0
    %1583 = vmatprep.subr.mxu0 0.0
    %1584 = vmatpush2.msra.mxu0 0.0
    %1585 = vmatprep.subr.mxu0 0.0
    %1586 = vmatpush2.msra.mxu0 0.0
    %1587 = vmatprep.subr.mxu0 0.0
    %1588 = vmatpush2.msra.mxu0 0.0
    %1589 = vmatprep.subr.mxu0 0.0
    %1590 = vmatpush2.msra.mxu0 0.0
    %1591 = vmatprep.subr.mxu0 0.0
    %1592 = vmatpush2.msra.mxu0 0.0
    %1593 = vmatprep.subr.mxu0 0.0
    %1594 = vmatpush2.msra.mxu0 0.0
    %1595 = vmatprep.subr.mxu0 0.0
    %1596 = vmatpush2.msra.mxu0 0.0
    %1597 = vmatprep.subr.mxu0 0.0
    %1598 = vmatpush2.msra.mxu0 0.0
    %1599 = vmatprep.mubr.f32.mxu0 0.0
    %1600 = vmatmul.mubr.f32.gmra.mxu0 %v1533
    %v1601 = vpop.f32.mrf.mxu0
    %v1602 = vadd.f32 0.0, %v1601
    %v1603 = vpop.f32.mrf.mxu0
    %1604 = vdwg.mxu0
    %1605 = vrot.lane.b32.xlu0 %v334, 40
    %v1606 = vpop.permute.xlu0 %1605
    %v1609 = vsel %vm340, %v1055, 0
    %1611 = vmatprep.subr.mxu0 0.0
    %1612 = vmatpush1.msra.mxu0 0.0
    %1613 = vmatprep.subr.mxu0 0.0
    %1614 = vmatpush1.msra.mxu0 0.0
    %1615 = vmatprep.subr.mxu0 0.0
    %1616 = vmatpush1.msra.mxu0 0.0
    %1617 = vmatprep.subr.mxu0 0.0
    %1618 = vmatpush1.msra.mxu0 0.0
    %1619 = vmatprep.subr.mxu0 0.0
    %1620 = vmatpush1.msra.mxu0 0.0
    %1621 = vmatprep.subr.mxu0 0.0
    %1622 = vmatpush1.msra.mxu0 0.0
    %1623 = vmatprep.subr.mxu0 0.0
    %1624 = vmatpush1.msra.mxu0 0.0
    %1625 = vmatprep.subr.mxu0 0.0
    %1626 = vmatpush1.msra.mxu0 0.0
    %1627 = vmatprep.subr.mxu0 0.0
    %1628 = vmatpush1.msra.mxu0 0.0
    %1629 = vmatprep.subr.mxu0 0.0
    %1630 = vmatpush1.msra.mxu0 0.0
    %1631 = vmatprep.subr.mxu0 0.0
    %1632 = vmatpush1.msra.mxu0 0.0
    %1633 = vmatprep.subr.mxu0 0.0
    %1634 = vmatpush1.msra.mxu0 0.0
    %1635 = vmatprep.subr.mxu0 0.0
    %1636 = vmatpush1.msra.mxu0 0.0
    %1637 = vmatprep.subr.mxu0 0.0
    %1638 = vmatpush1.msra.mxu0 0.0
    %1639 = vmatprep.subr.mxu0 0.0
    %1640 = vmatpush1.msra.mxu0 0.0
    %1641 = vmatprep.subr.mxu0 0.0
    %1642 = vmatpush1.msra.mxu0 %v1606
    %1643 = vmatprep.subr.mxu0 0.0
    %1644 = vmatpush2.msra.mxu0 0.0
    %1645 = vmatprep.subr.mxu0 0.0
    %1646 = vmatpush2.msra.mxu0 0.0
    %1647 = vmatprep.subr.mxu0 0.0
    %1648 = vmatpush2.msra.mxu0 0.0
    %1649 = vmatprep.subr.mxu0 0.0
    %1650 = vmatpush2.msra.mxu0 0.0
    %1651 = vmatprep.subr.mxu0 0.0
    %1652 = vmatpush2.msra.mxu0 0.0
    %1653 = vmatprep.subr.mxu0 0.0
    %1654 = vmatpush2.msra.mxu0 0.0
    %1655 = vmatprep.subr.mxu0 0.0
    %1656 = vmatpush2.msra.mxu0 0.0
    %1657 = vmatprep.subr.mxu0 0.0
    %1658 = vmatpush2.msra.mxu0 0.0
    %1659 = vmatprep.subr.mxu0 0.0
    %1660 = vmatpush2.msra.mxu0 0.0
    %1661 = vmatprep.subr.mxu0 0.0
    %1662 = vmatpush2.msra.mxu0 0.0
    %1663 = vmatprep.subr.mxu0 0.0
    %1664 = vmatpush2.msra.mxu0 0.0
    %1665 = vmatprep.subr.mxu0 0.0
    %1666 = vmatpush2.msra.mxu0 0.0
    %1667 = vmatprep.subr.mxu0 0.0
    %1668 = vmatpush2.msra.mxu0 0.0
    %1669 = vmatprep.subr.mxu0 0.0
    %1670 = vmatpush2.msra.mxu0 0.0
    %1671 = vmatprep.subr.mxu0 0.0
    %1672 = vmatpush2.msra.mxu0 0.0
    %1673 = vmatprep.subr.mxu0 0.0
    %1674 = vmatpush2.msra.mxu0 0.0
    %1675 = vmatprep.mubr.f32.mxu0 0.0
    %1676 = vmatmul.mubr.f32.gmra.mxu0 %v1609
    %v1677 = vpop.f32.mrf.mxu0
    %v1678 = vadd.f32 0.0, %v1677
    %v1679 = vpop.f32.mrf.mxu0
    %1680 = vdwg.mxu0
    %1682 = vrot.lane.b32.xlu0 %v1526, 8
    %v1683 = vpop.permute.xlu0 %1682
    %1686 = vrot.lane.b32.xlu0 %v1602, 16
    %v1687 = vpop.permute.xlu0 %1686
    %1690 = vrot.lane.b32.xlu0 %v1678, 24
    %v1691 = vpop.permute.xlu0 %1690
    %v1693 = vsel %vm340, %v1450, %v1683
    %v1694 = vsel %vm1373, %v1693, %v1687
    %v1695 = vsel %vm1375, %v1694, %v1691
    %v1696 = vld [vmem:[%s8] sm:$0xff]
    %v1697 = vld [vmem:[%s8 + $0x8] sm:$0xff]
    %v1698 = vld [vmem:[%s8 + $0x10] sm:$0xff]
    %v1699 = vld [vmem:[%s8 + $0x18] sm:$0xff]
    %v1700 = vld [vmem:[%s9] sm:$0x1]
    %v1702 = vlaneseq
    %v1703 = vshrl.u32 %v1702, 7
    %v1704 = vsub.s32 0, %v1703
    %v1705 = vrot.slane %v1700, %v1704
    %v1708 = vsel %vm190, %v1376, 0
    %v1711 = vsel %vm190, %v1695, 0
    %1713 = vmatprep.subr.mxu0 0.0
    %1714 = vmatpush1.msra.mxu0 0.0
    %1715 = vmatprep.subr.mxu0 0.0
    %1716 = vmatpush1.msra.mxu0 0.0
    %1717 = vmatprep.subr.mxu0 0.0
    %1718 = vmatpush1.msra.mxu0 0.0
    %1719 = vmatprep.subr.mxu0 0.0
    %1720 = vmatpush1.msra.mxu0 0.0
    %1721 = vmatprep.subr.mxu0 0.0
    %1722 = vmatpush1.msra.mxu0 0.0
    %1723 = vmatprep.subr.mxu0 0.0
    %1724 = vmatpush1.msra.mxu0 0.0
    %1725 = vmatprep.subr.mxu0 0.0
    %1726 = vmatpush1.msra.mxu0 0.0
    %1727 = vmatprep.subr.mxu0 0.0
    %1728 = vmatpush1.msra.mxu0 0.0
    %1729 = vmatprep.subr.mxu0 0.0
    %1730 = vmatpush1.msra.mxu0 0.0
    %1731 = vmatprep.subr.mxu0 0.0
    %1732 = vmatpush1.msra.mxu0 0.0
    %1733 = vmatprep.subr.mxu0 0.0
    %1734 = vmatpush1.msra.mxu0 0.0
    %1735 = vmatprep.subr.mxu0 0.0
    %1736 = vmatpush1.msra.mxu0 0.0
    %1737 = vmatprep.subr.mxu0 0.0
    %1738 = vmatpush1.msra.mxu0 %v1699
    %1739 = vmatprep.subr.mxu0 0.0
    %1740 = vmatpush1.msra.mxu0 %v1698
    %1741 = vmatprep.subr.mxu0 0.0
    %1742 = vmatpush1.msra.mxu0 %v1697
    %1743 = vmatprep.subr.mxu0 0.0
    %1744 = vmatpush1.msra.mxu0 %v1696
    %1745 = vmatprep.subr.mxu0 0.0
    %1746 = vmatpush2.msra.mxu0 0.0
    %1747 = vmatprep.subr.mxu0 0.0
    %1748 = vmatpush2.msra.mxu0 0.0
    %1749 = vmatprep.subr.mxu0 0.0
    %1750 = vmatpush2.msra.mxu0 0.0
    %1751 = vmatprep.subr.mxu0 0.0
    %1752 = vmatpush2.msra.mxu0 0.0
    %1753 = vmatprep.subr.mxu0 0.0
    %1754 = vmatpush2.msra.mxu0 0.0
    %1755 = vmatprep.subr.mxu0 0.0
    %1756 = vmatpush2.msra.mxu0 0.0
    %1757 = vmatprep.subr.mxu0 0.0
    %1758 = vmatpush2.msra.mxu0 0.0
    %1759 = vmatprep.subr.mxu0 0.0
    %1760 = vmatpush2.msra.mxu0 0.0
    %1761 = vmatprep.subr.mxu0 0.0
    %1762 = vmatpush2.msra.mxu0 0.0
    %1763 = vmatprep.subr.mxu0 0.0
    %1764 = vmatpush2.msra.mxu0 0.0
    %1765 = vmatprep.subr.mxu0 0.0
    %1766 = vmatpush2.msra.mxu0 0.0
    %1767 = vmatprep.subr.mxu0 0.0
    %1768 = vmatpush2.msra.mxu0 0.0
    %1769 = vmatprep.subr.mxu0 0.0
    %1770 = vmatpush2.msra.mxu0 0.0
    %1771 = vmatprep.subr.mxu0 0.0
    %1772 = vmatpush2.msra.mxu0 0.0
    %1773 = vmatprep.subr.mxu0 0.0
    %1774 = vmatpush2.msra.mxu0 0.0
    %1775 = vmatprep.subr.mxu0 0.0
    %1776 = vmatpush2.msra.mxu0 0.0
    %1777 = vmatprep.mubr.f32.mxu0 0.0
    %1778 = vmatmul.mubr.f32.gmra.mxu0 %v1708
    %v1779 = vpop.f32.mrf.mxu0
    %v1780 = vadd.f32 %v1705, %v1779
    %v1781 = vpop.f32.mrf.mxu0
    %1782 = vmatprep.mubr.f32.mxu0 0.0
    %1783 = vmatmul.mubr.f32.gmra.mxu0 %v1711
    %v1784 = vpop.f32.mrf.mxu0
    %v1785 = vadd.f32 %v1705, %v1784
    %v1786 = vpop.f32.mrf.mxu0
    %1787 = vdwg.mxu0
    %v1788 = vadd.f32 %v1780, %v232
    %v1789 = vadd.f32 %v1785, %v233
    %v1790 = vld [vmem:[%s10] sm:$0x1]
    %v1791 = vld [vmem:[%s11] sm:$0x1]
    %v1792 = vsel %vm190, %v1788, 0.0
    %1793 = vadd.xlane.f32.xlu0 %v1792
    %v1794 = vpop.xlane.xlu0 %1793
    %v1795 = vsel %vm190, %v1789, 0.0
    %1796 = vadd.xlane.f32.xlu0 %v1795
    %v1797 = vpop.xlane.xlu0 %1796
    %v1798 = vmul.f32 %v1794, %v197
    %v1799 = vmul.f32 %v1797, %v197
    %v1800 = vsub.f32 %v1788, %v1798
    %v1801 = vsub.f32 %v1789, %v1799
    %v1802 = vmul.f32 %v1800, %v1800
    %v1803 = vmul.f32 %v1801, %v1801
    %v1804 = vsel %vm190, %v1802, 0.0
    %1805 = vadd.xlane.f32.xlu0 %v1804
    %v1806 = vpop.xlane.xlu0 %1805
    %v1807 = vsel %vm190, %v1803, 0.0
    %1808 = vadd.xlane.f32.xlu0 %v1807
    %v1809 = vpop.xlane.xlu0 %1808
    %v1810 = vmul.f32 %v1806, %v197
    %v1811 = vmul.f32 %v1809, %v197
    %v1812 = vadd.f32 %v1810, 1e-12
    %v1813 = vadd.f32 %v1811, 1e-12
    %v1814 = vrsqrt.pop %v1812
    %v1815 = vrsqrt.pop %v1813
    %v1816 = vmul.f32 %v1800, %v1814
    %v1817 = vmul.f32 %v1801, %v1815
    %v1819 = vlaneseq
    %v1820 = vshrl.u32 %v1819, 7
    %v1821 = vsub.s32 0, %v1820
    %v1822 = vrot.slane %v1790, %v1821
    %v1824 = vmul.f32 %v1816, %v1822
    %v1825 = vmul.f32 %v1817, %v1822
    %v1827 = vlaneseq
    %v1828 = vshrl.u32 %v1827, 7
    %v1829 = vsub.s32 0, %v1828
    %v1830 = vrot.slane %v1791, %v1829
    %v1832 = vadd.f32 %v1824, %v1830
    %v1833 = vadd.f32 %v1825, %v1830
    %v1834 = vld [vmem:[%s12] sm:$0xff]
    %v1835 = vld [vmem:[%s12 + $0x8] sm:$0xff]
    %v1836 = vld [vmem:[%s12 + $0x10] sm:$0xff]
    %v1837 = vld [vmem:[%s12 + $0x18] sm:$0xff]
    %v1838 = vld [vmem:[%s13] sm:$0x1]
    %v1840 = vlaneseq
    %v1841 = vshrl.u32 %v1840, 7
    %v1842 = vsub.s32 0, %v1841
    %v1843 = vrot.slane %v1838, %v1842
    %v1846 = vsel %vm190, %v1832, 0
    %v1849 = vsel %vm190, %v1833, 0
    %1851 = vmatprep.subr.mxu0 0.0
    %1852 = vmatpush1.msra.mxu0 0.0
    %1853 = vmatprep.subr.mxu0 0.0
    %1854 = vmatpush1.msra.mxu0 0.0
    %1855 = vmatprep.subr.mxu0 0.0
    %1856 = vmatpush1.msra.mxu0 0.0
    %1857 = vmatprep.subr.mxu0 0.0
    %1858 = vmatpush1.msra.mxu0 0.0
    %1859 = vmatprep.subr.mxu0 0.0
    %1860 = vmatpush1.msra.mxu0 0.0
    %1861 = vmatprep.subr.mxu0 0.0
    %1862 = vmatpush1.msra.mxu0 0.0
    %1863 = vmatprep.subr.mxu0 0.0
    %1864 = vmatpush1.msra.mxu0 0.0
    %1865 = vmatprep.subr.mxu0 0.0
    %1866 = vmatpush1.msra.mxu0 0.0
    %1867 = vmatprep.subr.mxu0 0.0
    %1868 = vmatpush1.msra.mxu0 0.0
    %1869 = vmatprep.subr.mxu0 0.0
    %1870 = vmatpush1.msra.mxu0 0.0
    %1871 = vmatprep.subr.mxu0 0.0
    %1872 = vmatpush1.msra.mxu0 0.0
    %1873 = vmatprep.subr.mxu0 0.0
    %1874 = vmatpush1.msra.mxu0 0.0
    %1875 = vmatprep.subr.mxu0 0.0
    %1876 = vmatpush1.msra.mxu0 %v1837
    %1877 = vmatprep.subr.mxu0 0.0
    %1878 = vmatpush1.msra.mxu0 %v1836
    %1879 = vmatprep.subr.mxu0 0.0
    %1880 = vmatpush1.msra.mxu0 %v1835
    %1881 = vmatprep.subr.mxu0 0.0
    %1882 = vmatpush1.msra.mxu0 %v1834
    %1883 = vmatprep.subr.mxu0 0.0
    %1884 = vmatpush2.msra.mxu0 0.0
    %1885 = vmatprep.subr.mxu0 0.0
    %1886 = vmatpush2.msra.mxu0 0.0
    %1887 = vmatprep.subr.mxu0 0.0
    %1888 = vmatpush2.msra.mxu0 0.0
    %1889 = vmatprep.subr.mxu0 0.0
    %1890 = vmatpush2.msra.mxu0 0.0
    %1891 = vmatprep.subr.mxu0 0.0
    %1892 = vmatpush2.msra.mxu0 0.0
    %1893 = vmatprep.subr.mxu0 0.0
    %1894 = vmatpush2.msra.mxu0 0.0
    %1895 = vmatprep.subr.mxu0 0.0
    %1896 = vmatpush2.msra.mxu0 0.0
    %1897 = vmatprep.subr.mxu0 0.0
    %1898 = vmatpush2.msra.mxu0 0.0
    %1899 = vmatprep.subr.mxu0 0.0
    %1900 = vmatpush2.msra.mxu0 0.0
    %1901 = vmatprep.subr.mxu0 0.0
    %1902 = vmatpush2.msra.mxu0 0.0
    %1903 = vmatprep.subr.mxu0 0.0
    %1904 = vmatpush2.msra.mxu0 0.0
    %1905 = vmatprep.subr.mxu0 0.0
    %1906 = vmatpush2.msra.mxu0 0.0
    %1907 = vmatprep.subr.mxu0 0.0
    %1908 = vmatpush2.msra.mxu0 0.0
    %1909 = vmatprep.subr.mxu0 0.0
    %1910 = vmatpush2.msra.mxu0 0.0
    %1911 = vmatprep.subr.mxu0 0.0
    %1912 = vmatpush2.msra.mxu0 0.0
    %1913 = vmatprep.subr.mxu0 0.0
    %1914 = vmatpush2.msra.mxu0 0.0
    %1915 = vmatprep.mubr.f32.mxu0 0.0
    %1916 = vmatmul.mubr.f32.gmra.mxu0 %v1846
    %v1917 = vpop.f32.mrf.mxu0
    %v1918 = vadd.f32 %v1843, %v1917
    %v1919 = vpop.f32.mrf.mxu0
    %1920 = vmatprep.mubr.f32.mxu0 0.0
    %1921 = vmatmul.mubr.f32.gmra.mxu0 %v1849
    %v1922 = vpop.f32.mrf.mxu0
    %v1923 = vadd.f32 %v1843, %v1922
    %v1924 = vpop.f32.mrf.mxu0
    %1925 = vdwg.mxu0
    %v1926 = vmul.f32 %v1918, 0.5
    %v1927 = vmul.f32 %v1923, 0.5
    %v1928 = vmul.f32 %v1918, 0.044715
    %v1929 = vmul.f32 %v1923, 0.044715
    %v1930 = vmul.f32 %v1928, %v1918
    %v1931 = vmul.f32 %v1929, %v1923
    %v1932 = vmul.f32 %v1930, %v1918
    %v1933 = vmul.f32 %v1931, %v1923
    %v1934 = vadd.f32 %v1918, %v1932
    %v1935 = vadd.f32 %v1923, %v1933
    %v1936 = vmul.f32 %v1934, 0.7978846
    %v1937 = vmul.f32 %v1935, 0.7978846
    %v1938 = vtanh.pop %v1936
    %v1939 = vtanh.pop %v1937
    %v1940 = vadd.f32 %v1938, 1.0
    %v1941 = vadd.f32 %v1939, 1.0
    %v1942 = vmul.f32 %v1926, %v1940
    %v1943 = vmul.f32 %v1927, %v1941
    %v1944 = vld [vmem:[%s14] sm:$0xff]
    %v1945 = vld [vmem:[%s14 + $0x8] sm:$0xff]
    %v1946 = vld [vmem:[%s14 + $0x10] sm:$0xff]
    %v1947 = vld [vmem:[%s14 + $0x18] sm:$0xff]
    %v1948 = vld [vmem:[%s14 + $0x20] sm:$0xff]
    %v1949 = vld [vmem:[%s14 + $0x28] sm:$0xff]
    %v1950 = vld [vmem:[%s14 + $0x30] sm:$0xff]
    %v1951 = vld [vmem:[%s14 + $0x38] sm:$0xff]
    %v1952 = vld [vmem:[%s15] sm:$0x1]
    %v1954 = vlaneseq
    %v1955 = vshrl.u32 %v1954, 7
    %v1956 = vsub.s32 0, %v1955
    %v1957 = vrot.slane %v1952, %v1956
    %vm1959 = vcmask 523264
    %v1961 = vsel %vm1959, %v1942, 0
    %v1964 = vsel %vm1959, %v1943, 0
    %1966 = vmatprep.subr.mxu0 0.0
    %1967 = vmatpush1.msra.mxu0 0.0
    %1968 = vmatprep.subr.mxu0 0.0
    %1969 = vmatpush1.msra.mxu0 0.0
    %1970 = vmatprep.subr.mxu0 0.0
    %1971 = vmatpush1.msra.mxu0 0.0
    %1972 = vmatprep.subr.mxu0 0.0
    %1973 = vmatpush1.msra.mxu0 0.0
    %1974 = vmatprep.subr.mxu0 0.0
    %1975 = vmatpush1.msra.mxu0 0.0
    %1976 = vmatprep.subr.mxu0 0.0
    %1977 = vmatpush1.msra.mxu0 0.0
    %1978 = vmatprep.subr.mxu0 0.0
    %1979 = vmatpush1.msra.mxu0 0.0
    %1980 = vmatprep.subr.mxu0 0.0
    %1981 = vmatpush1.msra.mxu0 0.0
    %1982 = vmatprep.subr.mxu0 0.0
    %1983 = vmatpush1.msra.mxu0 %v1951
    %1984 = vmatprep.subr.mxu0 0.0
    %1985 = vmatpush1.msra.mxu0 %v1950
    %1986 = vmatprep.subr.mxu0 0.0
    %1987 = vmatpush1.msra.mxu0 %v1949
    %1988 = vmatprep.subr.mxu0 0.0
    %1989 = vmatpush1.msra.mxu0 %v1948
    %1990 = vmatprep.subr.mxu0 0.0
    %1991 = vmatpush1.msra.mxu0 %v1947
    %1992 = vmatprep.subr.mxu0 0.0
    %1993 = vmatpush1.msra.mxu0 %v1946
    %1994 = vmatprep.subr.mxu0 0.0
    %1995 = vmatpush1.msra.mxu0 %v1945
    %1996 = vmatprep.subr.mxu0 0.0
    %1997 = vmatpush1.msra.mxu0 %v1944
    %1998 = vmatprep.subr.mxu0 0.0
    %1999 = vmatpush2.msra.mxu0 0.0
    %2000 = vmatprep.subr.mxu0 0.0
    %2001 = vmatpush2.msra.mxu0 0.0
    %2002 = vmatprep.subr.mxu0 0.0
    %2003 = vmatpush2.msra.mxu0 0.0
    %2004 = vmatprep.subr.mxu0 0.0
    %2005 = vmatpush2.msra.mxu0 0.0
    %2006 = vmatprep.subr.mxu0 0.0
    %2007 = vmatpush2.msra.mxu0 0.0
    %2008 = vmatprep.subr.mxu0 0.0
    %2009 = vmatpush2.msra.mxu0 0.0
    %2010 = vmatprep.subr.mxu0 0.0
    %2011 = vmatpush2.msra.mxu0 0.0
    %2012 = vmatprep.subr.mxu0 0.0
    %2013 = vmatpush2.msra.mxu0 0.0
    %2014 = vmatprep.subr.mxu0 0.0
    %2015 = vmatpush2.msra.mxu0 0.0
    %2016 = vmatprep.subr.mxu0 0.0
    %2017 = vmatpush2.msra.mxu0 0.0
    %2018 = vmatprep.subr.mxu0 0.0
    %2019 = vmatpush2.msra.mxu0 0.0
    %2020 = vmatprep.subr.mxu0 0.0
    %2021 = vmatpush2.msra.mxu0 0.0
    %2022 = vmatprep.subr.mxu0 0.0
    %2023 = vmatpush2.msra.mxu0 0.0
    %2024 = vmatprep.subr.mxu0 0.0
    %2025 = vmatpush2.msra.mxu0 0.0
    %2026 = vmatprep.subr.mxu0 0.0
    %2027 = vmatpush2.msra.mxu0 0.0
    %2028 = vmatprep.subr.mxu0 0.0
    %2029 = vmatpush2.msra.mxu0 0.0
    %2030 = vmatprep.mubr.f32.mxu0 0.0
    %2031 = vmatmul.mubr.f32.gmra.mxu0 %v1961
    %v2032 = vpop.f32.mrf.mxu0
    %v2033 = vadd.f32 %v1957, %v2032
    %v2034 = vpop.f32.mrf.mxu0
    %2035 = vmatprep.mubr.f32.mxu0 0.0
    %2036 = vmatmul.mubr.f32.gmra.mxu0 %v1964
    %v2037 = vpop.f32.mrf.mxu0
    %v2038 = vadd.f32 %v1957, %v2037
    %v2039 = vpop.f32.mrf.mxu0
    %2040 = vdwg.mxu0
    %v2041 = vadd.f32 %v2033, %v1832
    %v2042 = vadd.f32 %v2038, %v1833
    %v2043 = vld [vmem:[%s16] sm:$0x1]
    %v2044 = vld [vmem:[%s17] sm:$0x1]
    %v2045 = vsel %vm190, %v2041, 0.0
    %2046 = vadd.xlane.f32.xlu0 %v2045
    %v2047 = vpop.xlane.xlu0 %2046
    %v2048 = vsel %vm190, %v2042, 0.0
    %2049 = vadd.xlane.f32.xlu0 %v2048
    %v2050 = vpop.xlane.xlu0 %2049
    %v2051 = vmul.f32 %v2047, %v197
    %v2052 = vmul.f32 %v2050, %v197
    %v2053 = vsub.f32 %v2041, %v2051
    %v2054 = vsub.f32 %v2042, %v2052
    %v2055 = vmul.f32 %v2053, %v2053
    %v2056 = vmul.f32 %v2054, %v2054
    %v2057 = vsel %vm190, %v2055, 0.0
    %2058 = vadd.xlane.f32.xlu0 %v2057
    %v2059 = vpop.xlane.xlu0 %2058
    %v2060 = vsel %vm190, %v2056, 0.0
    %2061 = vadd.xlane.f32.xlu0 %v2060
    %v2062 = vpop.xlane.xlu0 %2061
    %v2063 = vmul.f32 %v2059, %v197
    %v2064 = vmul.f32 %v2062, %v197
    %v2065 = vadd.f32 %v2063, 1e-12
    %v2066 = vadd.f32 %v2064, 1e-12
    %v2067 = vrsqrt.pop %v2065
    %v2068 = vrsqrt.pop %v2066
    %v2069 = vmul.f32 %v2053, %v2067
    %v2070 = vmul.f32 %v2054, %v2068
    %v2072 = vlaneseq
    %v2073 = vshrl.u32 %v2072, 7
    %v2074 = vsub.s32 0, %v2073
    %v2075 = vrot.slane %v2043, %v2074
    %v2077 = vmul.f32 %v2069, %v2075
    %v2078 = vmul.f32 %v2070, %v2075
    %v2080 = vlaneseq
    %v2081 = vshrl.u32 %v2080, 7
    %v2082 = vsub.s32 0, %v2081
    %v2083 = vrot.slane %v2044, %v2082
    %v2085 = vadd.f32 %v2077, %v2083
    %v2086 = vadd.f32 %v2078, %v2083
    %s2087 = scalar_lea.vmem %s6, 32
    %v2088 = vld [vmem:[%s2087] sm:$0xff]
    %v2089 = vld [vmem:[%s2087 + $0x8] sm:$0xff]
    %v2090 = vld [vmem:[%s2087 + $0x10] sm:$0xff]
    %v2091 = vld [vmem:[%s2087 + $0x18] sm:$0xff]
    %s2092 = scalar_lea.vmem %s7, 1
    %v2093 = vld [vmem:[%s2092] sm:$0x1]
    %v2095 = vlaneseq
    %v2096 = vshrl.u32 %v2095, 7
    %v2097 = vsub.s32 0, %v2096
    %v2098 = vrot.slane %v2093, %v2097
    %v2101 = vsel %vm190, %v2085, 0
    %v2104 = vsel %vm190, %v2086, 0
    %2106 = vmatprep.subr.mxu0 0.0
    %2107 = vmatpush1.msra.mxu0 0.0
    %2108 = vmatprep.subr.mxu0 0.0
    %2109 = vmatpush1.msra.mxu0 0.0
    %2110 = vmatprep.subr.mxu0 0.0
    %2111 = vmatpush1.msra.mxu0 0.0
    %2112 = vmatprep.subr.mxu0 0.0
    %2113 = vmatpush1.msra.mxu0 0.0
    %2114 = vmatprep.subr.mxu0 0.0
    %2115 = vmatpush1.msra.mxu0 0.0
    %2116 = vmatprep.subr.mxu0 0.0
    %2117 = vmatpush1.msra.mxu0 0.0
    %2118 = vmatprep.subr.mxu0 0.0
    %2119 = vmatpush1.msra.mxu0 0.0
    %2120 = vmatprep.subr.mxu0 0.0
    %2121 = vmatpush1.msra.mxu0 0.0
    %2122 = vmatprep.subr.mxu0 0.0
    %2123 = vmatpush1.msra.mxu0 0.0
    %2124 = vmatprep.subr.mxu0 0.0
    %2125 = vmatpush1.msra.mxu0 0.0
    %2126 = vmatprep.subr.mxu0 0.0
    %2127 = vmatpush1.msra.mxu0 0.0
    %2128 = vmatprep.subr.mxu0 0.0
    %2129 = vmatpush1.msra.mxu0 0.0
    %2130 = vmatprep.subr.mxu0 0.0
    %2131 = vmatpush1.msra.mxu0 %v2091
    %2132 = vmatprep.subr.mxu0 0.0
    %2133 = vmatpush1.msra.mxu0 %v2090
    %2134 = vmatprep.subr.mxu0 0.0
    %2135 = vmatpush1.msra.mxu0 %v2089
    %2136 = vmatprep.subr.mxu0 0.0
    %2137 = vmatpush1.msra.mxu0 %v2088
    %2138 = vmatprep.subr.mxu0 0.0
    %2139 = vmatpush2.msra.mxu0 0.0
    %2140 = vmatprep.subr.mxu0 0.0
    %2141 = vmatpush2.msra.mxu0 0.0
    %2142 = vmatprep.subr.mxu0 0.0
    %2143 = vmatpush2.msra.mxu0 0.0
    %2144 = vmatprep.subr.mxu0 0.0
    %2145 = vmatpush2.msra.mxu0 0.0
    %2146 = vmatprep.subr.mxu0 0.0
    %2147 = vmatpush2.msra.mxu0 0.0
    %2148 = vmatprep.subr.mxu0 0.0
    %2149 = vmatpush2.msra.mxu0 0.0
    %2150 = vmatprep.subr.mxu0 0.0
    %2151 = vmatpush2.msra.mxu0 0.0
    %2152 = vmatprep.subr.mxu0 0.0
    %2153 = vmatpush2.msra.mxu0 0.0
    %2154 = vmatprep.subr.mxu0 0.0
    %2155 = vmatpush2.msra.mxu0 0.0
    %2156 = vmatprep.subr.mxu0 0.0
    %2157 = vmatpush2.msra.mxu0 0.0
    %2158 = vmatprep.subr.mxu0 0.0
    %2159 = vmatpush2.msra.mxu0 0.0
    %2160 = vmatprep.subr.mxu0 0.0
    %2161 = vmatpush2.msra.mxu0 0.0
    %2162 = vmatprep.subr.mxu0 0.0
    %2163 = vmatpush2.msra.mxu0 0.0
    %2164 = vmatprep.subr.mxu0 0.0
    %2165 = vmatpush2.msra.mxu0 0.0
    %2166 = vmatprep.subr.mxu0 0.0
    %2167 = vmatpush2.msra.mxu0 0.0
    %2168 = vmatprep.subr.mxu0 0.0
    %2169 = vmatpush2.msra.mxu0 0.0
    %2170 = vmatprep.mubr.f32.mxu0 0.0
    %2171 = vmatmul.mubr.f32.gmra.mxu0 %v2101
    %v2172 = vpop.f32.mrf.mxu0
    %v2173 = vadd.f32 %v2098, %v2172
    %v2174 = vpop.f32.mrf.mxu0
    %2175 = vmatprep.mubr.f32.mxu0 0.0
    %2176 = vmatmul.mubr.f32.gmra.mxu0 %v2104
    %v2177 = vpop.f32.mrf.mxu0
    %v2178 = vadd.f32 %v2098, %v2177
    %v2179 = vpop.f32.mrf.mxu0
    %2180 = vdwg.mxu0
    %2182 = vrot.lane.b32.xlu0 %v2173, 96
    %v2183 = vpop.permute.xlu0 %2182
    %v2184 = vsel %vm340, %v2173, 0
    %v2186 = vsel %vm340, %v2183, 0
    %2188 = vmatprep.subr.mxu0 0.0
    %2189 = vmatpush1.xpose.msra.mxu0 0.0
    %2190 = vmatprep.subr.mxu0 0.0
    %2191 = vmatpush1.xpose.msra.mxu0 0.0
    %2192 = vmatprep.subr.mxu0 0.0
    %2193 = vmatpush1.xpose.msra.mxu0 0.0
    %2194 = vmatprep.subr.mxu0 0.0
    %2195 = vmatpush1.xpose.msra.mxu0 0.0
    %2196 = vmatprep.subr.mxu0 0.0
    %2197 = vmatpush1.xpose.msra.mxu0 0.0
    %2198 = vmatprep.subr.mxu0 0.0
    %2199 = vmatpush1.xpose.msra.mxu0 0.0
    %2200 = vmatprep.subr.mxu0 0.0
    %2201 = vmatpush1.xpose.msra.mxu0 0.0
    %2202 = vmatprep.subr.mxu0 0.0
    %2203 = vmatpush1.xpose.msra.mxu0 0.0
    %2204 = vmatprep.subr.mxu0 0.0
    %2205 = vmatpush1.xpose.msra.mxu0 0.0
    %2206 = vmatprep.subr.mxu0 0.0
    %2207 = vmatpush1.xpose.msra.mxu0 0.0
    %2208 = vmatprep.subr.mxu0 0.0
    %2209 = vmatpush1.xpose.msra.mxu0 0.0
    %2210 = vmatprep.subr.mxu0 0.0
    %2211 = vmatpush1.xpose.msra.mxu0 0.0
    %2212 = vmatprep.subr.mxu0 0.0
    %2213 = vmatpush1.xpose.msra.mxu0 0.0
    %2214 = vmatprep.subr.mxu0 0.0
    %2215 = vmatpush1.xpose.msra.mxu0 0.0
    %2216 = vmatprep.subr.mxu0 0.0
    %2217 = vmatpush1.xpose.msra.mxu0 0.0
    %2218 = vmatprep.subr.mxu0 0.0
    %2219 = vmatpush1.xpose.msra.mxu0 %v2186
    %2220 = vmatprep.subr.mxu0 0.0
    %2221 = vmatpush2.xpose.msra.mxu0 0.0
    %2222 = vmatprep.subr.mxu0 0.0
    %2223 = vmatpush2.xpose.msra.mxu0 0.0
    %2224 = vmatprep.subr.mxu0 0.0
    %2225 = vmatpush2.xpose.msra.mxu0 0.0
    %2226 = vmatprep.subr.mxu0 0.0
    %2227 = vmatpush2.xpose.msra.mxu0 0.0
    %2228 = vmatprep.subr.mxu0 0.0
    %2229 = vmatpush2.xpose.msra.mxu0 0.0
    %2230 = vmatprep.subr.mxu0 0.0
    %2231 = vmatpush2.xpose.msra.mxu0 0.0
    %2232 = vmatprep.subr.mxu0 0.0
    %2233 = vmatpush2.xpose.msra.mxu0 0.0
    %2234 = vmatprep.subr.mxu0 0.0
    %2235 = vmatpush2.xpose.msra.mxu0 0.0
    %2236 = vmatprep.subr.mxu0 0.0
    %2237 = vmatpush2.xpose.msra.mxu0 0.0
    %2238 = vmatprep.subr.mxu0 0.0
    %2239 = vmatpush2.xpose.msra.mxu0 0.0
    %2240 = vmatprep.subr.mxu0 0.0
    %2241 = vmatpush2.xpose.msra.mxu0 0.0
    %2242 = vmatprep.subr.mxu0 0.0
    %2243 = vmatpush2.xpose.msra.mxu0 0.0
    %2244 = vmatprep.subr.mxu0 0.0
    %2245 = vmatpush2.xpose.msra.mxu0 0.0
    %2246 = vmatprep.subr.mxu0 0.0
    %2247 = vmatpush2.xpose.msra.mxu0 0.0
    %2248 = vmatprep.subr.mxu0 0.0
    %2249 = vmatpush2.xpose.msra.mxu0 0.0
    %2250 = vmatprep.subr.mxu0 0.0
    %2251 = vmatpush2.xpose.msra.mxu0 0.0
    %2252 = vmatprep.mubr.f32.mxu0 0.0
    %2253 = vmatmul.mubr.f32.gmra.mxu0 %v2184
    %v2254 = vpop.f32.mrf.mxu0
    %v2255 = vadd.f32 0.0, %v2254
    %v2256 = vpop.f32.mrf.mxu0
    %2257 = vdwg.mxu0
    %2258 = vrot.lane.b32.xlu0 %v2173, 120
    %v2259 = vpop.permute.xlu0 %2258
    %2260 = vrot.lane.b32.xlu0 %v2173, 88
    %v2261 = vpop.permute.xlu0 %2260
    %v2262 = vsel %vm340, %v2259, 0
    %v2264 = vsel %vm340, %v2261, 0
    %2266 = vmatprep.subr.mxu0 0.0
    %2267 = vmatpush1.xpose.msra.mxu0 0.0
    %2268 = vmatprep.subr.mxu0 0.0
    %2269 = vmatpush1.xpose.msra.mxu0 0.0
    %2270 = vmatprep.subr.mxu0 0.0
    %2271 = vmatpush1.xpose.msra.mxu0 0.0
    %2272 = vmatprep.subr.mxu0 0.0
    %2273 = vmatpush1.xpose.msra.mxu0 0.0
    %2274 = vmatprep.subr.mxu0 0.0
    %2275 = vmatpush1.xpose.msra.mxu0 0.0
    %2276 = vmatprep.subr.mxu0 0.0
    %2277 = vmatpush1.xpose.msra.mxu0 0.0
    %2278 = vmatprep.subr.mxu0 0.0
    %2279 = vmatpush1.xpose.msra.mxu0 0.0
    %2280 = vmatprep.subr.mxu0 0.0
    %2281 = vmatpush1.xpose.msra.mxu0 0.0
    %2282 = vmatprep.subr.mxu0 0.0
    %2283 = vmatpush1.xpose.msra.mxu0 0.0
    %2284 = vmatprep.subr.mxu0 0.0
    %2285 = vmatpush1.xpose.msra.mxu0 0.0
    %2286 = vmatprep.subr.mxu0 0.0
    %2287 = vmatpush1.xpose.msra.mxu0 0.0
    %2288 = vmatprep.subr.mxu0 0.0
    %2289 = vmatpush1.xpose.msra.mxu0 0.0
    %2290 = vmatprep.subr.mxu0 0.0
    %2291 = vmatpush1.xpose.msra.mxu0 0.0
    %2292 = vmatprep.subr.mxu0 0.0
    %2293 = vmatpush1.xpose.msra.mxu0 0.0
    %2294 = vmatprep.subr.mxu0 0.0
    %2295 = vmatpush1.xpose.msra.mxu0 0.0
    %2296 = vmatprep.subr.mxu0 0.0
    %2297 = vmatpush1.xpose.msra.mxu0 %v2264
    %2298 = vmatprep.subr.mxu0 0.0
    %2299 = vmatpush2.xpose.msra.mxu0 0.0
    %2300 = vmatprep.subr.mxu0 0.0
    %2301 = vmatpush2.xpose.msra.mxu0 0.0
    %2302 = vmatprep.subr.mxu0 0.0
    %2303 = vmatpush2.xpose.msra.mxu0 0.0
    %2304 = vmatprep.subr.mxu0 0.0
    %2305 = vmatpush2.xpose.msra.mxu0 0.0
    %2306 = vmatprep.subr.mxu0 0.0
    %2307 = vmatpush2.xpose.msra.mxu0 0.0
    %2308 = vmatprep.subr.mxu0 0.0
    %2309 = vmatpush2.xpose.msra.mxu0 0.0
    %2310 = vmatprep.subr.mxu0 0.0
    %2311 = vmatpush2.xpose.msra.mxu0 0.0
    %2312 = vmatprep.subr.mxu0 0.0
    %2313 = vmatpush2.xpose.msra.mxu0 0.0
    %2314 = vmatprep.subr.mxu0 0.0
    %2315 = vmatpush2.xpose.msra.mxu0 0.0
    %2316 = vmatprep.subr.mxu0 0.0
    %2317 = vmatpush2.xpose.msra.mxu0 0.0
    %2318 = vmatprep.subr.mxu0 0.0
    %2319 = vmatpush2.xpose.msra.mxu0 0.0
    %2320 = vmatprep.subr.mxu0 0.0
    %2321 = vmatpush2.xpose.msra.mxu0 0.0
    %2322 = vmatprep.subr.mxu0 0.0
    %2323 = vmatpush2.xpose.msra.mxu0 0.0
    %2324 = vmatprep.subr.mxu0 0.0
    %2325 = vmatpush2.xpose.msra.mxu0 0.0
    %2326 = vmatprep.subr.mxu0 0.0
    %2327 = vmatpush2.xpose.msra.mxu0 0.0
    %2328 = vmatprep.subr.mxu0 0.0
    %2329 = vmatpush2.xpose.msra.mxu0 0.0
    %2330 = vmatprep.mubr.f32.mxu0 0.0
    %2331 = vmatmul.mubr.f32.gmra.mxu0 %v2262
    %v2332 = vpop.f32.mrf.mxu0
    %v2333 = vadd.f32 0.0, %v2332
    %v2334 = vpop.f32.mrf.mxu0
    %2335 = vdwg.mxu0
    %2336 = vrot.lane.b32.xlu0 %v2173, 112
    %v2337 = vpop.permute.xlu0 %2336
    %2338 = vrot.lane.b32.xlu0 %v2173, 80
    %v2339 = vpop.permute.xlu0 %2338
    %v2340 = vsel %vm340, %v2337, 0
    %v2342 = vsel %vm340, %v2339, 0
    %2344 = vmatprep.subr.mxu0 0.0
    %2345 = vmatpush1.xpose.msra.mxu0 0.0
    %2346 = vmatprep.subr.mxu0 0.0
    %2347 = vmatpush1.xpose.msra.mxu0 0.0
    %2348 = vmatprep.subr.mxu0 0.0
    %2349 = vmatpush1.xpose.msra.mxu0 0.0
    %2350 = vmatprep.subr.mxu0 0.0
    %2351 = vmatpush1.xpose.msra.mxu0 0.0
    %2352 = vmatprep.subr.mxu0 0.0
    %2353 = vmatpush1.xpose.msra.mxu0 0.0
    %2354 = vmatprep.subr.mxu0 0.0
    %2355 = vmatpush1.xpose.msra.mxu0 0.0
    %2356 = vmatprep.subr.mxu0 0.0
    %2357 = vmatpush1.xpose.msra.mxu0 0.0
    %2358 = vmatprep.subr.mxu0 0.0
    %2359 = vmatpush1.xpose.msra.mxu0 0.0
    %2360 = vmatprep.subr.mxu0 0.0
    %2361 = vmatpush1.xpose.msra.mxu0 0.0
    %2362 = vmatprep.subr.mxu0 0.0
    %2363 = vmatpush1.xpose.msra.mxu0 0.0
    %2364 = vmatprep.subr.mxu0 0.0
    %2365 = vmatpush1.xpose.msra.mxu0 0.0
    %2366 = vmatprep.subr.mxu0 0.0
    %2367 = vmatpush1.xpose.msra.mxu0 0.0
    %2368 = vmatprep.subr.mxu0 0.0
    %2369 = vmatpush1.xpose.msra.mxu0 0.0
    %2370 = vmatprep.subr.mxu0 0.0
    %2371 = vmatpush1.xpose.msra.mxu0 0.0
    %2372 = vmatprep.subr.mxu0 0.0
    %2373 = vmatpush1.xpose.msra.mxu0 0.0
    %2374 = vmatprep.subr.mxu0 0.0
    %2375 = vmatpush1.xpose.msra.mxu0 %v2342
    %2376 = vmatprep.subr.mxu0 0.0
    %2377 = vmatpush2.xpose.msra.mxu0 0.0
    %2378 = vmatprep.subr.mxu0 0.0
    %2379 = vmatpush2.xpose.msra.mxu0 0.0
    %2380 = vmatprep.subr.mxu0 0.0
    %2381 = vmatpush2.xpose.msra.mxu0 0.0
    %2382 = vmatprep.subr.mxu0 0.0
    %2383 = vmatpush2.xpose.msra.mxu0 0.0
    %2384 = vmatprep.subr.mxu0 0.0
    %2385 = vmatpush2.xpose.msra.mxu0 0.0
    %2386 = vmatprep.subr.mxu0 0.0
    %2387 = vmatpush2.xpose.msra.mxu0 0.0
    %2388 = vmatprep.subr.mxu0 0.0
    %2389 = vmatpush2.xpose.msra.mxu0 0.0
    %2390 = vmatprep.subr.mxu0 0.0
    %2391 = vmatpush2.xpose.msra.mxu0 0.0
    %2392 = vmatprep.subr.mxu0 0.0
    %2393 = vmatpush2.xpose.msra.mxu0 0.0
    %2394 = vmatprep.subr.mxu0 0.0
    %2395 = vmatpush2.xpose.msra.mxu0 0.0
    %2396 = vmatprep.subr.mxu0 0.0
    %2397 = vmatpush2.xpose.msra.mxu0 0.0
    %2398 = vmatprep.subr.mxu0 0.0
    %2399 = vmatpush2.xpose.msra.mxu0 0.0
    %2400 = vmatprep.subr.mxu0 0.0
    %2401 = vmatpush2.xpose.msra.mxu0 0.0
    %2402 = vmatprep.subr.mxu0 0.0
    %2403 = vmatpush2.xpose.msra.mxu0 0.0
    %2404 = vmatprep.subr.mxu0 0.0
    %2405 = vmatpush2.xpose.msra.mxu0 0.0
    %2406 = vmatprep.subr.mxu0 0.0
    %2407 = vmatpush2.xpose.msra.mxu0 0.0
    %2408 = vmatprep.mubr.f32.mxu0 0.0
    %2409 = vmatmul.mubr.f32.gmra.mxu0 %v2340
    %v2410 = vpop.f32.mrf.mxu0
    %v2411 = vadd.f32 0.0, %v2410
    %v2412 = vpop.f32.mrf.mxu0
    %2413 = vdwg.mxu0
    %2414 = vrot.lane.b32.xlu0 %v2173, 104
    %v2415 = vpop.permute.xlu0 %2414
    %2416 = vrot.lane.b32.xlu0 %v2173, 72
    %v2417 = vpop.permute.xlu0 %2416
    %v2418 = vsel %vm340, %v2415, 0
    %v2420 = vsel %vm340, %v2417, 0
    %2422 = vmatprep.subr.mxu0 0.0
    %2423 = vmatpush1.xpose.msra.mxu0 0.0
    %2424 = vmatprep.subr.mxu0 0.0
    %2425 = vmatpush1.xpose.msra.mxu0 0.0
    %2426 = vmatprep.subr.mxu0 0.0
    %2427 = vmatpush1.xpose.msra.mxu0 0.0
    %2428 = vmatprep.subr.mxu0 0.0
    %2429 = vmatpush1.xpose.msra.mxu0 0.0
    %2430 = vmatprep.subr.mxu0 0.0
    %2431 = vmatpush1.xpose.msra.mxu0 0.0
    %2432 = vmatprep.subr.mxu0 0.0
    %2433 = vmatpush1.xpose.msra.mxu0 0.0
    %2434 = vmatprep.subr.mxu0 0.0
    %2435 = vmatpush1.xpose.msra.mxu0 0.0
    %2436 = vmatprep.subr.mxu0 0.0
    %2437 = vmatpush1.xpose.msra.mxu0 0.0
    %2438 = vmatprep.subr.mxu0 0.0
    %2439 = vmatpush1.xpose.msra.mxu0 0.0
    %2440 = vmatprep.subr.mxu0 0.0
    %2441 = vmatpush1.xpose.msra.mxu0 0.0
    %2442 = vmatprep.subr.mxu0 0.0
    %2443 = vmatpush1.xpose.msra.mxu0 0.0
    %2444 = vmatprep.subr.mxu0 0.0
    %2445 = vmatpush1.xpose.msra.mxu0 0.0
    %2446 = vmatprep.subr.mxu0 0.0
    %2447 = vmatpush1.xpose.msra.mxu0 0.0
    %2448 = vmatprep.subr.mxu0 0.0
    %2449 = vmatpush1.xpose.msra.mxu0 0.0
    %2450 = vmatprep.subr.mxu0 0.0
    %2451 = vmatpush1.xpose.msra.mxu0 0.0
    %2452 = vmatprep.subr.mxu0 0.0
    %2453 = vmatpush1.xpose.msra.mxu0 %v2420
    %2454 = vmatprep.subr.mxu0 0.0
    %2455 = vmatpush2.xpose.msra.mxu0 0.0
    %2456 = vmatprep.subr.mxu0 0.0
    %2457 = vmatpush2.xpose.msra.mxu0 0.0
    %2458 = vmatprep.subr.mxu0 0.0
    %2459 = vmatpush2.xpose.msra.mxu0 0.0
    %2460 = vmatprep.subr.mxu0 0.0
    %2461 = vmatpush2.xpose.msra.mxu0 0.0
    %2462 = vmatprep.subr.mxu0 0.0
    %2463 = vmatpush2.xpose.msra.mxu0 0.0
    %2464 = vmatprep.subr.mxu0 0.0
    %2465 = vmatpush2.xpose.msra.mxu0 0.0
    %2466 = vmatprep.subr.mxu0 0.0
    %2467 = vmatpush2.xpose.msra.mxu0 0.0
    %2468 = vmatprep.subr.mxu0 0.0
    %2469 = vmatpush2.xpose.msra.mxu0 0.0
    %2470 = vmatprep.subr.mxu0 0.0
    %2471 = vmatpush2.xpose.msra.mxu0 0.0
    %2472 = vmatprep.subr.mxu0 0.0
    %2473 = vmatpush2.xpose.msra.mxu0 0.0
    %2474 = vmatprep.subr.mxu0 0.0
    %2475 = vmatpush2.xpose.msra.mxu0 0.0
    %2476 = vmatprep.subr.mxu0 0.0
    %2477 = vmatpush2.xpose.msra.mxu0 0.0
    %2478 = vmatprep.subr.mxu0 0.0
    %2479 = vmatpush2.xpose.msra.mxu0 0.0
    %2480 = vmatprep.subr.mxu0 0.0
    %2481 = vmatpush2.xpose.msra.mxu0 0.0
    %2482 = vmatprep.subr.mxu0 0.0
    %2483 = vmatpush2.xpose.msra.mxu0 0.0
    %2484 = vmatprep.subr.mxu0 0.0
    %2485 = vmatpush2.xpose.msra.mxu0 0.0
    %2486 = vmatprep.mubr.f32.mxu0 0.0
    %2487 = vmatmul.mubr.f32.gmra.mxu0 %v2418
    %v2488 = vpop.f32.mrf.mxu0
    %v2489 = vadd.f32 0.0, %v2488
    %v2490 = vpop.f32.mrf.mxu0
    %2491 = vdwg.mxu0
    %2493 = vrot.lane.b32.xlu0 %v2178, 96
    %v2494 = vpop.permute.xlu0 %2493
    %v2495 = vsel %vm340, %v2178, 0
    %v2497 = vsel %vm340, %v2494, 0
    %2499 = vmatprep.subr.mxu0 0.0
    %2500 = vmatpush1.xpose.msra.mxu0 0.0
    %2501 = vmatprep.subr.mxu0 0.0
    %2502 = vmatpush1.xpose.msra.mxu0 0.0
    %2503 = vmatprep.subr.mxu0 0.0
    %2504 = vmatpush1.xpose.msra.mxu0 0.0
    %2505 = vmatprep.subr.mxu0 0.0
    %2506 = vmatpush1.xpose.msra.mxu0 0.0
    %2507 = vmatprep.subr.mxu0 0.0
    %2508 = vmatpush1.xpose.msra.mxu0 0.0
    %2509 = vmatprep.subr.mxu0 0.0
    %2510 = vmatpush1.xpose.msra.mxu0 0.0
    %2511 = vmatprep.subr.mxu0 0.0
    %2512 = vmatpush1.xpose.msra.mxu0 0.0
    %2513 = vmatprep.subr.mxu0 0.0
    %2514 = vmatpush1.xpose.msra.mxu0 0.0
    %2515 = vmatprep.subr.mxu0 0.0
    %2516 = vmatpush1.xpose.msra.mxu0 0.0
    %2517 = vmatprep.subr.mxu0 0.0
    %2518 = vmatpush1.xpose.msra.mxu0 0.0
    %2519 = vmatprep.subr.mxu0 0.0
    %2520 = vmatpush1.xpose.msra.mxu0 0.0
    %2521 = vmatprep.subr.mxu0 0.0
    %2522 = vmatpush1.xpose.msra.mxu0 0.0
    %2523 = vmatprep.subr.mxu0 0.0
    %2524 = vmatpush1.xpose.msra.mxu0 0.0
    %2525 = vmatprep.subr.mxu0 0.0
    %2526 = vmatpush1.xpose.msra.mxu0 0.0
    %2527 = vmatprep.subr.mxu0 0.0
    %2528 = vmatpush1.xpose.msra.mxu0 0.0
    %2529 = vmatprep.subr.mxu0 0.0
    %2530 = vmatpush1.xpose.msra.mxu0 %v2497
    %2531 = vmatprep.subr.mxu0 0.0
    %2532 = vmatpush2.xpose.msra.mxu0 0.0
    %2533 = vmatprep.subr.mxu0 0.0
    %2534 = vmatpush2.xpose.msra.mxu0 0.0
    %2535 = vmatprep.subr.mxu0 0.0
    %2536 = vmatpush2.xpose.msra.mxu0 0.0
    %2537 = vmatprep.subr.mxu0 0.0
    %2538 = vmatpush2.xpose.msra.mxu0 0.0
    %2539 = vmatprep.subr.mxu0 0.0
    %2540 = vmatpush2.xpose.msra.mxu0 0.0
    %2541 = vmatprep.subr.mxu0 0.0
    %2542 = vmatpush2.xpose.msra.mxu0 0.0
    %2543 = vmatprep.subr.mxu0 0.0
    %2544 = vmatpush2.xpose.msra.mxu0 0.0
    %2545 = vmatprep.subr.mxu0 0.0
    %2546 = vmatpush2.xpose.msra.mxu0 0.0
    %2547 = vmatprep.subr.mxu0 0.0
    %2548 = vmatpush2.xpose.msra.mxu0 0.0
    %2549 = vmatprep.subr.mxu0 0.0
    %2550 = vmatpush2.xpose.msra.mxu0 0.0
    %2551 = vmatprep.subr.mxu0 0.0
    %2552 = vmatpush2.xpose.msra.mxu0 0.0
    %2553 = vmatprep.subr.mxu0 0.0
    %2554 = vmatpush2.xpose.msra.mxu0 0.0
    %2555 = vmatprep.subr.mxu0 0.0
    %2556 = vmatpush2.xpose.msra.mxu0 0.0
    %2557 = vmatprep.subr.mxu0 0.0
    %2558 = vmatpush2.xpose.msra.mxu0 0.0
    %2559 = vmatprep.subr.mxu0 0.0
    %2560 = vmatpush2.xpose.msra.mxu0 0.0
    %2561 = vmatprep.subr.mxu0 0.0
    %2562 = vmatpush2.xpose.msra.mxu0 0.0
    %2563 = vmatprep.mubr.f32.mxu0 0.0
    %2564 = vmatmul.mubr.f32.gmra.mxu0 %v2495
    %v2565 = vpop.f32.mrf.mxu0
    %v2566 = vadd.f32 0.0, %v2565
    %v2567 = vpop.f32.mrf.mxu0
    %2568 = vdwg.mxu0
    %2569 = vrot.lane.b32.xlu0 %v2178, 120
    %v2570 = vpop.permute.xlu0 %2569
    %2571 = vrot.lane.b32.xlu0 %v2178, 88
    %v2572 = vpop.permute.xlu0 %2571
    %v2573 = vsel %vm340, %v2570, 0
    %v2575 = vsel %vm340, %v2572, 0
    %2577 = vmatprep.subr.mxu0 0.0
    %2578 = vmatpush1.xpose.msra.mxu0 0.0
    %2579 = vmatprep.subr.mxu0 0.0
    %2580 = vmatpush1.xpose.msra.mxu0 0.0
    %2581 = vmatprep.subr.mxu0 0.0
    %2582 = vmatpush1.xpose.msra.mxu0 0.0
    %2583 = vmatprep.subr.mxu0 0.0
    %2584 = vmatpush1.xpose.msra.mxu0 0.0
    %2585 = vmatprep.subr.mxu0 0.0
    %2586 = vmatpush1.xpose.msra.mxu0 0.0
    %2587 = vmatprep.subr.mxu0 0.0
    %2588 = vmatpush1.xpose.msra.mxu0 0.0
    %2589 = vmatprep.subr.mxu0 0.0
    %2590 = vmatpush1.xpose.msra.mxu0 0.0
    %2591 = vmatprep.subr.mxu0 0.0
    %2592 = vmatpush1.xpose.msra.mxu0 0.0
    %2593 = vmatprep.subr.mxu0 0.0
    %2594 = vmatpush1.xpose.msra.mxu0 0.0
    %2595 = vmatprep.subr.mxu0 0.0
    %2596 = vmatpush1.xpose.msra.mxu0 0.0
    %2597 = vmatprep.subr.mxu0 0.0
    %2598 = vmatpush1.xpose.msra.mxu0 0.0
    %2599 = vmatprep.subr.mxu0 0.0
    %2600 = vmatpush1.xpose.msra.mxu0 0.0
    %2601 = vmatprep.subr.mxu0 0.0
    %2602 = vmatpush1.xpose.msra.mxu0 0.0
    %2603 = vmatprep.subr.mxu0 0.0
    %2604 = vmatpush1.xpose.msra.mxu0 0.0
    %2605 = vmatprep.subr.mxu0 0.0
    %2606 = vmatpush1.xpose.msra.mxu0 0.0
    %2607 = vmatprep.subr.mxu0 0.0
    %2608 = vmatpush1.xpose.msra.mxu0 %v2575
    %2609 = vmatprep.subr.mxu0 0.0
    %2610 = vmatpush2.xpose.msra.mxu0 0.0
    %2611 = vmatprep.subr.mxu0 0.0
    %2612 = vmatpush2.xpose.msra.mxu0 0.0
    %2613 = vmatprep.subr.mxu0 0.0
    %2614 = vmatpush2.xpose.msra.mxu0 0.0
    %2615 = vmatprep.subr.mxu0 0.0
    %2616 = vmatpush2.xpose.msra.mxu0 0.0
    %2617 = vmatprep.subr.mxu0 0.0
    %2618 = vmatpush2.xpose.msra.mxu0 0.0
    %2619 = vmatprep.subr.mxu0 0.0
    %2620 = vmatpush2.xpose.msra.mxu0 0.0
    %2621 = vmatprep.subr.mxu0 0.0
    %2622 = vmatpush2.xpose.msra.mxu0 0.0
    %2623 = vmatprep.subr.mxu0 0.0
    %2624 = vmatpush2.xpose.msra.mxu0 0.0
    %2625 = vmatprep.subr.mxu0 0.0
    %2626 = vmatpush2.xpose.msra.mxu0 0.0
    %2627 = vmatprep.subr.mxu0 0.0
    %2628 = vmatpush2.xpose.msra.mxu0 0.0
    %2629 = vmatprep.subr.mxu0 0.0
    %2630 = vmatpush2.xpose.msra.mxu0 0.0
    %2631 = vmatprep.subr.mxu0 0.0
    %2632 = vmatpush2.xpose.msra.mxu0 0.0
    %2633 = vmatprep.subr.mxu0 0.0
    %2634 = vmatpush2.xpose.msra.mxu0 0.0
    %2635 = vmatprep.subr.mxu0 0.0
    %2636 = vmatpush2.xpose.msra.mxu0 0.0
    %2637 = vmatprep.subr.mxu0 0.0
    %2638 = vmatpush2.xpose.msra.mxu0 0.0
    %2639 = vmatprep.subr.mxu0 0.0
    %2640 = vmatpush2.xpose.msra.mxu0 0.0
    %2641 = vmatprep.mubr.f32.mxu0 0.0
    %2642 = vmatmul.mubr.f32.gmra.mxu0 %v2573
    %v2643 = vpop.f32.mrf.mxu0
    %v2644 = vadd.f32 0.0, %v2643
    %v2645 = vpop.f32.mrf.mxu0
    %2646 = vdwg.mxu0
    %2647 = vrot.lane.b32.xlu0 %v2178, 112
    %v2648 = vpop.permute.xlu0 %2647
    %2649 = vrot.lane.b32.xlu0 %v2178, 80
    %v2650 = vpop.permute.xlu0 %2649
    %v2651 = vsel %vm340, %v2648, 0
    %v2653 = vsel %vm340, %v2650, 0
    %2655 = vmatprep.subr.mxu0 0.0
    %2656 = vmatpush1.xpose.msra.mxu0 0.0
    %2657 = vmatprep.subr.mxu0 0.0
    %2658 = vmatpush1.xpose.msra.mxu0 0.0
    %2659 = vmatprep.subr.mxu0 0.0
    %2660 = vmatpush1.xpose.msra.mxu0 0.0
    %2661 = vmatprep.subr.mxu0 0.0
    %2662 = vmatpush1.xpose.msra.mxu0 0.0
    %2663 = vmatprep.subr.mxu0 0.0
    %2664 = vmatpush1.xpose.msra.mxu0 0.0
    %2665 = vmatprep.subr.mxu0 0.0
    %2666 = vmatpush1.xpose.msra.mxu0 0.0
    %2667 = vmatprep.subr.mxu0 0.0
    %2668 = vmatpush1.xpose.msra.mxu0 0.0
    %2669 = vmatprep.subr.mxu0 0.0
    %2670 = vmatpush1.xpose.msra.mxu0 0.0
    %2671 = vmatprep.subr.mxu0 0.0
    %2672 = vmatpush1.xpose.msra.mxu0 0.0
    %2673 = vmatprep.subr.mxu0 0.0
    %2674 = vmatpush1.xpose.msra.mxu0 0.0
    %2675 = vmatprep.subr.mxu0 0.0
    %2676 = vmatpush1.xpose.msra.mxu0 0.0
    %2677 = vmatprep.subr.mxu0 0.0
    %2678 = vmatpush1.xpose.msra.mxu0 0.0
    %2679 = vmatprep.subr.mxu0 0.0
    %2680 = vmatpush1.xpose.msra.mxu0 0.0
    %2681 = vmatprep.subr.mxu0 0.0
    %2682 = vmatpush1.xpose.msra.mxu0 0.0
    %2683 = vmatprep.subr.mxu0 0.0
    %2684 = vmatpush1.xpose.msra.mxu0 0.0
    %2685 = vmatprep.subr.mxu0 0.0
    %2686 = vmatpush1.xpose.msra.mxu0 %v2653
    %2687 = vmatprep.subr.mxu0 0.0
    %2688 = vmatpush2.xpose.msra.mxu0 0.0
    %2689 = vmatprep.subr.mxu0 0.0
    %2690 = vmatpush2.xpose.msra.mxu0 0.0
    %2691 = vmatprep.subr.mxu0 0.0
    %2692 = vmatpush2.xpose.msra.mxu0 0.0
    %2693 = vmatprep.subr.mxu0 0.0
    %2694 = vmatpush2.xpose.msra.mxu0 0.0
    %2695 = vmatprep.subr.mxu0 0.0
    %2696 = vmatpush2.xpose.msra.mxu0 0.0
    %2697 = vmatprep.subr.mxu0 0.0
    %2698 = vmatpush2.xpose.msra.mxu0 0.0
    %2699 = vmatprep.subr.mxu0 0.0
    %2700 = vmatpush2.xpose.msra.mxu0 0.0
    %2701 = vmatprep.subr.mxu0 0.0
    %2702 = vmatpush2.xpose.msra.mxu0 0.0
    %2703 = vmatprep.subr.mxu0 0.0
    %2704 = vmatpush2.xpose.msra.mxu0 0.0
    %2705 = vmatprep.subr.mxu0 0.0
    %2706 = vmatpush2.xpose.msra.mxu0 0.0
    %2707 = vmatprep.subr.mxu0 0.0
    %2708 = vmatpush2.xpose.msra.mxu0 0.0
    %2709 = vmatprep.subr.mxu0 0.0
    %2710 = vmatpush2.xpose.msra.mxu0 0.0
    %2711 = vmatprep.subr.mxu0 0.0
    %2712 = vmatpush2.xpose.msra.mxu0 0.0
    %2713 = vmatprep.subr.mxu0 0.0
    %2714 = vmatpush2.xpose.msra.mxu0 0.0
    %2715 = vmatprep.subr.mxu0 0.0
    %2716 = vmatpush2.xpose.msra.mxu0 0.0
    %2717 = vmatprep.subr.mxu0 0.0
    %2718 = vmatpush2.xpose.msra.mxu0 0.0
    %2719 = vmatprep.mubr.f32.mxu0 0.0
    %2720 = vmatmul.mubr.f32.gmra.mxu0 %v2651
    %v2721 = vpop.f32.mrf.mxu0
    %v2722 = vadd.f32 0.0, %v2721
    %v2723 = vpop.f32.mrf.mxu0
    %2724 = vdwg.mxu0
    %2725 = vrot.lane.b32.xlu0 %v2178, 104
    %v2726 = vpop.permute.xlu0 %2725
    %2727 = vrot.lane.b32.xlu0 %v2178, 72
    %v2728 = vpop.permute.xlu0 %2727
    %v2729 = vsel %vm340, %v2726, 0
    %v2731 = vsel %vm340, %v2728, 0
    %2733 = vmatprep.subr.mxu0 0.0
    %2734 = vmatpush1.xpose.msra.mxu0 0.0
    %2735 = vmatprep.subr.mxu0 0.0
    %2736 = vmatpush1.xpose.msra.mxu0 0.0
    %2737 = vmatprep.subr.mxu0 0.0
    %2738 = vmatpush1.xpose.msra.mxu0 0.0
    %2739 = vmatprep.subr.mxu0 0.0
    %2740 = vmatpush1.xpose.msra.mxu0 0.0
    %2741 = vmatprep.subr.mxu0 0.0
    %2742 = vmatpush1.xpose.msra.mxu0 0.0
    %2743 = vmatprep.subr.mxu0 0.0
    %2744 = vmatpush1.xpose.msra.mxu0 0.0
    %2745 = vmatprep.subr.mxu0 0.0
    %2746 = vmatpush1.xpose.msra.mxu0 0.0
    %2747 = vmatprep.subr.mxu0 0.0
    %2748 = vmatpush1.xpose.msra.mxu0 0.0
    %2749 = vmatprep.subr.mxu0 0.0
    %2750 = vmatpush1.xpose.msra.mxu0 0.0
    %2751 = vmatprep.subr.mxu0 0.0
    %2752 = vmatpush1.xpose.msra.mxu0 0.0
    %2753 = vmatprep.subr.mxu0 0.0
    %2754 = vmatpush1.xpose.msra.mxu0 0.0
    %2755 = vmatprep.subr.mxu0 0.0
    %2756 = vmatpush1.xpose.msra.mxu0 0.0
    %2757 = vmatprep.subr.mxu0 0.0
    %2758 = vmatpush1.xpose.msra.mxu0 0.0
    %2759 = vmatprep.subr.mxu0 0.0
    %2760 = vmatpush1.xpose.msra.mxu0 0.0
    %2761 = vmatprep.subr.mxu0 0.0
    %2762 = vmatpush1.xpose.msra.mxu0 0.0
    %2763 = vmatprep.subr.mxu0 0.0
    %2764 = vmatpush1.xpose.msra.mxu0 %v2731
    %2765 = vmatprep.subr.mxu0 0.0
    %2766 = vmatpush2.xpose.msra.mxu0 0.0
    %2767 = vmatprep.subr.mxu0 0.0
    %2768 = vmatpush2.xpose.msra.mxu0 0.0
    %2769 = vmatprep.subr.mxu0 0.0
    %2770 = vmatpush2.xpose.msra.mxu0 0.0
    %2771 = vmatprep.subr.mxu0 0.0
    %2772 = vmatpush2.xpose.msra.mxu0 0.0
    %2773 = vmatprep.subr.mxu0 0.0
    %2774 = vmatpush2.xpose.msra.mxu0 0.0
    %2775 = vmatprep.subr.mxu0 0.0
    %2776 = vmatpush2.xpose.msra.mxu0 0.0
    %2777 = vmatprep.subr.mxu0 0.0
    %2778 = vmatpush2.xpose.msra.mxu0 0.0
    %2779 = vmatprep.subr.mxu0 0.0
    %2780 = vmatpush2.xpose.msra.mxu0 0.0
    %2781 = vmatprep.subr.mxu0 0.0
    %2782 = vmatpush2.xpose.msra.mxu0 0.0
    %2783 = vmatprep.subr.mxu0 0.0
    %2784 = vmatpush2.xpose.msra.mxu0 0.0
    %2785 = vmatprep.subr.mxu0 0.0
    %2786 = vmatpush2.xpose.msra.mxu0 0.0
    %2787 = vmatprep.subr.mxu0 0.0
    %2788 = vmatpush2.xpose.msra.mxu0 0.0
    %2789 = vmatprep.subr.mxu0 0.0
    %2790 = vmatpush2.xpose.msra.mxu0 0.0
    %2791 = vmatprep.subr.mxu0 0.0
    %2792 = vmatpush2.xpose.msra.mxu0 0.0
    %2793 = vmatprep.subr.mxu0 0.0
    %2794 = vmatpush2.xpose.msra.mxu0 0.0
    %2795 = vmatprep.subr.mxu0 0.0
    %2796 = vmatpush2.xpose.msra.mxu0 0.0
    %2797 = vmatprep.mubr.f32.mxu0 0.0
    %2798 = vmatmul.mubr.f32.gmra.mxu0 %v2729
    %v2799 = vpop.f32.mrf.mxu0
    %v2800 = vadd.f32 0.0, %v2799
    %v2801 = vpop.f32.mrf.mxu0
    %2802 = vdwg.mxu0
    %v2803 = vadd.f32 %v2255, %v240
    %v2804 = vadd.f32 %v2333, %v240
    %v2805 = vadd.f32 %v2411, %v240
    %v2806 = vadd.f32 %v2489, %v240
    %v2807 = vadd.f32 %v2566, %v244
    %v2808 = vadd.f32 %v2644, %v244
    %v2809 = vadd.f32 %v2722, %v244
    %v2810 = vadd.f32 %v2800, %v244
    %v2811 = vsel %vm340, %v2803, -inf
    %2812 = vmax.xlane.f32.xlu0 %v2811
    %v2813 = vpop.xlane.xlu0 %2812
    %v2814 = vsel %vm340, %v2804, -inf
    %2815 = vmax.xlane.f32.xlu0 %v2814
    %v2816 = vpop.xlane.xlu0 %2815
    %v2817 = vsel %vm340, %v2805, -inf
    %2818 = vmax.xlane.f32.xlu0 %v2817
    %v2819 = vpop.xlane.xlu0 %2818
    %v2820 = vsel %vm340, %v2806, -inf
    %2821 = vmax.xlane.f32.xlu0 %v2820
    %v2822 = vpop.xlane.xlu0 %2821
    %v2823 = vsel %vm340, %v2807, -inf
    %2824 = vmax.xlane.f32.xlu0 %v2823
    %v2825 = vpop.xlane.xlu0 %2824
    %v2826 = vsel %vm340, %v2808, -inf
    %2827 = vmax.xlane.f32.xlu0 %v2826
    %v2828 = vpop.xlane.xlu0 %2827
    %v2829 = vsel %vm340, %v2809, -inf
    %2830 = vmax.xlane.f32.xlu0 %v2829
    %v2831 = vpop.xlane.xlu0 %2830
    %v2832 = vsel %vm340, %v2810, -inf
    %2833 = vmax.xlane.f32.xlu0 %v2832
    %v2834 = vpop.xlane.xlu0 %2833
    %v2835 = vsub.f32 %v2803, %v2813
    %v2836 = vsub.f32 %v2804, %v2816
    %v2837 = vsub.f32 %v2805, %v2819
    %v2838 = vsub.f32 %v2806, %v2822
    %v2839 = vsub.f32 %v2807, %v2825
    %v2840 = vsub.f32 %v2808, %v2828
    %v2841 = vsub.f32 %v2809, %v2831
    %v2842 = vsub.f32 %v2810, %v2834
    %v2843 = vmul.f32 %v2835, 1.442695
    %v2844 = vpow.pop %v2843
    %v2845 = vmul.f32 %v2836, 1.442695
    %v2846 = vpow.pop %v2845
    %v2847 = vmul.f32 %v2837, 1.442695
    %v2848 = vpow.pop %v2847
    %v2849 = vmul.f32 %v2838, 1.442695
    %v2850 = vpow.pop %v2849
    %v2851 = vmul.f32 %v2839, 1.442695
    %v2852 = vpow.pop %v2851
    %v2853 = vmul.f32 %v2840, 1.442695
    %v2854 = vpow.pop %v2853
    %v2855 = vmul.f32 %v2841, 1.442695
    %v2856 = vpow.pop %v2855
    %v2857 = vmul.f32 %v2842, 1.442695
    %v2858 = vpow.pop %v2857
    %v2859 = vsel %vm340, %v2844, 0.0
    %2860 = vadd.xlane.f32.xlu0 %v2859
    %v2861 = vpop.xlane.xlu0 %2860
    %v2862 = vsel %vm340, %v2846, 0.0
    %2863 = vadd.xlane.f32.xlu0 %v2862
    %v2864 = vpop.xlane.xlu0 %2863
    %v2865 = vsel %vm340, %v2848, 0.0
    %2866 = vadd.xlane.f32.xlu0 %v2865
    %v2867 = vpop.xlane.xlu0 %2866
    %v2868 = vsel %vm340, %v2850, 0.0
    %2869 = vadd.xlane.f32.xlu0 %v2868
    %v2870 = vpop.xlane.xlu0 %2869
    %v2871 = vsel %vm340, %v2852, 0.0
    %2872 = vadd.xlane.f32.xlu0 %v2871
    %v2873 = vpop.xlane.xlu0 %2872
    %v2874 = vsel %vm340, %v2854, 0.0
    %2875 = vadd.xlane.f32.xlu0 %v2874
    %v2876 = vpop.xlane.xlu0 %2875
    %v2877 = vsel %vm340, %v2856, 0.0
    %2878 = vadd.xlane.f32.xlu0 %v2877
    %v2879 = vpop.xlane.xlu0 %2878
    %v2880 = vsel %vm340, %v2858, 0.0
    %2881 = vadd.xlane.f32.xlu0 %v2880
    %v2882 = vpop.xlane.xlu0 %2881
    %v2883 = vrcp.pop %v2861
    %v2884 = vrcp.pop %v2864
    %v2885 = vrcp.pop %v2867
    %v2886 = vrcp.pop %v2870
    %v2887 = vrcp.pop %v2873
    %v2888 = vrcp.pop %v2876
    %v2889 = vrcp.pop %v2879
    %v2890 = vrcp.pop %v2882
    %v2891 = vmul.f32 %v2844, %v2883
    %v2892 = vmul.f32 %v2846, %v2884
    %v2893 = vmul.f32 %v2848, %v2885
    %v2894 = vmul.f32 %v2850, %v2886
    %v2895 = vmul.f32 %v2852, %v2887
    %v2896 = vmul.f32 %v2854, %v2888
    %v2897 = vmul.f32 %v2856, %v2889
    %v2898 = vmul.f32 %v2858, %v2890
    %2899 = vrot.lane.b32.xlu0 %v2173, 64
    %v2900 = vpop.permute.xlu0 %2899
    %v2903 = vsel %vm340, %v2891, 0
    %2905 = vmatprep.subr.mxu0 0.0
    %2906 = vmatpush1.msra.mxu0 0.0
    %2907 = vmatprep.subr.mxu0 0.0
    %2908 = vmatpush1.msra.mxu0 0.0
    %2909 = vmatprep.subr.mxu0 0.0
    %2910 = vmatpush1.msra.mxu0 0.0
    %2911 = vmatprep.subr.mxu0 0.0
    %2912 = vmatpush1.msra.mxu0 0.0
    %2913 = vmatprep.subr.mxu0 0.0
    %2914 = vmatpush1.msra.mxu0 0.0
    %2915 = vmatprep.subr.mxu0 0.0
    %2916 = vmatpush1.msra.mxu0 0.0
    %2917 = vmatprep.subr.mxu0 0.0
    %2918 = vmatpush1.msra.mxu0 0.0
    %2919 = vmatprep.subr.mxu0 0.0
    %2920 = vmatpush1.msra.mxu0 0.0
    %2921 = vmatprep.subr.mxu0 0.0
    %2922 = vmatpush1.msra.mxu0 0.0
    %2923 = vmatprep.subr.mxu0 0.0
    %2924 = vmatpush1.msra.mxu0 0.0
    %2925 = vmatprep.subr.mxu0 0.0
    %2926 = vmatpush1.msra.mxu0 0.0
    %2927 = vmatprep.subr.mxu0 0.0
    %2928 = vmatpush1.msra.mxu0 0.0
    %2929 = vmatprep.subr.mxu0 0.0
    %2930 = vmatpush1.msra.mxu0 0.0
    %2931 = vmatprep.subr.mxu0 0.0
    %2932 = vmatpush1.msra.mxu0 0.0
    %2933 = vmatprep.subr.mxu0 0.0
    %2934 = vmatpush1.msra.mxu0 0.0
    %2935 = vmatprep.subr.mxu0 0.0
    %2936 = vmatpush1.msra.mxu0 %v2900
    %2937 = vmatprep.subr.mxu0 0.0
    %2938 = vmatpush2.msra.mxu0 0.0
    %2939 = vmatprep.subr.mxu0 0.0
    %2940 = vmatpush2.msra.mxu0 0.0
    %2941 = vmatprep.subr.mxu0 0.0
    %2942 = vmatpush2.msra.mxu0 0.0
    %2943 = vmatprep.subr.mxu0 0.0
    %2944 = vmatpush2.msra.mxu0 0.0
    %2945 = vmatprep.subr.mxu0 0.0
    %2946 = vmatpush2.msra.mxu0 0.0
    %2947 = vmatprep.subr.mxu0 0.0
    %2948 = vmatpush2.msra.mxu0 0.0
    %2949 = vmatprep.subr.mxu0 0.0
    %2950 = vmatpush2.msra.mxu0 0.0
    %2951 = vmatprep.subr.mxu0 0.0
    %2952 = vmatpush2.msra.mxu0 0.0
    %2953 = vmatprep.subr.mxu0 0.0
    %2954 = vmatpush2.msra.mxu0 0.0
    %2955 = vmatprep.subr.mxu0 0.0
    %2956 = vmatpush2.msra.mxu0 0.0
    %2957 = vmatprep.subr.mxu0 0.0
    %2958 = vmatpush2.msra.mxu0 0.0
    %2959 = vmatprep.subr.mxu0 0.0
    %2960 = vmatpush2.msra.mxu0 0.0
    %2961 = vmatprep.subr.mxu0 0.0
    %2962 = vmatpush2.msra.mxu0 0.0
    %2963 = vmatprep.subr.mxu0 0.0
    %2964 = vmatpush2.msra.mxu0 0.0
    %2965 = vmatprep.subr.mxu0 0.0
    %2966 = vmatpush2.msra.mxu0 0.0
    %2967 = vmatprep.subr.mxu0 0.0
    %2968 = vmatpush2.msra.mxu0 0.0
    %2969 = vmatprep.mubr.f32.mxu0 0.0
    %2970 = vmatmul.mubr.f32.gmra.mxu0 %v2903
    %v2971 = vpop.f32.mrf.mxu0
    %v2972 = vadd.f32 0.0, %v2971
    %v2973 = vpop.f32.mrf.mxu0
    %2974 = vdwg.mxu0
    %2975 = vrot.lane.b32.xlu0 %v2173, 56
    %v2976 = vpop.permute.xlu0 %2975
    %v2979 = vsel %vm340, %v2892, 0
    %2981 = vmatprep.subr.mxu0 0.0
    %2982 = vmatpush1.msra.mxu0 0.0
    %2983 = vmatprep.subr.mxu0 0.0
    %2984 = vmatpush1.msra.mxu0 0.0
    %2985 = vmatprep.subr.mxu0 0.0
    %2986 = vmatpush1.msra.mxu0 0.0
    %2987 = vmatprep.subr.mxu0 0.0
    %2988 = vmatpush1.msra.mxu0 0.0
    %2989 = vmatprep.subr.mxu0 0.0
    %2990 = vmatpush1.msra.mxu0 0.0
    %2991 = vmatprep.subr.mxu0 0.0
    %2992 = vmatpush1.msra.mxu0 0.0
    %2993 = vmatprep.subr.mxu0 0.0
    %2994 = vmatpush1.msra.mxu0 0.0
    %2995 = vmatprep.subr.mxu0 0.0
    %2996 = vmatpush1.msra.mxu0 0.0
    %2997 = vmatprep.subr.mxu0 0.0
    %2998 = vmatpush1.msra.mxu0 0.0
    %2999 = vmatprep.subr.mxu0 0.0
    %3000 = vmatpush1.msra.mxu0 0.0
    %3001 = vmatprep.subr.mxu0 0.0
    %3002 = vmatpush1.msra.mxu0 0.0
    %3003 = vmatprep.subr.mxu0 0.0
    %3004 = vmatpush1.msra.mxu0 0.0
    %3005 = vmatprep.subr.mxu0 0.0
    %3006 = vmatpush1.msra.mxu0 0.0
    %3007 = vmatprep.subr.mxu0 0.0
    %3008 = vmatpush1.msra.mxu0 0.0
    %3009 = vmatprep.subr.mxu0 0.0
    %3010 = vmatpush1.msra.mxu0 0.0
    %3011 = vmatprep.subr.mxu0 0.0
    %3012 = vmatpush1.msra.mxu0 %v2976
    %3013 = vmatprep.subr.mxu0 0.0
    %3014 = vmatpush2.msra.mxu0 0.0
    %3015 = vmatprep.subr.mxu0 0.0
    %3016 = vmatpush2.msra.mxu0 0.0
    %3017 = vmatprep.subr.mxu0 0.0
    %3018 = vmatpush2.msra.mxu0 0.0
    %3019 = vmatprep.subr.mxu0 0.0
    %3020 = vmatpush2.msra.mxu0 0.0
    %3021 = vmatprep.subr.mxu0 0.0
    %3022 = vmatpush2.msra.mxu0 0.0
    %3023 = vmatprep.subr.mxu0 0.0
    %3024 = vmatpush2.msra.mxu0 0.0
    %3025 = vmatprep.subr.mxu0 0.0
    %3026 = vmatpush2.msra.mxu0 0.0
    %3027 = vmatprep.subr.mxu0 0.0
    %3028 = vmatpush2.msra.mxu0 0.0
    %3029 = vmatprep.subr.mxu0 0.0
    %3030 = vmatpush2.msra.mxu0 0.0
    %3031 = vmatprep.subr.mxu0 0.0
    %3032 = vmatpush2.msra.mxu0 0.0
    %3033 = vmatprep.subr.mxu0 0.0
    %3034 = vmatpush2.msra.mxu0 0.0
    %3035 = vmatprep.subr.mxu0 0.0
    %3036 = vmatpush2.msra.mxu0 0.0
    %3037 = vmatprep.subr.mxu0 0.0
    %3038 = vmatpush2.msra.mxu0 0.0
    %3039 = vmatprep.subr.mxu0 0.0
    %3040 = vmatpush2.msra.mxu0 0.0
    %3041 = vmatprep.subr.mxu0 0.0
    %3042 = vmatpush2.msra.mxu0 0.0
    %3043 = vmatprep.subr.mxu0 0.0
    %3044 = vmatpush2.msra.mxu0 0.0
    %3045 = vmatprep.mubr.f32.mxu0 0.0
    %3046 = vmatmul.mubr.f32.gmra.mxu0 %v2979
    %v3047 = vpop.f32.mrf.mxu0
    %v3048 = vadd.f32 0.0, %v3047
    %v3049 = vpop.f32.mrf.mxu0
    %3050 = vdwg.mxu0
    %3051 = vrot.lane.b32.xlu0 %v2173, 48
    %v3052 = vpop.permute.xlu0 %3051
    %v3055 = vsel %vm340, %v2893, 0
    %3057 = vmatprep.subr.mxu0 0.0
    %3058 = vmatpush1.msra.mxu0 0.0
    %3059 = vmatprep.subr.mxu0 0.0
    %3060 = vmatpush1.msra.mxu0 0.0
    %3061 = vmatprep.subr.mxu0 0.0
    %3062 = vmatpush1.msra.mxu0 0.0
    %3063 = vmatprep.subr.mxu0 0.0
    %3064 = vmatpush1.msra.mxu0 0.0
    %3065 = vmatprep.subr.mxu0 0.0
    %3066 = vmatpush1.msra.mxu0 0.0
    %3067 = vmatprep.subr.mxu0 0.0
    %3068 = vmatpush1.msra.mxu0 0.0
    %3069 = vmatprep.subr.mxu0 0.0
    %3070 = vmatpush1.msra.mxu0 0.0
    %3071 = vmatprep.subr.mxu0 0.0
    %3072 = vmatpush1.msra.mxu0 0.0
    %3073 = vmatprep.subr.mxu0 0.0
    %3074 = vmatpush1.msra.mxu0 0.0
    %3075 = vmatprep.subr.mxu0 0.0
    %3076 = vmatpush1.msra.mxu0 0.0
    %3077 = vmatprep.subr.mxu0 0.0
    %3078 = vmatpush1.msra.mxu0 0.0
    %3079 = vmatprep.subr.mxu0 0.0
    %3080 = vmatpush1.msra.mxu0 0.0
    %3081 = vmatprep.subr.mxu0 0.0
    %3082 = vmatpush1.msra.mxu0 0.0
    %3083 = vmatprep.subr.mxu0 0.0
    %3084 = vmatpush1.msra.mxu0 0.0
    %3085 = vmatprep.subr.mxu0 0.0
    %3086 = vmatpush1.msra.mxu0 0.0
    %3087 = vmatprep.subr.mxu0 0.0
    %3088 = vmatpush1.msra.mxu0 %v3052
    %3089 = vmatprep.subr.mxu0 0.0
    %3090 = vmatpush2.msra.mxu0 0.0
    %3091 = vmatprep.subr.mxu0 0.0
    %3092 = vmatpush2.msra.mxu0 0.0
    %3093 = vmatprep.subr.mxu0 0.0
    %3094 = vmatpush2.msra.mxu0 0.0
    %3095 = vmatprep.subr.mxu0 0.0
    %3096 = vmatpush2.msra.mxu0 0.0
    %3097 = vmatprep.subr.mxu0 0.0
    %3098 = vmatpush2.msra.mxu0 0.0
    %3099 = vmatprep.subr.mxu0 0.0
    %3100 = vmatpush2.msra.mxu0 0.0
    %3101 = vmatprep.subr.mxu0 0.0
    %3102 = vmatpush2.msra.mxu0 0.0
    %3103 = vmatprep.subr.mxu0 0.0
    %3104 = vmatpush2.msra.mxu0 0.0
    %3105 = vmatprep.subr.mxu0 0.0
    %3106 = vmatpush2.msra.mxu0 0.0
    %3107 = vmatprep.subr.mxu0 0.0
    %3108 = vmatpush2.msra.mxu0 0.0
    %3109 = vmatprep.subr.mxu0 0.0
    %3110 = vmatpush2.msra.mxu0 0.0
    %3111 = vmatprep.subr.mxu0 0.0
    %3112 = vmatpush2.msra.mxu0 0.0
    %3113 = vmatprep.subr.mxu0 0.0
    %3114 = vmatpush2.msra.mxu0 0.0
    %3115 = vmatprep.subr.mxu0 0.0
    %3116 = vmatpush2.msra.mxu0 0.0
    %3117 = vmatprep.subr.mxu0 0.0
    %3118 = vmatpush2.msra.mxu0 0.0
    %3119 = vmatprep.subr.mxu0 0.0
    %3120 = vmatpush2.msra.mxu0 0.0
    %3121 = vmatprep.mubr.f32.mxu0 0.0
    %3122 = vmatmul.mubr.f32.gmra.mxu0 %v3055
    %v3123 = vpop.f32.mrf.mxu0
    %v3124 = vadd.f32 0.0, %v3123
    %v3125 = vpop.f32.mrf.mxu0
    %3126 = vdwg.mxu0
    %3127 = vrot.lane.b32.xlu0 %v2173, 40
    %v3128 = vpop.permute.xlu0 %3127
    %v3131 = vsel %vm340, %v2894, 0
    %3133 = vmatprep.subr.mxu0 0.0
    %3134 = vmatpush1.msra.mxu0 0.0
    %3135 = vmatprep.subr.mxu0 0.0
    %3136 = vmatpush1.msra.mxu0 0.0
    %3137 = vmatprep.subr.mxu0 0.0
    %3138 = vmatpush1.msra.mxu0 0.0
    %3139 = vmatprep.subr.mxu0 0.0
    %3140 = vmatpush1.msra.mxu0 0.0
    %3141 = vmatprep.subr.mxu0 0.0
    %3142 = vmatpush1.msra.mxu0 0.0
    %3143 = vmatprep.subr.mxu0 0.0
    %3144 = vmatpush1.msra.mxu0 0.0
    %3145 = vmatprep.subr.mxu0 0.0
    %3146 = vmatpush1.msra.mxu0 0.0
    %3147 = vmatprep.subr.mxu0 0.0
    %3148 = vmatpush1.msra.mxu0 0.0
    %3149 = vmatprep.subr.mxu0 0.0
    %3150 = vmatpush1.msra.mxu0 0.0
    %3151 = vmatprep.subr.mxu0 0.0
    %3152 = vmatpush1.msra.mxu0 0.0
    %3153 = vmatprep.subr.mxu0 0.0
    %3154 = vmatpush1.msra.mxu0 0.0
    %3155 = vmatprep.subr.mxu0 0.0
    %3156 = vmatpush1.msra.mxu0 0.0
    %3157 = vmatprep.subr.mxu0 0.0
    %3158 = vmatpush1.msra.mxu0 0.0
    %3159 = vmatprep.subr.mxu0 0.0
    %3160 = vmatpush1.msra.mxu0 0.0
    %3161 = vmatprep.subr.mxu0 0.0
    %3162 = vmatpush1.msra.mxu0 0.0
    %3163 = vmatprep.subr.mxu0 0.0
    %3164 = vmatpush1.msra.mxu0 %v3128
    %3165 = vmatprep.subr.mxu0 0.0
    %3166 = vmatpush2.msra.mxu0 0.0
    %3167 = vmatprep.subr.mxu0 0.0
    %3168 = vmatpush2.msra.mxu0 0.0
    %3169 = vmatprep.subr.mxu0 0.0
    %3170 = vmatpush2.msra.mxu0 0.0
    %3171 = vmatprep.subr.mxu0 0.0
    %3172 = vmatpush2.msra.mxu0 0.0
    %3173 = vmatprep.subr.mxu0 0.0
    %3174 = vmatpush2.msra.mxu0 0.0
    %3175 = vmatprep.subr.mxu0 0.0
    %3176 = vmatpush2.msra.mxu0 0.0
    %3177 = vmatprep.subr.mxu0 0.0
    %3178 = vmatpush2.msra.mxu0 0.0
    %3179 = vmatprep.subr.mxu0 0.0
    %3180 = vmatpush2.msra.mxu0 0.0
    %3181 = vmatprep.subr.mxu0 0.0
    %3182 = vmatpush2.msra.mxu0 0.0
    %3183 = vmatprep.subr.mxu0 0.0
    %3184 = vmatpush2.msra.mxu0 0.0
    %3185 = vmatprep.subr.mxu0 0.0
    %3186 = vmatpush2.msra.mxu0 0.0
    %3187 = vmatprep.subr.mxu0 0.0
    %3188 = vmatpush2.msra.mxu0 0.0
    %3189 = vmatprep.subr.mxu0 0.0
    %3190 = vmatpush2.msra.mxu0 0.0
    %3191 = vmatprep.subr.mxu0 0.0
    %3192 = vmatpush2.msra.mxu0 0.0
    %3193 = vmatprep.subr.mxu0 0.0
    %3194 = vmatpush2.msra.mxu0 0.0
    %3195 = vmatprep.subr.mxu0 0.0
    %3196 = vmatpush2.msra.mxu0 0.0
    %3197 = vmatprep.mubr.f32.mxu0 0.0
    %3198 = vmatmul.mubr.f32.gmra.mxu0 %v3131
    %v3199 = vpop.f32.mrf.mxu0
    %v3200 = vadd.f32 0.0, %v3199
    %v3201 = vpop.f32.mrf.mxu0
    %3202 = vdwg.mxu0
    %3204 = vrot.lane.b32.xlu0 %v3048, 8
    %v3205 = vpop.permute.xlu0 %3204
    %3208 = vrot.lane.b32.xlu0 %v3124, 16
    %v3209 = vpop.permute.xlu0 %3208
    %3212 = vrot.lane.b32.xlu0 %v3200, 24
    %v3213 = vpop.permute.xlu0 %3212
    %v3215 = vsel %vm340, %v2972, %v3205
    %v3216 = vsel %vm1373, %v3215, %v3209
    %v3217 = vsel %vm1375, %v3216, %v3213
    %3218 = vrot.lane.b32.xlu0 %v2178, 64
    %v3219 = vpop.permute.xlu0 %3218
    %v3222 = vsel %vm340, %v2895, 0
    %3224 = vmatprep.subr.mxu0 0.0
    %3225 = vmatpush1.msra.mxu0 0.0
    %3226 = vmatprep.subr.mxu0 0.0
    %3227 = vmatpush1.msra.mxu0 0.0
    %3228 = vmatprep.subr.mxu0 0.0
    %3229 = vmatpush1.msra.mxu0 0.0
    %3230 = vmatprep.subr.mxu0 0.0
    %3231 = vmatpush1.msra.mxu0 0.0
    %3232 = vmatprep.subr.mxu0 0.0
    %3233 = vmatpush1.msra.mxu0 0.0
    %3234 = vmatprep.subr.mxu0 0.0
    %3235 = vmatpush1.msra.mxu0 0.0
    %3236 = vmatprep.subr.mxu0 0.0
    %3237 = vmatpush1.msra.mxu0 0.0
    %3238 = vmatprep.subr.mxu0 0.0
    %3239 = vmatpush1.msra.mxu0 0.0
    %3240 = vmatprep.subr.mxu0 0.0
    %3241 = vmatpush1.msra.mxu0 0.0
    %3242 = vmatprep.subr.mxu0 0.0
    %3243 = vmatpush1.msra.mxu0 0.0
    %3244 = vmatprep.subr.mxu0 0.0
    %3245 = vmatpush1.msra.mxu0 0.0
    %3246 = vmatprep.subr.mxu0 0.0
    %3247 = vmatpush1.msra.mxu0 0.0
    %3248 = vmatprep.subr.mxu0 0.0
    %3249 = vmatpush1.msra.mxu0 0.0
    %3250 = vmatprep.subr.mxu0 0.0
    %3251 = vmatpush1.msra.mxu0 0.0
    %3252 = vmatprep.subr.mxu0 0.0
    %3253 = vmatpush1.msra.mxu0 0.0
    %3254 = vmatprep.subr.mxu0 0.0
    %3255 = vmatpush1.msra.mxu0 %v3219
    %3256 = vmatprep.subr.mxu0 0.0
    %3257 = vmatpush2.msra.mxu0 0.0
    %3258 = vmatprep.subr.mxu0 0.0
    %3259 = vmatpush2.msra.mxu0 0.0
    %3260 = vmatprep.subr.mxu0 0.0
    %3261 = vmatpush2.msra.mxu0 0.0
    %3262 = vmatprep.subr.mxu0 0.0
    %3263 = vmatpush2.msra.mxu0 0.0
    %3264 = vmatprep.subr.mxu0 0.0
    %3265 = vmatpush2.msra.mxu0 0.0
    %3266 = vmatprep.subr.mxu0 0.0
    %3267 = vmatpush2.msra.mxu0 0.0
    %3268 = vmatprep.subr.mxu0 0.0
    %3269 = vmatpush2.msra.mxu0 0.0
    %3270 = vmatprep.subr.mxu0 0.0
    %3271 = vmatpush2.msra.mxu0 0.0
    %3272 = vmatprep.subr.mxu0 0.0
    %3273 = vmatpush2.msra.mxu0 0.0
    %3274 = vmatprep.subr.mxu0 0.0
    %3275 = vmatpush2.msra.mxu0 0.0
    %3276 = vmatprep.subr.mxu0 0.0
    %3277 = vmatpush2.msra.mxu0 0.0
    %3278 = vmatprep.subr.mxu0 0.0
    %3279 = vmatpush2.msra.mxu0 0.0
    %3280 = vmatprep.subr.mxu0 0.0
    %3281 = vmatpush2.msra.mxu0 0.0
    %3282 = vmatprep.subr.mxu0 0.0
    %3283 = vmatpush2.msra.mxu0 0.0
    %3284 = vmatprep.subr.mxu0 0.0
    %3285 = vmatpush2.msra.mxu0 0.0
    %3286 = vmatprep.subr.mxu0 0.0
    %3287 = vmatpush2.msra.mxu0 0.0
    %3288 = vmatprep.mubr.f32.mxu0 0.0
    %3289 = vmatmul.mubr.f32.gmra.mxu0 %v3222
    %v3290 = vpop.f32.mrf.mxu0
    %v3291 = vadd.f32 0.0, %v3290
    %v3292 = vpop.f32.mrf.mxu0
    %3293 = vdwg.mxu0
    %3294 = vrot.lane.b32.xlu0 %v2178, 56
    %v3295 = vpop.permute.xlu0 %3294
    %v3298 = vsel %vm340, %v2896, 0
    %3300 = vmatprep.subr.mxu0 0.0
    %3301 = vmatpush1.msra.mxu0 0.0
    %3302 = vmatprep.subr.mxu0 0.0
    %3303 = vmatpush1.msra.mxu0 0.0
    %3304 = vmatprep.subr.mxu0 0.0
    %3305 = vmatpush1.msra.mxu0 0.0
    %3306 = vmatprep.subr.mxu0 0.0
    %3307 = vmatpush1.msra.mxu0 0.0
    %3308 = vmatprep.subr.mxu0 0.0
    %3309 = vmatpush1.msra.mxu0 0.0
    %3310 = vmatprep.subr.mxu0 0.0
    %3311 = vmatpush1.msra.mxu0 0.0
    %3312 = vmatprep.subr.mxu0 0.0
    %3313 = vmatpush1.msra.mxu0 0.0
    %3314 = vmatprep.subr.mxu0 0.0
    %3315 = vmatpush1.msra.mxu0 0.0
    %3316 = vmatprep.subr.mxu0 0.0
    %3317 = vmatpush1.msra.mxu0 0.0
    %3318 = vmatprep.subr.mxu0 0.0
    %3319 = vmatpush1.msra.mxu0 0.0
    %3320 = vmatprep.subr.mxu0 0.0
    %3321 = vmatpush1.msra.mxu0 0.0
    %3322 = vmatprep.subr.mxu0 0.0
    %3323 = vmatpush1.msra.mxu0 0.0
    %3324 = vmatprep.subr.mxu0 0.0
    %3325 = vmatpush1.msra.mxu0 0.0
    %3326 = vmatprep.subr.mxu0 0.0
    %3327 = vmatpush1.msra.mxu0 0.0
    %3328 = vmatprep.subr.mxu0 0.0
    %3329 = vmatpush1.msra.mxu0 0.0
    %3330 = vmatprep.subr.mxu0 0.0
    %3331 = vmatpush1.msra.mxu0 %v3295
    %3332 = vmatprep.subr.mxu0 0.0
    %3333 = vmatpush2.msra.mxu0 0.0
    %3334 = vmatprep.subr.mxu0 0.0
    %3335 = vmatpush2.msra.mxu0 0.0
    %3336 = vmatprep.subr.mxu0 0.0
    %3337 = vmatpush2.msra.mxu0 0.0
    %3338 = vmatprep.subr.mxu0 0.0
    %3339 = vmatpush2.msra.mxu0 0.0
    %3340 = vmatprep.subr.mxu0 0.0
    %3341 = vmatpush2.msra.mxu0 0.0
    %3342 = vmatprep.subr.mxu0 0.0
    %3343 = vmatpush2.msra.mxu0 0.0
    %3344 = vmatprep.subr.mxu0 0.0
    %3345 = vmatpush2.msra.mxu0 0.0
    %3346 = vmatprep.subr.mxu0 0.0
    %3347 = vmatpush2.msra.mxu0 0.0
    %3348 = vmatprep.subr.mxu0 0.0
    %3349 = vmatpush2.msra.mxu0 0.0
    %3350 = vmatprep.subr.mxu0 0.0
    %3351 = vmatpush2.msra.mxu0 0.0
    %3352 = vmatprep.subr.mxu0 0.0
    %3353 = vmatpush2.msra.mxu0 0.0
    %3354 = vmatprep.subr.mxu0 0.0
    %3355 = vmatpush2.msra.mxu0 0.0
    %3356 = vmatprep.subr.mxu0 0.0
    %3357 = vmatpush2.msra.mxu0 0.0
    %3358 = vmatprep.subr.mxu0 0.0
    %3359 = vmatpush2.msra.mxu0 0.0
    %3360 = vmatprep.subr.mxu0 0.0
    %3361 = vmatpush2.msra.mxu0 0.0
    %3362 = vmatprep.subr.mxu0 0.0
    %3363 = vmatpush2.msra.mxu0 0.0
    %3364 = vmatprep.mubr.f32.mxu0 0.0
    %3365 = vmatmul.mubr.f32.gmra.mxu0 %v3298
    %v3366 = vpop.f32.mrf.mxu0
    %v3367 = vadd.f32 0.0, %v3366
    %v3368 = vpop.f32.mrf.mxu0
    %3369 = vdwg.mxu0
    %3370 = vrot.lane.b32.xlu0 %v2178, 48
    %v3371 = vpop.permute.xlu0 %3370
    %v3374 = vsel %vm340, %v2897, 0
    %3376 = vmatprep.subr.mxu0 0.0
    %3377 = vmatpush1.msra.mxu0 0.0
    %3378 = vmatprep.subr.mxu0 0.0
    %3379 = vmatpush1.msra.mxu0 0.0
    %3380 = vmatprep.subr.mxu0 0.0
    %3381 = vmatpush1.msra.mxu0 0.0
    %3382 = vmatprep.subr.mxu0 0.0
    %3383 = vmatpush1.msra.mxu0 0.0
    %3384 = vmatprep.subr.mxu0 0.0
    %3385 = vmatpush1.msra.mxu0 0.0
    %3386 = vmatprep.subr.mxu0 0.0
    %3387 = vmatpush1.msra.mxu0 0.0
    %3388 = vmatprep.subr.mxu0 0.0
    %3389 = vmatpush1.msra.mxu0 0.0
    %3390 = vmatprep.subr.mxu0 0.0
    %3391 = vmatpush1.msra.mxu0 0.0
    %3392 = vmatprep.subr.mxu0 0.0
    %3393 = vmatpush1.msra.mxu0 0.0
    %3394 = vmatprep.subr.mxu0 0.0
    %3395 = vmatpush1.msra.mxu0 0.0
    %3396 = vmatprep.subr.mxu0 0.0
    %3397 = vmatpush1.msra.mxu0 0.0
    %3398 = vmatprep.subr.mxu0 0.0
    %3399 = vmatpush1.msra.mxu0 0.0
    %3400 = vmatprep.subr.mxu0 0.0
    %3401 = vmatpush1.msra.mxu0 0.0
    %3402 = vmatprep.subr.mxu0 0.0
    %3403 = vmatpush1.msra.mxu0 0.0
    %3404 = vmatprep.subr.mxu0 0.0
    %3405 = vmatpush1.msra.mxu0 0.0
    %3406 = vmatprep.subr.mxu0 0.0
    %3407 = vmatpush1.msra.mxu0 %v3371
    %3408 = vmatprep.subr.mxu0 0.0
    %3409 = vmatpush2.msra.mxu0 0.0
    %3410 = vmatprep.subr.mxu0 0.0
    %3411 = vmatpush2.msra.mxu0 0.0
    %3412 = vmatprep.subr.mxu0 0.0
    %3413 = vmatpush2.msra.mxu0 0.0
    %3414 = vmatprep.subr.mxu0 0.0
    %3415 = vmatpush2.msra.mxu0 0.0
    %3416 = vmatprep.subr.mxu0 0.0
    %3417 = vmatpush2.msra.mxu0 0.0
    %3418 = vmatprep.subr.mxu0 0.0
    %3419 = vmatpush2.msra.mxu0 0.0
    %3420 = vmatprep.subr.mxu0 0.0
    %3421 = vmatpush2.msra.mxu0 0.0
    %3422 = vmatprep.subr.mxu0 0.0
    %3423 = vmatpush2.msra.mxu0 0.0
    %3424 = vmatprep.subr.mxu0 0.0
    %3425 = vmatpush2.msra.mxu0 0.0
    %3426 = vmatprep.subr.mxu0 0.0
    %3427 = vmatpush2.msra.mxu0 0.0
    %3428 = vmatprep.subr.mxu0 0.0
    %3429 = vmatpush2.msra.mxu0 0.0
    %3430 = vmatprep.subr.mxu0 0.0
    %3431 = vmatpush2.msra.mxu0 0.0
    %3432 = vmatprep.subr.mxu0 0.0
    %3433 = vmatpush2.msra.mxu0 0.0
    %3434 = vmatprep.subr.mxu0 0.0
    %3435 = vmatpush2.msra.mxu0 0.0
    %3436 = vmatprep.subr.mxu0 0.0
    %3437 = vmatpush2.msra.mxu0 0.0
    %3438 = vmatprep.subr.mxu0 0.0
    %3439 = vmatpush2.msra.mxu0 0.0
    %3440 = vmatprep.mubr.f32.mxu0 0.0
    %3441 = vmatmul.mubr.f32.gmra.mxu0 %v3374
    %v3442 = vpop.f32.mrf.mxu0
    %v3443 = vadd.f32 0.0, %v3442
    %v3444 = vpop.f32.mrf.mxu0
    %3445 = vdwg.mxu0
    %3446 = vrot.lane.b32.xlu0 %v2178, 40
    %v3447 = vpop.permute.xlu0 %3446
    %v3450 = vsel %vm340, %v2898, 0
    %3452 = vmatprep.subr.mxu0 0.0
    %3453 = vmatpush1.msra.mxu0 0.0
    %3454 = vmatprep.subr.mxu0 0.0
    %3455 = vmatpush1.msra.mxu0 0.0
    %3456 = vmatprep.subr.mxu0 0.0
    %3457 = vmatpush1.msra.mxu0 0.0
    %3458 = vmatprep.subr.mxu0 0.0
    %3459 = vmatpush1.msra.mxu0 0.0
    %3460 = vmatprep.subr.mxu0 0.0
    %3461 = vmatpush1.msra.mxu0 0.0
    %3462 = vmatprep.subr.mxu0 0.0
    %3463 = vmatpush1.msra.mxu0 0.0
    %3464 = vmatprep.subr.mxu0 0.0
    %3465 = vmatpush1.msra.mxu0 0.0
    %3466 = vmatprep.subr.mxu0 0.0
    %3467 = vmatpush1.msra.mxu0 0.0
    %3468 = vmatprep.subr.mxu0 0.0
    %3469 = vmatpush1.msra.mxu0 0.0
    %3470 = vmatprep.subr.mxu0 0.0
    %3471 = vmatpush1.msra.mxu0 0.0
    %3472 = vmatprep.subr.mxu0 0.0
    %3473 = vmatpush1.msra.mxu0 0.0
    %3474 = vmatprep.subr.mxu0 0.0
    %3475 = vmatpush1.msra.mxu0 0.0
    %3476 = vmatprep.subr.mxu0 0.0
    %3477 = vmatpush1.msra.mxu0 0.0
    %3478 = vmatprep.subr.mxu0 0.0
    %3479 = vmatpush1.msra.mxu0 0.0
    %3480 = vmatprep.subr.mxu0 0.0
    %3481 = vmatpush1.msra.mxu0 0.0
    %3482 = vmatprep.subr.mxu0 0.0
    %3483 = vmatpush1.msra.mxu0 %v3447
    %3484 = vmatprep.subr.mxu0 0.0
    %3485 = vmatpush2.msra.mxu0 0.0
    %3486 = vmatprep.subr.mxu0 0.0
    %3487 = vmatpush2.msra.mxu0 0.0
    %3488 = vmatprep.subr.mxu0 0.0
    %3489 = vmatpush2.msra.mxu0 0.0
    %3490 = vmatprep.subr.mxu0 0.0
    %3491 = vmatpush2.msra.mxu0 0.0
    %3492 = vmatprep.subr.mxu0 0.0
    %3493 = vmatpush2.msra.mxu0 0.0
    %3494 = vmatprep.subr.mxu0 0.0
    %3495 = vmatpush2.msra.mxu0 0.0
    %3496 = vmatprep.subr.mxu0 0.0
    %3497 = vmatpush2.msra.mxu0 0.0
    %3498 = vmatprep.subr.mxu0 0.0
    %3499 = vmatpush2.msra.mxu0 0.0
    %3500 = vmatprep.subr.mxu0 0.0
    %3501 = vmatpush2.msra.mxu0 0.0
    %3502 = vmatprep.subr.mxu0 0.0
    %3503 = vmatpush2.msra.mxu0 0.0
    %3504 = vmatprep.subr.mxu0 0.0
    %3505 = vmatpush2.msra.mxu0 0.0
    %3506 = vmatprep.subr.mxu0 0.0
    %3507 = vmatpush2.msra.mxu0 0.0
    %3508 = vmatprep.subr.mxu0 0.0
    %3509 = vmatpush2.msra.mxu0 0.0
    %3510 = vmatprep.subr.mxu0 0.0
    %3511 = vmatpush2.msra.mxu0 0.0
    %3512 = vmatprep.subr.mxu0 0.0
    %3513 = vmatpush2.msra.mxu0 0.0
    %3514 = vmatprep.subr.mxu0 0.0
    %3515 = vmatpush2.msra.mxu0 0.0
    %3516 = vmatprep.mubr.f32.mxu0 0.0
    %3517 = vmatmul.mubr.f32.gmra.mxu0 %v3450
    %v3518 = vpop.f32.mrf.mxu0
    %v3519 = vadd.f32 0.0, %v3518
    %v3520 = vpop.f32.mrf.mxu0
    %3521 = vdwg.mxu0
    %3523 = vrot.lane.b32.xlu0 %v3367, 8
    %v3524 = vpop.permute.xlu0 %3523
    %3527 = vrot.lane.b32.xlu0 %v3443, 16
    %v3528 = vpop.permute.xlu0 %3527
    %3531 = vrot.lane.b32.xlu0 %v3519, 24
    %v3532 = vpop.permute.xlu0 %3531
    %v3534 = vsel %vm340, %v3291, %v3524
    %v3535 = vsel %vm1373, %v3534, %v3528
    %v3536 = vsel %vm1375, %v3535, %v3532
    %s3537 = scalar_lea.vmem %s8, 32
    %v3538 = vld [vmem:[%s3537] sm:$0xff]
    %v3539 = vld [vmem:[%s3537 + $0x8] sm:$0xff]
    %v3540 = vld [vmem:[%s3537 + $0x10] sm:$0xff]
    %v3541 = vld [vmem:[%s3537 + $0x18] sm:$0xff]
    %s3542 = scalar_lea.vmem %s9, 1
    %v3543 = vld [vmem:[%s3542] sm:$0x1]
    %v3545 = vlaneseq
    %v3546 = vshrl.u32 %v3545, 7
    %v3547 = vsub.s32 0, %v3546
    %v3548 = vrot.slane %v3543, %v3547
    %v3551 = vsel %vm190, %v3217, 0
    %v3554 = vsel %vm190, %v3536, 0
    %3556 = vmatprep.subr.mxu0 0.0
    %3557 = vmatpush1.msra.mxu0 0.0
    %3558 = vmatprep.subr.mxu0 0.0
    %3559 = vmatpush1.msra.mxu0 0.0
    %3560 = vmatprep.subr.mxu0 0.0
    %3561 = vmatpush1.msra.mxu0 0.0
    %3562 = vmatprep.subr.mxu0 0.0
    %3563 = vmatpush1.msra.mxu0 0.0
    %3564 = vmatprep.subr.mxu0 0.0
    %3565 = vmatpush1.msra.mxu0 0.0
    %3566 = vmatprep.subr.mxu0 0.0
    %3567 = vmatpush1.msra.mxu0 0.0
    %3568 = vmatprep.subr.mxu0 0.0
    %3569 = vmatpush1.msra.mxu0 0.0
    %3570 = vmatprep.subr.mxu0 0.0
    %3571 = vmatpush1.msra.mxu0 0.0
    %3572 = vmatprep.subr.mxu0 0.0
    %3573 = vmatpush1.msra.mxu0 0.0
    %3574 = vmatprep.subr.mxu0 0.0
    %3575 = vmatpush1.msra.mxu0 0.0
    %3576 = vmatprep.subr.mxu0 0.0
    %3577 = vmatpush1.msra.mxu0 0.0
    %3578 = vmatprep.subr.mxu0 0.0
    %3579 = vmatpush1.msra.mxu0 0.0
    %3580 = vmatprep.subr.mxu0 0.0
    %3581 = vmatpush1.msra.mxu0 %v3541
    %3582 = vmatprep.subr.mxu0 0.0
    %3583 = vmatpush1.msra.mxu0 %v3540
    %3584 = vmatprep.subr.mxu0 0.0
    %3585 = vmatpush1.msra.mxu0 %v3539
    %3586 = vmatprep.subr.mxu0 0.0
    %3587 = vmatpush1.msra.mxu0 %v3538
    %3588 = vmatprep.subr.mxu0 0.0
    %3589 = vmatpush2.msra.mxu0 0.0
    %3590 = vmatprep.subr.mxu0 0.0
    %3591 = vmatpush2.msra.mxu0 0.0
    %3592 = vmatprep.subr.mxu0 0.0
    %3593 = vmatpush2.msra.mxu0 0.0
    %3594 = vmatprep.subr.mxu0 0.0
    %3595 = vmatpush2.msra.mxu0 0.0
    %3596 = vmatprep.subr.mxu0 0.0
    %3597 = vmatpush2.msra.mxu0 0.0
    %3598 = vmatprep.subr.mxu0 0.0
    %3599 = vmatpush2.msra.mxu0 0.0
    %3600 = vmatprep.subr.mxu0 0.0
    %3601 = vmatpush2.msra.mxu0 0.0
    %3602 = vmatprep.subr.mxu0 0.0
    %3603 = vmatpush2.msra.mxu0 0.0
    %3604 = vmatprep.subr.mxu0 0.0
    %3605 = vmatpush2.msra.mxu0 0.0
    %3606 = vmatprep.subr.mxu0 0.0
    %3607 = vmatpush2.msra.mxu0 0.0
    %3608 = vmatprep.subr.mxu0 0.0
    %3609 = vmatpush2.msra.mxu0 0.0
    %3610 = vmatprep.subr.mxu0 0.0
    %3611 = vmatpush2.msra.mxu0 0.0
    %3612 = vmatprep.subr.mxu0 0.0
    %3613 = vmatpush2.msra.mxu0 0.0
    %3614 = vmatprep.subr.mxu0 0.0
    %3615 = vmatpush2.msra.mxu0 0.0
    %3616 = vmatprep.subr.mxu0 0.0
    %3617 = vmatpush2.msra.mxu0 0.0
    %3618 = vmatprep.subr.mxu0 0.0
    %3619 = vmatpush2.msra.mxu0 0.0
    %3620 = vmatprep.mubr.f32.mxu0 0.0
    %3621 = vmatmul.mubr.f32.gmra.mxu0 %v3551
    %v3622 = vpop.f32.mrf.mxu0
    %v3623 = vadd.f32 %v3548, %v3622
    %v3624 = vpop.f32.mrf.mxu0
    %3625 = vmatprep.mubr.f32.mxu0 0.0
    %3626 = vmatmul.mubr.f32.gmra.mxu0 %v3554
    %v3627 = vpop.f32.mrf.mxu0
    %v3628 = vadd.f32 %v3548, %v3627
    %v3629 = vpop.f32.mrf.mxu0
    %3630 = vdwg.mxu0
    %v3631 = vadd.f32 %v3623, %v2085
    %v3632 = vadd.f32 %v3628, %v2086
    %s3633 = scalar_lea.vmem %s10, 1
    %v3634 = vld [vmem:[%s3633] sm:$0x1]
    %s3635 = scalar_lea.vmem %s11, 1
    %v3636 = vld [vmem:[%s3635] sm:$0x1]
    %v3637 = vsel %vm190, %v3631, 0.0
    %3638 = vadd.xlane.f32.xlu0 %v3637
    %v3639 = vpop.xlane.xlu0 %3638
    %v3640 = vsel %vm190, %v3632, 0.0
    %3641 = vadd.xlane.f32.xlu0 %v3640
    %v3642 = vpop.xlane.xlu0 %3641
    %v3643 = vmul.f32 %v3639, %v197
    %v3644 = vmul.f32 %v3642, %v197
    %v3645 = vsub.f32 %v3631, %v3643
    %v3646 = vsub.f32 %v3632, %v3644
    %v3647 = vmul.f32 %v3645, %v3645
    %v3648 = vmul.f32 %v3646, %v3646
    %v3649 = vsel %vm190, %v3647, 0.0
    %3650 = vadd.xlane.f32.xlu0 %v3649
    %v3651 = vpop.xlane.xlu0 %3650
    %v3652 = vsel %vm190, %v3648, 0.0
    %3653 = vadd.xlane.f32.xlu0 %v3652
    %v3654 = vpop.xlane.xlu0 %3653
    %v3655 = vmul.f32 %v3651, %v197
    %v3656 = vmul.f32 %v3654, %v197
    %v3657 = vadd.f32 %v3655, 1e-12
    %v3658 = vadd.f32 %v3656, 1e-12
    %v3659 = vrsqrt.pop %v3657
    %v3660 = vrsqrt.pop %v3658
    %v3661 = vmul.f32 %v3645, %v3659
    %v3662 = vmul.f32 %v3646, %v3660
    %v3664 = vlaneseq
    %v3665 = vshrl.u32 %v3664, 7
    %v3666 = vsub.s32 0, %v3665
    %v3667 = vrot.slane %v3634, %v3666
    %v3669 = vmul.f32 %v3661, %v3667
    %v3670 = vmul.f32 %v3662, %v3667
    %v3672 = vlaneseq
    %v3673 = vshrl.u32 %v3672, 7
    %v3674 = vsub.s32 0, %v3673
    %v3675 = vrot.slane %v3636, %v3674
    %v3677 = vadd.f32 %v3669, %v3675
    %v3678 = vadd.f32 %v3670, %v3675
    %s3679 = scalar_lea.vmem %s12, 32
    %v3680 = vld [vmem:[%s3679] sm:$0xff]
    %v3681 = vld [vmem:[%s3679 + $0x8] sm:$0xff]
    %v3682 = vld [vmem:[%s3679 + $0x10] sm:$0xff]
    %v3683 = vld [vmem:[%s3679 + $0x18] sm:$0xff]
    %s3684 = scalar_lea.vmem %s13, 1
    %v3685 = vld [vmem:[%s3684] sm:$0x1]
    %v3687 = vlaneseq
    %v3688 = vshrl.u32 %v3687, 7
    %v3689 = vsub.s32 0, %v3688
    %v3690 = vrot.slane %v3685, %v3689
    %v3693 = vsel %vm190, %v3677, 0
    %v3696 = vsel %vm190, %v3678, 0
    %3698 = vmatprep.subr.mxu0 0.0
    %3699 = vmatpush1.msra.mxu0 0.0
    %3700 = vmatprep.subr.mxu0 0.0
    %3701 = vmatpush1.msra.mxu0 0.0
    %3702 = vmatprep.subr.mxu0 0.0
    %3703 = vmatpush1.msra.mxu0 0.0
    %3704 = vmatprep.subr.mxu0 0.0
    %3705 = vmatpush1.msra.mxu0 0.0
    %3706 = vmatprep.subr.mxu0 0.0
    %3707 = vmatpush1.msra.mxu0 0.0
    %3708 = vmatprep.subr.mxu0 0.0
    %3709 = vmatpush1.msra.mxu0 0.0
    %3710 = vmatprep.subr.mxu0 0.0
    %3711 = vmatpush1.msra.mxu0 0.0
    %3712 = vmatprep.subr.mxu0 0.0
    %3713 = vmatpush1.msra.mxu0 0.0
    %3714 = vmatprep.subr.mxu0 0.0
    %3715 = vmatpush1.msra.mxu0 0.0
    %3716 = vmatprep.subr.mxu0 0.0
    %3717 = vmatpush1.msra.mxu0 0.0
    %3718 = vmatprep.subr.mxu0 0.0
    %3719 = vmatpush1.msra.mxu0 0.0
    %3720 = vmatprep.subr.mxu0 0.0
    %3721 = vmatpush1.msra.mxu0 0.0
    %3722 = vmatprep.subr.mxu0 0.0
    %3723 = vmatpush1.msra.mxu0 %v3683
    %3724 = vmatprep.subr.mxu0 0.0
    %3725 = vmatpush1.msra.mxu0 %v3682
    %3726 = vmatprep.subr.mxu0 0.0
    %3727 = vmatpush1.msra.mxu0 %v3681
    %3728 = vmatprep.subr.mxu0 0.0
    %3729 = vmatpush1.msra.mxu0 %v3680
    %3730 = vmatprep.subr.mxu0 0.0
    %3731 = vmatpush2.msra.mxu0 0.0
    %3732 = vmatprep.subr.mxu0 0.0
    %3733 = vmatpush2.msra.mxu0 0.0
    %3734 = vmatprep.subr.mxu0 0.0
    %3735 = vmatpush2.msra.mxu0 0.0
    %3736 = vmatprep.subr.mxu0 0.0
    %3737 = vmatpush2.msra.mxu0 0.0
    %3738 = vmatprep.subr.mxu0 0.0
    %3739 = vmatpush2.msra.mxu0 0.0
    %3740 = vmatprep.subr.mxu0 0.0
    %3741 = vmatpush2.msra.mxu0 0.0
    %3742 = vmatprep.subr.mxu0 0.0
    %3743 = vmatpush2.msra.mxu0 0.0
    %3744 = vmatprep.subr.mxu0 0.0
    %3745 = vmatpush2.msra.mxu0 0.0
    %3746 = vmatprep.subr.mxu0 0.0
    %3747 = vmatpush2.msra.mxu0 0.0
    %3748 = vmatprep.subr.mxu0 0.0
    %3749 = vmatpush2.msra.mxu0 0.0
    %3750 = vmatprep.subr.mxu0 0.0
    %3751 = vmatpush2.msra.mxu0 0.0
    %3752 = vmatprep.subr.mxu0 0.0
    %3753 = vmatpush2.msra.mxu0 0.0
    %3754 = vmatprep.subr.mxu0 0.0
    %3755 = vmatpush2.msra.mxu0 0.0
    %3756 = vmatprep.subr.mxu0 0.0
    %3757 = vmatpush2.msra.mxu0 0.0
    %3758 = vmatprep.subr.mxu0 0.0
    %3759 = vmatpush2.msra.mxu0 0.0
    %3760 = vmatprep.subr.mxu0 0.0
    %3761 = vmatpush2.msra.mxu0 0.0
    %3762 = vmatprep.mubr.f32.mxu0 0.0
    %3763 = vmatmul.mubr.f32.gmra.mxu0 %v3693
    %v3764 = vpop.f32.mrf.mxu0
    %v3765 = vadd.f32 %v3690, %v3764
    %v3766 = vpop.f32.mrf.mxu0
    %3767 = vmatprep.mubr.f32.mxu0 0.0
    %3768 = vmatmul.mubr.f32.gmra.mxu0 %v3696
    %v3769 = vpop.f32.mrf.mxu0
    %v3770 = vadd.f32 %v3690, %v3769
    %v3771 = vpop.f32.mrf.mxu0
    %3772 = vdwg.mxu0
    %v3773 = vmul.f32 %v3765, 0.5
    %v3774 = vmul.f32 %v3770, 0.5
    %v3775 = vmul.f32 %v3765, 0.044715
    %v3776 = vmul.f32 %v3770, 0.044715
    %v3777 = vmul.f32 %v3775, %v3765
    %v3778 = vmul.f32 %v3776, %v3770
    %v3779 = vmul.f32 %v3777, %v3765
    %v3780 = vmul.f32 %v3778, %v3770
    %v3781 = vadd.f32 %v3765, %v3779
    %v3782 = vadd.f32 %v3770, %v3780
    %v3783 = vmul.f32 %v3781, 0.7978846
    %v3784 = vmul.f32 %v3782, 0.7978846
    %v3785 = vtanh.pop %v3783
    %v3786 = vtanh.pop %v3784
    %v3787 = vadd.f32 %v3785, 1.0
    %v3788 = vadd.f32 %v3786, 1.0
    %v3789 = vmul.f32 %v3773, %v3787
    %v3790 = vmul.f32 %v3774, %v3788
    %s3791 = scalar_lea.vmem %s14, 64
    %v3792 = vld [vmem:[%s3791] sm:$0xff]
    %v3793 = vld [vmem:[%s3791 + $0x8] sm:$0xff]
    %v3794 = vld [vmem:[%s3791 + $0x10] sm:$0xff]
    %v3795 = vld [vmem:[%s3791 + $0x18] sm:$0xff]
    %v3796 = vld [vmem:[%s3791 + $0x20] sm:$0xff]
    %v3797 = vld [vmem:[%s3791 + $0x28] sm:$0xff]
    %v3798 = vld [vmem:[%s3791 + $0x30] sm:$0xff]
    %v3799 = vld [vmem:[%s3791 + $0x38] sm:$0xff]
    %s3800 = scalar_lea.vmem %s15, 1
    %v3801 = vld [vmem:[%s3800] sm:$0x1]
    %v3803 = vlaneseq
    %v3804 = vshrl.u32 %v3803, 7
    %v3805 = vsub.s32 0, %v3804
    %v3806 = vrot.slane %v3801, %v3805
    %v3809 = vsel %vm1959, %v3789, 0
    %v3812 = vsel %vm1959, %v3790, 0
    %3814 = vmatprep.subr.mxu0 0.0
    %3815 = vmatpush1.msra.mxu0 0.0
    %3816 = vmatprep.subr.mxu0 0.0
    %3817 = vmatpush1.msra.mxu0 0.0
    %3818 = vmatprep.subr.mxu0 0.0
    %3819 = vmatpush1.msra.mxu0 0.0
    %3820 = vmatprep.subr.mxu0 0.0
    %3821 = vmatpush1.msra.mxu0 0.0
    %3822 = vmatprep.subr.mxu0 0.0
    %3823 = vmatpush1.msra.mxu0 0.0
    %3824 = vmatprep.subr.mxu0 0.0
    %3825 = vmatpush1.msra.mxu0 0.0
    %3826 = vmatprep.subr.mxu0 0.0
    %3827 = vmatpush1.msra.mxu0 0.0
    %3828 = vmatprep.subr.mxu0 0.0
    %3829 = vmatpush1.msra.mxu0 0.0
    %3830 = vmatprep.subr.mxu0 0.0
    %3831 = vmatpush1.msra.mxu0 %v3799
    %3832 = vmatprep.subr.mxu0 0.0
    %3833 = vmatpush1.msra.mxu0 %v3798
    %3834 = vmatprep.subr.mxu0 0.0
    %3835 = vmatpush1.msra.mxu0 %v3797
    %3836 = vmatprep.subr.mxu0 0.0
    %3837 = vmatpush1.msra.mxu0 %v3796
    %3838 = vmatprep.subr.mxu0 0.0
    %3839 = vmatpush1.msra.mxu0 %v3795
    %3840 = vmatprep.subr.mxu0 0.0
    %3841 = vmatpush1.msra.mxu0 %v3794
    %3842 = vmatprep.subr.mxu0 0.0
    %3843 = vmatpush1.msra.mxu0 %v3793
    %3844 = vmatprep.subr.mxu0 0.0
    %3845 = vmatpush1.msra.mxu0 %v3792
    %3846 = vmatprep.subr.mxu0 0.0
    %3847 = vmatpush2.msra.mxu0 0.0
    %3848 = vmatprep.subr.mxu0 0.0
    %3849 = vmatpush2.msra.mxu0 0.0
    %3850 = vmatprep.subr.mxu0 0.0
    %3851 = vmatpush2.msra.mxu0 0.0
    %3852 = vmatprep.subr.mxu0 0.0
    %3853 = vmatpush2.msra.mxu0 0.0
    %3854 = vmatprep.subr.mxu0 0.0
    %3855 = vmatpush2.msra.mxu0 0.0
    %3856 = vmatprep.subr.mxu0 0.0
    %3857 = vmatpush2.msra.mxu0 0.0
    %3858 = vmatprep.subr.mxu0 0.0
    %3859 = vmatpush2.msra.mxu0 0.0
    %3860 = vmatprep.subr.mxu0 0.0
    %3861 = vmatpush2.msra.mxu0 0.0
    %3862 = vmatprep.subr.mxu0 0.0
    %3863 = vmatpush2.msra.mxu0 0.0
    %3864 = vmatprep.subr.mxu0 0.0
    %3865 = vmatpush2.msra.mxu0 0.0
    %3866 = vmatprep.subr.mxu0 0.0
    %3867 = vmatpush2.msra.mxu0 0.0
    %3868 = vmatprep.subr.mxu0 0.0
    %3869 = vmatpush2.msra.mxu0 0.0
    %3870 = vmatprep.subr.mxu0 0.0
    %3871 = vmatpush2.msra.mxu0 0.0
    %3872 = vmatprep.subr.mxu0 0.0
    %3873 = vmatpush2.msra.mxu0 0.0
    %3874 = vmatprep.subr.mxu0 0.0
    %3875 = vmatpush2.msra.mxu0 0.0
    %3876 = vmatprep.subr.mxu0 0.0
    %3877 = vmatpush2.msra.mxu0 0.0
    %3878 = vmatprep.mubr.f32.mxu0 0.0
    %3879 = vmatmul.mubr.f32.gmra.mxu0 %v3809
    %v3880 = vpop.f32.mrf.mxu0
    %v3881 = vadd.f32 %v3806, %v3880
    %v3882 = vpop.f32.mrf.mxu0
    %3883 = vmatprep.mubr.f32.mxu0 0.0
    %3884 = vmatmul.mubr.f32.gmra.mxu0 %v3812
    %v3885 = vpop.f32.mrf.mxu0
    %v3886 = vadd.f32 %v3806, %v3885
    %v3887 = vpop.f32.mrf.mxu0
    %3888 = vdwg.mxu0
    %v3889 = vadd.f32 %v3881, %v3677
    %v3890 = vadd.f32 %v3886, %v3678
    %s3891 = scalar_lea.vmem %s16, 1
    %v3892 = vld [vmem:[%s3891] sm:$0x1]
    %s3893 = scalar_lea.vmem %s17, 1
    %v3894 = vld [vmem:[%s3893] sm:$0x1]
    %v3895 = vsel %vm190, %v3889, 0.0
    %3896 = vadd.xlane.f32.xlu0 %v3895
    %v3897 = vpop.xlane.xlu0 %3896
    %v3898 = vsel %vm190, %v3890, 0.0
    %3899 = vadd.xlane.f32.xlu0 %v3898
    %v3900 = vpop.xlane.xlu0 %3899
    %v3901 = vmul.f32 %v3897, %v197
    %v3902 = vmul.f32 %v3900, %v197
    %v3903 = vsub.f32 %v3889, %v3901
    %v3904 = vsub.f32 %v3890, %v3902
    %v3905 = vmul.f32 %v3903, %v3903
    %v3906 = vmul.f32 %v3904, %v3904
    %v3907 = vsel %vm190, %v3905, 0.0
    %3908 = vadd.xlane.f32.xlu0 %v3907
    %v3909 = vpop.xlane.xlu0 %3908
    %v3910 = vsel %vm190, %v3906, 0.0
    %3911 = vadd.xlane.f32.xlu0 %v3910
    %v3912 = vpop.xlane.xlu0 %3911
    %v3913 = vmul.f32 %v3909, %v197
    %v3914 = vmul.f32 %v3912, %v197
    %v3915 = vadd.f32 %v3913, 1e-12
    %v3916 = vadd.f32 %v3914, 1e-12
    %v3917 = vrsqrt.pop %v3915
    %v3918 = vrsqrt.pop %v3916
    %v3919 = vmul.f32 %v3903, %v3917
    %v3920 = vmul.f32 %v3904, %v3918
    %v3922 = vlaneseq
    %v3923 = vshrl.u32 %v3922, 7
    %v3924 = vsub.s32 0, %v3923
    %v3925 = vrot.slane %v3892, %v3924
    %v3927 = vmul.f32 %v3919, %v3925
    %v3928 = vmul.f32 %v3920, %v3925
    %v3930 = vlaneseq
    %v3931 = vshrl.u32 %v3930, 7
    %v3932 = vsub.s32 0, %v3931
    %v3933 = vrot.slane %v3894, %v3932
    %v3935 = vadd.f32 %v3927, %v3933
    %v3936 = vadd.f32 %v3928, %v3933
    %v3938 = vrot.slane %v3936, 7
    %vm3940 = vcmask 1040384
    %v3941 = vsel %vm3940, %v3935, %v3938
    %v3942 = vld [vmem:[%s18] sm:$0xff]
    %v3943 = vld [vmem:[%s18 + $0x8] sm:$0xff]
    %v3944 = vld [vmem:[%s18 + $0x10] sm:$0xff]
    %v3945 = vld [vmem:[%s18 + $0x18] sm:$0xff]
    %v3946 = vld [vmem:[%s19] sm:$0x1]
    %v3948 = vlaneseq
    %v3949 = vshrl.u32 %v3948, 7
    %v3950 = vsub.s32 0, %v3949
    %v3951 = vrot.slane %v3946, %v3950
    %v3954 = vsel %vm190, %v3941, 0
    %3956 = vmatprep.subr.mxu0 0.0
    %3957 = vmatpush1.msra.mxu0 0.0
    %3958 = vmatprep.subr.mxu0 0.0
    %3959 = vmatpush1.msra.mxu0 0.0
    %3960 = vmatprep.subr.mxu0 0.0
    %3961 = vmatpush1.msra.mxu0 0.0
    %3962 = vmatprep.subr.mxu0 0.0
    %3963 = vmatpush1.msra.mxu0 0.0
    %3964 = vmatprep.subr.mxu0 0.0
    %3965 = vmatpush1.msra.mxu0 0.0
    %3966 = vmatprep.subr.mxu0 0.0
    %3967 = vmatpush1.msra.mxu0 0.0
    %3968 = vmatprep.subr.mxu0 0.0
    %3969 = vmatpush1.msra.mxu0 0.0
    %3970 = vmatprep.subr.mxu0 0.0
    %3971 = vmatpush1.msra.mxu0 0.0
    %3972 = vmatprep.subr.mxu0 0.0
    %3973 = vmatpush1.msra.mxu0 0.0
    %3974 = vmatprep.subr.mxu0 0.0
    %3975 = vmatpush1.msra.mxu0 0.0
    %3976 = vmatprep.subr.mxu0 0.0
    %3977 = vmatpush1.msra.mxu0 0.0
    %3978 = vmatprep.subr.mxu0 0.0
    %3979 = vmatpush1.msra.mxu0 0.0
    %3980 = vmatprep.subr.mxu0 0.0
    %3981 = vmatpush1.msra.mxu0 %v3945
    %3982 = vmatprep.subr.mxu0 0.0
    %3983 = vmatpush1.msra.mxu0 %v3944
    %3984 = vmatprep.subr.mxu0 0.0
    %3985 = vmatpush1.msra.mxu0 %v3943
    %3986 = vmatprep.subr.mxu0 0.0
    %3987 = vmatpush1.msra.mxu0 %v3942
    %3988 = vmatprep.subr.mxu0 0.0
    %3989 = vmatpush2.msra.mxu0 0.0
    %3990 = vmatprep.subr.mxu0 0.0
    %3991 = vmatpush2.msra.mxu0 0.0
    %3992 = vmatprep.subr.mxu0 0.0
    %3993 = vmatpush2.msra.mxu0 0.0
    %3994 = vmatprep.subr.mxu0 0.0
    %3995 = vmatpush2.msra.mxu0 0.0
    %3996 = vmatprep.subr.mxu0 0.0
    %3997 = vmatpush2.msra.mxu0 0.0
    %3998 = vmatprep.subr.mxu0 0.0
    %3999 = vmatpush2.msra.mxu0 0.0
    %4000 = vmatprep.subr.mxu0 0.0
    %4001 = vmatpush2.msra.mxu0 0.0
    %4002 = vmatprep.subr.mxu0 0.0
    %4003 = vmatpush2.msra.mxu0 0.0
    %4004 = vmatprep.subr.mxu0 0.0
    %4005 = vmatpush2.msra.mxu0 0.0
    %4006 = vmatprep.subr.mxu0 0.0
    %4007 = vmatpush2.msra.mxu0 0.0
    %4008 = vmatprep.subr.mxu0 0.0
    %4009 = vmatpush2.msra.mxu0 0.0
    %4010 = vmatprep.subr.mxu0 0.0
    %4011 = vmatpush2.msra.mxu0 0.0
    %4012 = vmatprep.subr.mxu0 0.0
    %4013 = vmatpush2.msra.mxu0 0.0
    %4014 = vmatprep.subr.mxu0 0.0
    %4015 = vmatpush2.msra.mxu0 0.0
    %4016 = vmatprep.subr.mxu0 0.0
    %4017 = vmatpush2.msra.mxu0 0.0
    %4018 = vmatprep.subr.mxu0 0.0
    %4019 = vmatpush2.msra.mxu0 0.0
    %4020 = vmatprep.mubr.f32.mxu0 0.0
    %4021 = vmatmul.mubr.f32.gmra.mxu0 %v3954
    %v4022 = vpop.f32.mrf.mxu0
    %v4023 = vadd.f32 %v3951, %v4022
    %v4024 = vpop.f32.mrf.mxu0
    %4025 = vdwg.mxu0
    %v4026 = vtanh.pop %v4023
    %v4027 = vld [vmem:[%s20] sm:$0xff]
    %v4028 = vld [vmem:[%s20 + $0x8] sm:$0xff]
    %v4029 = vld [vmem:[%s20 + $0x10] sm:$0xff]
    %v4030 = vld [vmem:[%s20 + $0x18] sm:$0xff]
    %v4031 = vld [vmem:[%s21] sm:$0x1]
    %v4033 = vlaneseq
    %v4034 = vshrl.u32 %v4033, 7
    %v4035 = vsub.s32 0, %v4034
    %v4036 = vrot.slane %v4031, %v4035
    %v4039 = vsel %vm190, %v4026, 0
    %4041 = vmatprep.subr.mxu0 0.0
    %4042 = vmatpush1.msra.mxu0 0.0
    %4043 = vmatprep.subr.mxu0 0.0
    %4044 = vmatpush1.msra.mxu0 0.0
    %4045 = vmatprep.subr.mxu0 0.0
    %4046 = vmatpush1.msra.mxu0 0.0
    %4047 = vmatprep.subr.mxu0 0.0
    %4048 = vmatpush1.msra.mxu0 0.0
    %4049 = vmatprep.subr.mxu0 0.0
    %4050 = vmatpush1.msra.mxu0 0.0
    %4051 = vmatprep.subr.mxu0 0.0
    %4052 = vmatpush1.msra.mxu0 0.0
    %4053 = vmatprep.subr.mxu0 0.0
    %4054 = vmatpush1.msra.mxu0 0.0
    %4055 = vmatprep.subr.mxu0 0.0
    %4056 = vmatpush1.msra.mxu0 0.0
    %4057 = vmatprep.subr.mxu0 0.0
    %4058 = vmatpush1.msra.mxu0 0.0
    %4059 = vmatprep.subr.mxu0 0.0
    %4060 = vmatpush1.msra.mxu0 0.0
    %4061 = vmatprep.subr.mxu0 0.0
    %4062 = vmatpush1.msra.mxu0 0.0
    %4063 = vmatprep.subr.mxu0 0.0
    %4064 = vmatpush1.msra.mxu0 0.0
    %4065 = vmatprep.subr.mxu0 0.0
    %4066 = vmatpush1.msra.mxu0 %v4030
    %4067 = vmatprep.subr.mxu0 0.0
    %4068 = vmatpush1.msra.mxu0 %v4029
    %4069 = vmatprep.subr.mxu0 0.0
    %4070 = vmatpush1.msra.mxu0 %v4028
    %4071 = vmatprep.subr.mxu0 0.0
    %4072 = vmatpush1.msra.mxu0 %v4027
    %4073 = vmatprep.subr.mxu0 0.0
    %4074 = vmatpush2.msra.mxu0 0.0
    %4075 = vmatprep.subr.mxu0 0.0
    %4076 = vmatpush2.msra.mxu0 0.0
    %4077 = vmatprep.subr.mxu0 0.0
    %4078 = vmatpush2.msra.mxu0 0.0
    %4079 = vmatprep.subr.mxu0 0.0
    %4080 = vmatpush2.msra.mxu0 0.0
    %4081 = vmatprep.subr.mxu0 0.0
    %4082 = vmatpush2.msra.mxu0 0.0
    %4083 = vmatprep.subr.mxu0 0.0
    %4084 = vmatpush2.msra.mxu0 0.0
    %4085 = vmatprep.subr.mxu0 0.0
    %4086 = vmatpush2.msra.mxu0 0.0
    %4087 = vmatprep.subr.mxu0 0.0
    %4088 = vmatpush2.msra.mxu0 0.0
    %4089 = vmatprep.subr.mxu0 0.0
    %4090 = vmatpush2.msra.mxu0 0.0
    %4091 = vmatprep.subr.mxu0 0.0
    %4092 = vmatpush2.msra.mxu0 0.0
    %4093 = vmatprep.subr.mxu0 0.0
    %4094 = vmatpush2.msra.mxu0 0.0
    %4095 = vmatprep.subr.mxu0 0.0
    %4096 = vmatpush2.msra.mxu0 0.0
    %4097 = vmatprep.subr.mxu0 0.0
    %4098 = vmatpush2.msra.mxu0 0.0
    %4099 = vmatprep.subr.mxu0 0.0
    %4100 = vmatpush2.msra.mxu0 0.0
    %4101 = vmatprep.subr.mxu0 0.0
    %4102 = vmatpush2.msra.mxu0 0.0
    %4103 = vmatprep.subr.mxu0 0.0
    %4104 = vmatpush2.msra.mxu0 0.0
    %4105 = vmatprep.mubr.f32.mxu0 0.0
    %4106 = vmatmul.mubr.f32.gmra.mxu0 %v4039
    %v4107 = vpop.f32.mrf.mxu0
    %v4108 = vadd.f32 %v4036, %v4107
    %v4109 = vpop.f32.mrf.mxu0
    %4110 = vdwg.mxu0
    %vm4111 = vcmask 25600
    %v4112 = vsel %vm4111, %v4108, -inf
    %4113 = vmax.xlane.f32.xlu0 %v4112
    %v4114 = vpop.xlane.xlu0 %4113
    %v4115 = vsub.f32 %v4108, %v4114
    %v4116 = vmul.f32 %v4115, 1.442695
    %v4117 = vpow.pop %v4116
    %v4118 = vsel %vm4111, %v4117, 0.0
    %4119 = vadd.xlane.f32.xlu0 %v4118
    %v4120 = vpop.xlane.xlu0 %4119
    %v4121 = vrcp.pop %v4120
    %v4122 = vmul.f32 %v4117, %v4121
    %4123 = vst.msk [vmem:[#allocation2] sm:$0x3] %vm4111, %v4122
    // Predicated region
    $region90: #{bert_classifier_forward.1} parent=1 // pred_check
      _
    $region91: #{bert_classifier_forward.1} parent=1 // pred_check_branch
      %4125 = sbr.rel (0) target = $region93
    $region92: #{bert_classifier_forward.1} parent=1 // pred_region
      %s4127 = ssub.s32 32, 32
      %4128 = vsyncadd [#allocation3], %s4127
      %s4130 = sshll.u32 [#allocation2], 4
      %s4131 = int_to_ptr.vmem [resolvable:$true] %s4130
      %4133 = dma.vmem_to_hbm [thread:$0]  %s4131, 32, %s22, [#allocation3]
    $region93: #{bert_classifier_forward.1} parent=1 // pred_fallthru
      _
    // Predicated region
    $region94: #{bert_classifier_forward.1} parent=1 // pred_check
      _
    $region95: #{bert_classifier_forward.1} parent=1 // pred_check_branch
      %4135 = sbr.rel (0) target = $region97
    $region96: #{bert_classifier_forward.1} parent=1 // pred_region
      %4136 = dma.done [#allocation3], 32
    $region97: #{bert_classifier_forward.1} parent=1 // pred_fallthru
      _
    %4137 = vsyncpa [#allocation3], 1

</llo_original>
